<compile_context>
chip_gen: v7x
topology: tpu7x:2x2x1
jax: 0.10.0
libtpu: 0.0.40
codegen_flags: <defaults>
</compile_context>

<pallas_src>
import functools

import jax
import jax.numpy as jnp
from jax.experimental import pallas as pl
from jax.experimental.pallas import tpu as pltpu

HIDDEN = 128
OUTPUT = 128
INPUT = 1

_SEQ_CHUNK_MAX = 1024    # lstm0: rows of the flattened B*T sequence per grid step
_TIME_CHUNK_MAX = 256    # lstm1/2: time steps per grid step
# Per-chunk VMEM footprints stay ~5 MiB (double-buffered), well under the 16 MiB v5e
# scoped default and far under v6e/v7x limits, so no vmem_limit override is needed.


def _round_up(n, m):
    return (n + m - 1) // m * m


def _gate_scale(hidden):
    # Pre-scale for sigmoid(x) = 0.5*(tanh(x/2)+1): halve the i/f/o gate columns,
    # leave the g (cell candidate, tanh) columns untouched.
    return jnp.concatenate(
        [jnp.full((1, hidden), 0.5, jnp.float32),
         jnp.full((1, hidden), 0.5, jnp.float32),
         jnp.ones((1, hidden), jnp.float32),
         jnp.full((1, hidden), 0.5, jnp.float32)], axis=1)


# ---------------------------------------------------------------------------
# Kernel 1: lstm0 over the flattened (B*T,) sequence (batch = 1, D = 1).
#   input  : pre-scaled, precomputed x-gates (x * W_ih0 + b0), packed (S/8, 8, 4H)
#   output : layer-0 hidden states, packed (S/8, 8, H)
# ---------------------------------------------------------------------------
def _lstm0_kernel(g0_ref, whh_ref, out_ref, h_sc, c_sc, row_sc, *, hidden):
    H = hidden
    chunk = pl.program_id(0)

    @pl.when(chunk == 0)
    def _():
        h_sc[...] = jnp.zeros_like(h_sc)
        c_sc[...] = jnp.zeros_like(c_sc)

    whh = whh_ref[...]                       # (H, 4H) bf16, pre-scaled (hoisted load)
    n_groups = g0_ref.shape[0]               # seq_chunk // 8

    def group_body(g, carry):
        h, c = carry
        g0 = g0_ref[g]                       # (8, 4H) f32, x-projection + bias (pre-scaled)
        for j in range(8):                   # static unroll within the 8-row tile
            gates = g0[j:j + 1, :] + jnp.dot(
                h.astype(jnp.bfloat16), whh, preferred_element_type=jnp.float32)
            t = jnp.tanh(gates)              # single EUP pass over all four gates
            i = 0.5 * t[:, 0:H] + 0.5
            f = 0.5 * t[:, H:2 * H] + 0.5
            gg = t[:, 2 * H:3 * H]
            o = 0.5 * t[:, 3 * H:4 * H] + 0.5
            c = f * c + i * gg
            h = o * jnp.tanh(c)
            row_sc[j:j + 1, :] = h           # write row out immediately (no list/concat)
        out_ref[g] = row_sc[...]             # (8, H) -> output block
        return h, c

    h, c = jax.lax.fori_loop(0, n_groups, group_body, (h_sc[...], c_sc[...]))
    h_sc[...] = h
    c_sc[...] = c


def _lstm0_call(gates0_3d, whh0_bf, *, seq_chunk):
    n_grp_total, _, G4 = gates0_3d.shape
    H = whh0_bf.shape[0]
    s_pad = n_grp_total * 8
    n_chunks = s_pad // seq_chunk
    grid_spec = pltpu.PrefetchScalarGridSpec(
        num_scalar_prefetch=0,
        grid=(n_chunks,),
        in_specs=[
            pl.BlockSpec((seq_chunk // 8, 8, G4), lambda c: (c, 0, 0)),
            pl.BlockSpec((H, G4), lambda c: (0, 0)),
        ],
        out_specs=pl.BlockSpec((seq_chunk // 8, 8, H), lambda c: (c, 0, 0)),
        scratch_shapes=[pltpu.VMEM((1, H), jnp.float32),
                        pltpu.VMEM((1, H), jnp.float32),
                        pltpu.VMEM((8, H), jnp.float32)],
    )
    return pl.pallas_call(
        functools.partial(_lstm0_kernel, hidden=H),
        out_shape=jax.ShapeDtypeStruct((s_pad // 8, 8, H), jnp.float32),
        grid_spec=grid_spec,
        compiler_params=pltpu.CompilerParams(
            dimension_semantics=("arbitrary",)),     # sequential recurrence
    )(gates0_3d, whh0_bf)


# ---------------------------------------------------------------------------
# Kernel 2: fused lstm1 + lstm2 + Linear.
#   input  : layer-0 hidden states, packed (B, T8/8, 8, H)
#   outputs: y = Linear(h2 at step T-1) and c2 at step T-1
# ---------------------------------------------------------------------------
def _lstm12_kernel(x_ref, w1_ref, w2_ref, b1_ref, b2_ref, linw_ref, linb_ref,
                   y_ref, cn_ref,
                   h1_sc, c1_sc, h2_sc, c2_sc, hfin_sc, cfin_sc,
                   *, seq_len, hidden):
    H = hidden
    B = x_ref.shape[0]
    n_grp = x_ref.shape[1]                   # time_chunk // 8
    chunk = pl.program_id(0)

    @pl.when(chunk == 0)
    def _():
        h1_sc[...] = jnp.zeros_like(h1_sc)
        c1_sc[...] = jnp.zeros_like(c1_sc)
        h2_sc[...] = jnp.zeros_like(h2_sc)
        c2_sc[...] = jnp.zeros_like(c2_sc)

    # Loop-invariant loads / broadcasts hoisted out of the step loop.
    w1 = w1_ref[...]                         # (2H, 4H) bf16, [W_ih1; W_hh1], pre-scaled
    w2 = w2_ref[...]                         # (2H, 4H) bf16, [W_ih2; W_hh2], pre-scaled
    b1 = jnp.broadcast_to(b1_ref[...], (B, 4 * H))
    b2 = jnp.broadcast_to(b2_ref[...], (B, 4 * H))
    base = chunk * n_grp * 8

    def cell(z_bf, w, b, c_prev):
        # z_bf: (B, 2H) bf16 = [input | h_prev]; one fused K=2H MXU matmul per step.
        g = jnp.dot(z_bf, w, preferred_element_type=jnp.float32) + b
        t = jnp.tanh(g)                      # single EUP pass (sigmoid via tanh identity)
        i = 0.5 * t[:, 0:H] + 0.5
        f = 0.5 * t[:, H:2 * H] + 0.5
        gg = t[:, 2 * H:3 * H]
        o = 0.5 * t[:, 3 * H:4 * H] + 0.5
        c = f * c_prev + i * gg
        h = o * jnp.tanh(c)
        return h, c

    def group_body(g, carry):
        h1, c1, h2, c2 = carry
        xg = x_ref[:, g, :, :]               # (B, 8, H) aligned full-tile load
        for j in range(8):                   # static unroll
            x_t = xg[:, j, :]                # (B, H) static row extract
            z1 = jnp.concatenate([x_t, h1], axis=1).astype(jnp.bfloat16)
            h1, c1 = cell(z1, w1, b1, c1)
            z2 = jnp.concatenate([h1, h2], axis=1).astype(jnp.bfloat16)
            h2, c2 = cell(z2, w2, b2, c2)

            # Snapshot the final state at the true last step (scalar-guarded, so padded
            # tail steps run freely without corrupting the result).
            @pl.when(base + g * 8 + j == seq_len - 1)
            def _(h2=h2, c2=c2):
                hfin_sc[...] = h2
                cfin_sc[...] = c2
        return h1, c1, h2, c2

    h1, c1, h2, c2 = jax.lax.fori_loop(
        0, n_grp, group_body,
        (h1_sc[...], c1_sc[...], h2_sc[...], c2_sc[...]))
    h1_sc[...] = h1
    c1_sc[...] = c1
    h2_sc[...] = h2
    c2_sc[...] = c2

    @pl.when(chunk == pl.num_programs(0) - 1)
    def _():
        hf = hfin_sc[...]
        y_ref[...] = (jnp.dot(hf, linw_ref[...],
                              preferred_element_type=jnp.float32)
                      + linb_ref[...]).astype(y_ref.dtype)
        cn_ref[...] = cfin_sc[...].astype(cn_ref.dtype)


def _lstm12_call(out0_4d, w1, w2, b1, b2, lin_w, lin_b, *, seq_len, time_chunk):
    B, n_grp_total, _, H = out0_4d.shape
    G4 = w1.shape[1]
    O = lin_w.shape[1]
    tc_grp = time_chunk // 8
    n_chunks = (n_grp_total + tc_grp - 1) // tc_grp
    grid_spec = pltpu.PrefetchScalarGridSpec(
        num_scalar_prefetch=0,
        grid=(n_chunks,),
        in_specs=[
            pl.BlockSpec((B, tc_grp, 8, H), lambda c: (0, c, 0, 0)),
            pl.BlockSpec((2 * H, G4), lambda c: (0, 0)),
            pl.BlockSpec((2 * H, G4), lambda c: (0, 0)),
            pl.BlockSpec((1, G4), lambda c: (0, 0)),
            pl.BlockSpec((1, G4), lambda c: (0, 0)),
            pl.BlockSpec((H, O), lambda c: (0, 0)),
            pl.BlockSpec((1, O), lambda c: (0, 0)),
        ],
        out_specs=(
            pl.BlockSpec((B, O), lambda c: (0, 0)),
            pl.BlockSpec((B, H), lambda c: (0, 0)),
        ),
        scratch_shapes=[pltpu.VMEM((B, H), jnp.float32)] * 6,
    )
    return pl.pallas_call(
        functools.partial(_lstm12_kernel, seq_len=seq_len, hidden=H),
        out_shape=(jax.ShapeDtypeStruct((B, O), jnp.float32),
                   jax.ShapeDtypeStruct((B, H), jnp.float32)),
        grid_spec=grid_spec,
        compiler_params=pltpu.CompilerParams(
            dimension_semantics=("arbitrary",)),     # sequential recurrence
    )(out0_4d, w1, w2, b1, b2, lin_w, lin_b)


# ---------------------------------------------------------------------------
# Deterministic parameter init (shapes match nn.LSTM / nn.Linear)
# ---------------------------------------------------------------------------
def _orthogonal(key, n):
    a = jax.random.normal(key, (n, n), jnp.float32)
    q, r = jnp.linalg.qr(a)
    return q * jnp.sign(jnp.diagonal(r))[None, :]


def init_lstm_params(key, in_dim, H, forget_bias=0.0):
    k_ih, k_hh = jax.random.split(key)
    bound = (6.0 / (in_dim + 4 * H)) ** 0.5                 # xavier uniform
    wih = jax.random.uniform(k_ih, (in_dim, 4 * H), jnp.float32, -bound, bound)
    whh = jnp.concatenate(
        [_orthogonal(k, H) for k in jax.random.split(k_hh, 4)], axis=1)  # (H, 4H)
    b = jnp.zeros((4 * H,), jnp.float32).at[H:2 * H].set(forget_bias)
    return wih, whh, b.reshape(1, 4 * H)                    # b = b_ih + b_hh


def init_params(key):
    k0, k1, k2, k3 = jax.random.split(key, 4)
    params = {
        "lstm0": init_lstm_params(k0, INPUT, HIDDEN, forget_bias=1.0),
        "lstm1": init_lstm_params(k1, HIDDEN, HIDDEN, forget_bias=0.0),
        "lstm2": init_lstm_params(k2, HIDDEN, HIDDEN, forget_bias=0.0),
    }
    bound = (6.0 / (HIDDEN + OUTPUT)) ** 0.5
    params["lin_w"] = jax.random.uniform(k3, (HIDDEN, OUTPUT), jnp.float32,
                                         -bound, bound)
    params["lin_b"] = jnp.zeros((1, OUTPUT), jnp.float32)
    return params


# ---------------------------------------------------------------------------
# Full forward (mirrors LSTMDFMTM128.forward with hn/cn freshly reset)
# ---------------------------------------------------------------------------
@jax.jit
def lstm_df_forward(x, params):
    B, T, _ = x.shape
    H = HIDDEN
    G4 = 4 * H
    S = B * T

    wih0, whh0, b0 = params["lstm0"]
    wih1, whh1, b1 = params["lstm1"]
    wih2, whh2, b2 = params["lstm2"]
    sc = _gate_scale(H)

    # --- weight prep: pre-scale i/f/o gate columns (single-tanh trick), fuse the
    #     per-layer input + recurrent weights, cast recurrent weights to bf16.
    whh0_bf = (whh0 * sc).astype(jnp.bfloat16)                       # (H, 4H)
    w1cat = (jnp.concatenate([wih1, whh1], axis=0) * sc).astype(jnp.bfloat16)  # (2H, 4H)
    w2cat = (jnp.concatenate([wih2, whh2], axis=0) * sc).astype(jnp.bfloat16)  # (2H, 4H)
    b1s = b1 * sc
    b2s = b2 * sc

    # Hoisted lstm0 input projection (D=1 -> broadcast multiply, bias folded, pre-scaled).
    gates0 = x.reshape(S, 1) * (wih0 * sc) + (b0 * sc)               # (S, 4H)

    # Chunk the flattened B*T sequence; pad with zero rows (padded steps only touch
    # lstm0's unused final state and output rows that are sliced off below).
    seq_chunk = min(_SEQ_CHUNK_MAX, _round_up(S, 8))
    s_pad = _round_up(S, seq_chunk)
    gates0 = jnp.pad(gates0, ((0, s_pad - S), (0, 0)))
    gates0_3d = gates0.reshape(s_pad // 8, 8, G4)                    # 8-row tile packing

    out0_3d = _lstm0_call(gates0_3d, whh0_bf, seq_chunk=seq_chunk)   # (s_pad/8, 8, H)

    # b-major hidden states -> (B, T8/8, 8, H) packing for kernel 2 (pure reshape,
    # no transpose; the T-pad only happens when T % 8 != 0).
    out0 = out0_3d.reshape(s_pad, H)[:S].reshape(B, T, H)
    T8 = _round_up(T, 8)
    if T8 != T:
        out0 = jnp.pad(out0, ((0, 0), (0, T8 - T), (0, 0)))
    out0_4d = out0.reshape(B, T8 // 8, 8, H)

    time_chunk = min(_TIME_CHUNK_MAX, T8)
    y, c2 = _lstm12_call(out0_4d, w1cat, w2cat, b1s, b2s,
                         params["lin_w"], params["lin_b"],
                         seq_len=T, time_chunk=time_chunk)

    cn2 = c2.reshape(1, B, H)                                        # PyTorch c_n layout
    return y[:, :, None], cn2, cn2, cn2


# ---------------------------------------------------------------------------
# Pure-JAX reference (for a correctness self-check)
# ---------------------------------------------------------------------------
def _lstm_scan_ref(x_seq, wih, whh, b, h0, c0):
    H = whh.shape[0]
    hi = jax.lax.Precision.HIGHEST

    def step(carry, x_t):
        h, c = carry
        gates = (jnp.dot(x_t, wih, precision=hi)
                 + jnp.dot(h, whh, precision=hi) + b)
        i = jax.nn.sigmoid(gates[:, 0:H])
        f = jax.nn.sigmoid(gates[:, H:2 * H])
        g = jnp.tanh(gates[:, 2 * H:3 * H])
        o = jax.nn.sigmoid(gates[:, 3 * H:4 * H])
        c = f * c + i * g
        h = o * jnp.tanh(c)
        return (h, c), h

    (h, c), hs = jax.lax.scan(step, (h0, c0), x_seq)
    return hs, h, c


def reference_forward(x, params):
    B, T, _ = x.shape
    H = HIDDEN
    S = B * T
    wih0, whh0, b0 = params["lstm0"]
    wih1, whh1, b1 = params["lstm1"]
    wih2, whh2, b2 = params["lstm2"]
    z1 = jnp.zeros((1, H), jnp.float32)
    zB = jnp.zeros((B, H), jnp.float32)

    x0 = x.reshape(S, 1, 1)                                 # (S, batch=1, 1)
    hs0, _, _ = _lstm_scan_ref(x0, wih0, whh0, b0, z1, z1)  # (S, 1, H)
    x1 = hs0.reshape(B, T, H).transpose(1, 0, 2)            # (T, B, H)
    hs1, _, _ = _lstm_scan_ref(x1, wih1, whh1, b1, zB, zB)
    _, h2, c2 = _lstm_scan_ref(hs1, wih2, whh2, b2, zB, zB)
    y = jnp.dot(h2, params["lin_w"],
                precision=jax.lax.Precision.HIGHEST) + params["lin_b"]
    return y[:, :, None], c2.reshape(1, B, H)


if __name__ == "__main__":
    key = jax.random.PRNGKey(0)
    k_param, k_x = jax.random.split(key)
    params = init_params(k_param)

    B, T = 2, 8
    x = jax.random.normal(k_x, (B, T, INPUT), jnp.float32)

    out, c_a, c_b, c_c = lstm_df_forward(x, params)
    jax.block_until_ready(out)

    assert out.shape == (B, OUTPUT, 1), out.shape
    assert c_a.shape == (1, B, HIDDEN), c_a.shape
    assert bool(jnp.all(jnp.isfinite(out))), "non-finite output"

    ref_out, ref_c = reference_forward(x, params)
    err_y = float(jnp.max(jnp.abs(out - ref_out)))
    err_c = float(jnp.max(jnp.abs(c_a - ref_c)))
    assert err_y < 5e-2 and err_c < 5e-2, (err_y, err_c)

    print("KERNEL_OK")
</pallas_src>

<mosaic_0001>
module attributes {stable_mosaic.version = 11 : i64} {
  func.func @_lstm0_kernel(%arg0: i32, %arg1: memref<2x8x512xf32, #tpu.memory_space<vmem>>, %arg2: memref<128x512xbf16, #tpu.memory_space<vmem>>, %arg3: memref<2x8x128xf32, #tpu.memory_space<vmem>>, %arg4: memref<1x128xf32, #tpu.memory_space<vmem>>, %arg5: memref<1x128xf32, #tpu.memory_space<vmem>>, %arg6: memref<8x128xf32, #tpu.memory_space<vmem>>) attributes {dimension_semantics = [#tpu.dimension_semantics<arbitrary>], iteration_bounds = array<i64: 1>, scalar_prefetch = 0 : i64, scratch_operands = 3 : i64, tpu.core_type = #tpu.core_type<tc>, window_params = [{transform_indices = @transform_0, window_bounds = array<i64: 2, 8, 512>}, {pipeline_mode = #tpu.pipeline_mode<synchronous>, transform_indices = @transform_1, window_bounds = array<i64: 128, 512>}, {transform_indices = @transform_2, window_bounds = array<i64: 2, 8, 128>}]} {
    %c0_i32 = arith.constant 0 : i32
    %0 = arith.cmpi eq, %arg0, %c0_i32 : i32
    %1 = arith.extui %0 : i1 to i32
    %c0_i32_0 = arith.constant 0 : i32
    %2 = arith.cmpi ne, %1, %c0_i32_0 : i32
    scf.if %2 {
      %cst = arith.constant 0.000000e+00 : f32
      %10 = vector.broadcast %cst : f32 to vector<1x128xf32>
      %c0_12 = arith.constant 0 : index
      %c0_13 = arith.constant 0 : index
      %11 = vector.load %arg4[%c0_12, %c0_13] : memref<1x128xf32, #tpu.memory_space<vmem>>, vector<1x128xf32>
      tpu.vector_store %arg4[%c0_12, %c0_13], %10 {strides = array<i32>} : memref<1x128xf32, #tpu.memory_space<vmem>>, vector<1x128xf32>,
      %cst_14 = arith.constant 0.000000e+00 : f32
      %12 = vector.broadcast %cst_14 : f32 to vector<1x128xf32>
      %c0_15 = arith.constant 0 : index
      %c0_16 = arith.constant 0 : index
      %13 = vector.load %arg5[%c0_15, %c0_16] : memref<1x128xf32, #tpu.memory_space<vmem>>, vector<1x128xf32>
      tpu.vector_store %arg5[%c0_15, %c0_16], %12 {strides = array<i32>} : memref<1x128xf32, #tpu.memory_space<vmem>>, vector<1x128xf32>,
    } else {
    }
    %c0 = arith.constant 0 : index
    %c0_1 = arith.constant 0 : index
    %3 = vector.load %arg2[%c0, %c0_1] : memref<128x512xbf16, #tpu.memory_space<vmem>>, vector<128x512xbf16>
    %c0_2 = arith.constant 0 : index
    %c0_3 = arith.constant 0 : index
    %4 = vector.load %arg4[%c0_2, %c0_3] : memref<1x128xf32, #tpu.memory_space<vmem>>, vector<1x128xf32>
    %c0_4 = arith.constant 0 : index
    %c0_5 = arith.constant 0 : index
    %5 = vector.load %arg5[%c0_4, %c0_5] : memref<1x128xf32, #tpu.memory_space<vmem>>, vector<1x128xf32>
    %c0_i32_6 = arith.constant 0 : i32
    %c2_i32 = arith.constant 2 : i32
    %6 = arith.addi %c0_i32_6, %c2_i32 : i32
    %c1_i32 = arith.constant 1 : i32
    %7:2 = scf.for %arg7 = %c0_i32_6 to %6 step %c1_i32 iter_args(%arg8 = %4, %arg9 = %5) -> (vector<1x128xf32>, vector<1x128xf32>)  : i32 {
      %10 = arith.index_cast %arg7 : i32 to index
      %c0_12 = arith.constant 0 : index
      %c0_13 = arith.constant 0 : index
      %11 = vector.load %arg1[%10, %c0_12, %c0_13] : memref<2x8x512xf32, #tpu.memory_space<vmem>>, vector<1x8x512xf32>
      %12 = vector.shape_cast %11 : vector<1x8x512xf32> to vector<8x512xf32>
      %13 = vector.extract_strided_slice %12 {offsets = [0, 0], sizes = [1, 512], strides = [1, 1]} : vector<8x512xf32> to vector<1x512xf32>
      %14 = arith.truncf %arg8 : vector<1x128xf32> to vector<1x128xbf16>
      %cst = arith.constant dense<0.000000e+00> : vector<1x512xf32>
      %15 = tpu.matmul %14, %3, %cst {dimension_numbers = #tpu.dot_dimension_numbers<[1], [0], [0], [1], [0, 0, 1, 1], [], []>} : vector<1x128xbf16>, vector<128x512xbf16>, vector<1x512xf32> -> vector<1x512xf32>
      %16 = arith.addf %13, %15 : vector<1x512xf32>
      %17 = math.tanh %16 : vector<1x512xf32>
      %18 = vector.extract_strided_slice %17 {offsets = [0, 0], sizes = [1, 128], strides = [1, 1]} : vector<1x512xf32> to vector<1x128xf32>
      %cst_14 = arith.constant 5.000000e-01 : f32
      %19 = vector.broadcast %cst_14 : f32 to vector<1x128xf32>
      %20 = arith.mulf %19, %18 : vector<1x128xf32>
      %cst_15 = arith.constant 5.000000e-01 : f32
      %21 = vector.broadcast %cst_15 : f32 to vector<1x128xf32>
      %22 = arith.addf %20, %21 : vector<1x128xf32>
      %23 = vector.extract_strided_slice %17 {offsets = [0, 128], sizes = [1, 128], strides = [1, 1]} : vector<1x512xf32> to vector<1x128xf32>
      %cst_16 = arith.constant 5.000000e-01 : f32
      %24 = vector.broadcast %cst_16 : f32 to vector<1x128xf32>
      %25 = arith.mulf %24, %23 : vector<1x128xf32>
      %cst_17 = arith.constant 5.000000e-01 : f32
      %26 = vector.broadcast %cst_17 : f32 to vector<1x128xf32>
      %27 = arith.addf %25, %26 : vector<1x128xf32>
      %28 = vector.extract_strided_slice %17 {offsets = [0, 256], sizes = [1, 128], strides = [1, 1]} : vector<1x512xf32> to vector<1x128xf32>
      %29 = vector.extract_strided_slice %17 {offsets = [0, 384], sizes = [1, 128], strides = [1, 1]} : vector<1x512xf32> to vector<1x128xf32>
      %cst_18 = arith.constant 5.000000e-01 : f32
      %30 = vector.broadcast %cst_18 : f32 to vector<1x128xf32>
      %31 = arith.mulf %30, %29 : vector<1x128xf32>
      %cst_19 = arith.constant 5.000000e-01 : f32
      %32 = vector.broadcast %cst_19 : f32 to vector<1x128xf32>
      %33 = arith.addf %31, %32 : vector<1x128xf32>
      %34 = arith.mulf %27, %arg9 : vector<1x128xf32>
      %35 = arith.mulf %22, %28 : vector<1x128xf32>
      %36 = arith.addf %34, %35 : vector<1x128xf32>
      %37 = math.tanh %36 : vector<1x128xf32>
      %38 = arith.mulf %33, %37 : vector<1x128xf32>
      %c0_20 = arith.constant 0 : index
      %c0_21 = arith.constant 0 : index
      %39 = vector.load %arg6[%c0_20, %c0_21] : memref<8x128xf32, #tpu.memory_space<vmem>>, vector<1x128xf32>
      tpu.vector_store %arg6[%c0_20, %c0_21], %38 {strides = array<i32>} : memref<8x128xf32, #tpu.memory_space<vmem>>, vector<1x128xf32>,
      %40 = vector.extract_strided_slice %12 {offsets = [1, 0], sizes = [1, 512], strides = [1, 1]} : vector<8x512xf32> to vector<1x512xf32>
      %41 = arith.truncf %38 : vector<1x128xf32> to vector<1x128xbf16>
      %cst_22 = arith.constant dense<0.000000e+00> : vector<1x512xf32>
      %42 = tpu.matmul %41, %3, %cst_22 {dimension_numbers = #tpu.dot_dimension_numbers<[1], [0], [0], [1], [0, 0, 1, 1], [], []>} : vector<1x128xbf16>, vector<128x512xbf16>, vector<1x512xf32> -> vector<1x512xf32>
      %43 = arith.addf %40, %42 : vector<1x512xf32>
      %44 = math.tanh %43 : vector<1x512xf32>
      %45 = vector.extract_strided_slice %44 {offsets = [0, 0], sizes = [1, 128], strides = [1, 1]} : vector<1x512xf32> to vector<1x128xf32>
      %cst_23 = arith.constant 5.000000e-01 : f32
      %46 = vector.broadcast %cst_23 : f32 to vector<1x128xf32>
      %47 = arith.mulf %46, %45 : vector<1x128xf32>
      %cst_24 = arith.constant 5.000000e-01 : f32
      %48 = vector.broadcast %cst_24 : f32 to vector<1x128xf32>
      %49 = arith.addf %47, %48 : vector<1x128xf32>
      %50 = vector.extract_strided_slice %44 {offsets = [0, 128], sizes = [1, 128], strides = [1, 1]} : vector<1x512xf32> to vector<1x128xf32>
      %cst_25 = arith.constant 5.000000e-01 : f32
      %51 = vector.broadcast %cst_25 : f32 to vector<1x128xf32>
      %52 = arith.mulf %51, %50 : vector<1x128xf32>
      %cst_26 = arith.constant 5.000000e-01 : f32
      %53 = vector.broadcast %cst_26 : f32 to vector<1x128xf32>
      %54 = arith.addf %52, %53 : vector<1x128xf32>
      %55 = vector.extract_strided_slice %44 {offsets = [0, 256], sizes = [1, 128], strides = [1, 1]} : vector<1x512xf32> to vector<1x128xf32>
      %56 = vector.extract_strided_slice %44 {offsets = [0, 384], sizes = [1, 128], strides = [1, 1]} : vector<1x512xf32> to vector<1x128xf32>
      %cst_27 = arith.constant 5.000000e-01 : f32
      %57 = vector.broadcast %cst_27 : f32 to vector<1x128xf32>
      %58 = arith.mulf %57, %56 : vector<1x128xf32>
      %cst_28 = arith.constant 5.000000e-01 : f32
      %59 = vector.broadcast %cst_28 : f32 to vector<1x128xf32>
      %60 = arith.addf %58, %59 : vector<1x128xf32>
      %61 = arith.mulf %54, %36 : vector<1x128xf32>
      %62 = arith.mulf %49, %55 : vector<1x128xf32>
      %63 = arith.addf %61, %62 : vector<1x128xf32>
      %64 = math.tanh %63 : vector<1x128xf32>
      %65 = arith.mulf %60, %64 : vector<1x128xf32>
      %c1 = arith.constant 1 : index
      %c0_29 = arith.constant 0 : index
      %66 = vector.load %arg6[%c1, %c0_29] : memref<8x128xf32, #tpu.memory_space<vmem>>, vector<1x128xf32>
      tpu.vector_store %arg6[%c1, %c0_29], %65 {strides = array<i32>} : memref<8x128xf32, #tpu.memory_space<vmem>>, vector<1x128xf32>,
      %67 = vector.extract_strided_slice %12 {offsets = [2, 0], sizes = [1, 512], strides = [1, 1]} : vector<8x512xf32> to vector<1x512xf32>
      %68 = arith.truncf %65 : vector<1x128xf32> to vector<1x128xbf16>
      %cst_30 = arith.constant dense<0.000000e+00> : vector<1x512xf32>
      %69 = tpu.matmul %68, %3, %cst_30 {dimension_numbers = #tpu.dot_dimension_numbers<[1], [0], [0], [1], [0, 0, 1, 1], [], []>} : vector<1x128xbf16>, vector<128x512xbf16>, vector<1x512xf32> -> vector<1x512xf32>
      %70 = arith.addf %67, %69 : vector<1x512xf32>
      %71 = math.tanh %70 : vector<1x512xf32>
      %72 = vector.extract_strided_slice %71 {offsets = [0, 0], sizes = [1, 128], strides = [1, 1]} : vector<1x512xf32> to vector<1x128xf32>
      %cst_31 = arith.constant 5.000000e-01 : f32
      %73 = vector.broadcast %cst_31 : f32 to vector<1x128xf32>
      %74 = arith.mulf %73, %72 : vector<1x128xf32>
      %cst_32 = arith.constant 5.000000e-01 : f32
      %75 = vector.broadcast %cst_32 : f32 to vector<1x128xf32>
      %76 = arith.addf %74, %75 : vector<1x128xf32>
      %77 = vector.extract_strided_slice %71 {offsets = [0, 128], sizes = [1, 128], strides = [1, 1]} : vector<1x512xf32> to vector<1x128xf32>
      %cst_33 = arith.constant 5.000000e-01 : f32
      %78 = vector.broadcast %cst_33 : f32 to vector<1x128xf32>
      %79 = arith.mulf %78, %77 : vector<1x128xf32>
      %cst_34 = arith.constant 5.000000e-01 : f32
      %80 = vector.broadcast %cst_34 : f32 to vector<1x128xf32>
      %81 = arith.addf %79, %80 : vector<1x128xf32>
      %82 = vector.extract_strided_slice %71 {offsets = [0, 256], sizes = [1, 128], strides = [1, 1]} : vector<1x512xf32> to vector<1x128xf32>
      %83 = vector.extract_strided_slice %71 {offsets = [0, 384], sizes = [1, 128], strides = [1, 1]} : vector<1x512xf32> to vector<1x128xf32>
      %cst_35 = arith.constant 5.000000e-01 : f32
      %84 = vector.broadcast %cst_35 : f32 to vector<1x128xf32>
      %85 = arith.mulf %84, %83 : vector<1x128xf32>
      %cst_36 = arith.constant 5.000000e-01 : f32
      %86 = vector.broadcast %cst_36 : f32 to vector<1x128xf32>
      %87 = arith.addf %85, %86 : vector<1x128xf32>
      %88 = arith.mulf %81, %63 : vector<1x128xf32>
      %89 = arith.mulf %76, %82 : vector<1x128xf32>
      %90 = arith.addf %88, %89 : vector<1x128xf32>
      %91 = math.tanh %90 : vector<1x128xf32>
      %92 = arith.mulf %87, %91 : vector<1x128xf32>
      %c2 = arith.constant 2 : index
      %c0_37 = arith.constant 0 : index
      %93 = vector.load %arg6[%c2, %c0_37] : memref<8x128xf32, #tpu.memory_space<vmem>>, vector<1x128xf32>
      tpu.vector_store %arg6[%c2, %c0_37], %92 {strides = array<i32>} : memref<8x128xf32, #tpu.memory_space<vmem>>, vector<1x128xf32>,
      %94 = vector.extract_strided_slice %12 {offsets = [3, 0], sizes = [1, 512], strides = [1, 1]} : vector<8x512xf32> to vector<1x512xf32>
      %95 = arith.truncf %92 : vector<1x128xf32> to vector<1x128xbf16>
      %cst_38 = arith.constant dense<0.000000e+00> : vector<1x512xf32>
      %96 = tpu.matmul %95, %3, %cst_38 {dimension_numbers = #tpu.dot_dimension_numbers<[1], [0], [0], [1], [0, 0, 1, 1], [], []>} : vector<1x128xbf16>, vector<128x512xbf16>, vector<1x512xf32> -> vector<1x512xf32>
      %97 = arith.addf %94, %96 : vector<1x512xf32>
      %98 = math.tanh %97 : vector<1x512xf32>
      %99 = vector.extract_strided_slice %98 {offsets = [0, 0], sizes = [1, 128], strides = [1, 1]} : vector<1x512xf32> to vector<1x128xf32>
      %cst_39 = arith.constant 5.000000e-01 : f32
      %100 = vector.broadcast %cst_39 : f32 to vector<1x128xf32>
      %101 = arith.mulf %100, %99 : vector<1x128xf32>
      %cst_40 = arith.constant 5.000000e-01 : f32
      %102 = vector.broadcast %cst_40 : f32 to vector<1x128xf32>
      %103 = arith.addf %101, %102 : vector<1x128xf32>
      %104 = vector.extract_strided_slice %98 {offsets = [0, 128], sizes = [1, 128], strides = [1, 1]} : vector<1x512xf32> to vector<1x128xf32>
      %cst_41 = arith.constant 5.000000e-01 : f32
      %105 = vector.broadcast %cst_41 : f32 to vector<1x128xf32>
      %106 = arith.mulf %105, %104 : vector<1x128xf32>
      %cst_42 = arith.constant 5.000000e-01 : f32
      %107 = vector.broadcast %cst_42 : f32 to vector<1x128xf32>
      %108 = arith.addf %106, %107 : vector<1x128xf32>
      %109 = vector.extract_strided_slice %98 {offsets = [0, 256], sizes = [1, 128], strides = [1, 1]} : vector<1x512xf32> to vector<1x128xf32>
      %110 = vector.extract_strided_slice %98 {offsets = [0, 384], sizes = [1, 128], strides = [1, 1]} : vector<1x512xf32> to vector<1x128xf32>
      %cst_43 = arith.constant 5.000000e-01 : f32
      %111 = vector.broadcast %cst_43 : f32 to vector<1x128xf32>
      %112 = arith.mulf %111, %110 : vector<1x128xf32>
      %cst_44 = arith.constant 5.000000e-01 : f32
      %113 = vector.broadcast %cst_44 : f32 to vector<1x128xf32>
      %114 = arith.addf %112, %113 : vector<1x128xf32>
      %115 = arith.mulf %108, %90 : vector<1x128xf32>
      %116 = arith.mulf %103, %109 : vector<1x128xf32>
      %117 = arith.addf %115, %116 : vector<1x128xf32>
      %118 = math.tanh %117 : vector<1x128xf32>
      %119 = arith.mulf %114, %118 : vector<1x128xf32>
      %c3 = arith.constant 3 : index
      %c0_45 = arith.constant 0 : index
      %120 = vector.load %arg6[%c3, %c0_45] : memref<8x128xf32, #tpu.memory_space<vmem>>, vector<1x128xf32>
      tpu.vector_store %arg6[%c3, %c0_45], %119 {strides = array<i32>} : memref<8x128xf32, #tpu.memory_space<vmem>>, vector<1x128xf32>,
      %121 = vector.extract_strided_slice %12 {offsets = [4, 0], sizes = [1, 512], strides = [1, 1]} : vector<8x512xf32> to vector<1x512xf32>
      %122 = arith.truncf %119 : vector<1x128xf32> to vector<1x128xbf16>
      %cst_46 = arith.constant dense<0.000000e+00> : vector<1x512xf32>
      %123 = tpu.matmul %122, %3, %cst_46 {dimension_numbers = #tpu.dot_dimension_numbers<[1], [0], [0], [1], [0, 0, 1, 1], [], []>} : vector<1x128xbf16>, vector<128x512xbf16>, vector<1x512xf32> -> vector<1x512xf32>
      %124 = arith.addf %121, %123 : vector<1x512xf32>
      %125 = math.tanh %124 : vector<1x512xf32>
      %126 = vector.extract_strided_slice %125 {offsets = [0, 0], sizes = [1, 128], strides = [1, 1]} : vector<1x512xf32> to vector<1x128xf32>
      %cst_47 = arith.constant 5.000000e-01 : f32
      %127 = vector.broadcast %cst_47 : f32 to vector<1x128xf32>
      %128 = arith.mulf %127, %126 : vector<1x128xf32>
      %cst_48 = arith.constant 5.000000e-01 : f32
      %129 = vector.broadcast %cst_48 : f32 to vector<1x128xf32>
      %130 = arith.addf %128, %129 : vector<1x128xf32>
      %131 = vector.extract_strided_slice %125 {offsets = [0, 128], sizes = [1, 128], strides = [1, 1]} : vector<1x512xf32> to vector<1x128xf32>
      %cst_49 = arith.constant 5.000000e-01 : f32
      %132 = vector.broadcast %cst_49 : f32 to vector<1x128xf32>
      %133 = arith.mulf %132, %131 : vector<1x128xf32>
      %cst_50 = arith.constant 5.000000e-01 : f32
      %134 = vector.broadcast %cst_50 : f32 to vector<1x128xf32>
      %135 = arith.addf %133, %134 : vector<1x128xf32>
      %136 = vector.extract_strided_slice %125 {offsets = [0, 256], sizes = [1, 128], strides = [1, 1]} : vector<1x512xf32> to vector<1x128xf32>
      %137 = vector.extract_strided_slice %125 {offsets = [0, 384], sizes = [1, 128], strides = [1, 1]} : vector<1x512xf32> to vector<1x128xf32>
      %cst_51 = arith.constant 5.000000e-01 : f32
      %138 = vector.broadcast %cst_51 : f32 to vector<1x128xf32>
      %139 = arith.mulf %138, %137 : vector<1x128xf32>
      %cst_52 = arith.constant 5.000000e-01 : f32
      %140 = vector.broadcast %cst_52 : f32 to vector<1x128xf32>
      %141 = arith.addf %139, %140 : vector<1x128xf32>
      %142 = arith.mulf %135, %117 : vector<1x128xf32>
      %143 = arith.mulf %130, %136 : vector<1x128xf32>
      %144 = arith.addf %142, %143 : vector<1x128xf32>
      %145 = math.tanh %144 : vector<1x128xf32>
      %146 = arith.mulf %141, %145 : vector<1x128xf32>
      %c4 = arith.constant 4 : index
      %c0_53 = arith.constant 0 : index
      %147 = vector.load %arg6[%c4, %c0_53] : memref<8x128xf32, #tpu.memory_space<vmem>>, vector<1x128xf32>
      tpu.vector_store %arg6[%c4, %c0_53], %146 {strides = array<i32>} : memref<8x128xf32, #tpu.memory_space<vmem>>, vector<1x128xf32>,
      %148 = vector.extract_strided_slice %12 {offsets = [5, 0], sizes = [1, 512], strides = [1, 1]} : vector<8x512xf32> to vector<1x512xf32>
      %149 = arith.truncf %146 : vector<1x128xf32> to vector<1x128xbf16>
      %cst_54 = arith.constant dense<0.000000e+00> : vector<1x512xf32>
      %150 = tpu.matmul %149, %3, %cst_54 {dimension_numbers = #tpu.dot_dimension_numbers<[1], [0], [0], [1], [0, 0, 1, 1], [], []>} : vector<1x128xbf16>, vector<128x512xbf16>, vector<1x512xf32> -> vector<1x512xf32>
      %151 = arith.addf %148, %150 : vector<1x512xf32>
      %152 = math.tanh %151 : vector<1x512xf32>
      %153 = vector.extract_strided_slice %152 {offsets = [0, 0], sizes = [1, 128], strides = [1, 1]} : vector<1x512xf32> to vector<1x128xf32>
      %cst_55 = arith.constant 5.000000e-01 : f32
      %154 = vector.broadcast %cst_55 : f32 to vector<1x128xf32>
      %155 = arith.mulf %154, %153 : vector<1x128xf32>
      %cst_56 = arith.constant 5.000000e-01 : f32
      %156 = vector.broadcast %cst_56 : f32 to vector<1x128xf32>
      %157 = arith.addf %155, %156 : vector<1x128xf32>
      %158 = vector.extract_strided_slice %152 {offsets = [0, 128], sizes = [1, 128], strides = [1, 1]} : vector<1x512xf32> to vector<1x128xf32>
      %cst_57 = arith.constant 5.000000e-01 : f32
      %159 = vector.broadcast %cst_57 : f32 to vector<1x128xf32>
      %160 = arith.mulf %159, %158 : vector<1x128xf32>
      %cst_58 = arith.constant 5.000000e-01 : f32
      %161 = vector.broadcast %cst_58 : f32 to vector<1x128xf32>
      %162 = arith.addf %160, %161 : vector<1x128xf32>
      %163 = vector.extract_strided_slice %152 {offsets = [0, 256], sizes = [1, 128], strides = [1, 1]} : vector<1x512xf32> to vector<1x128xf32>
      %164 = vector.extract_strided_slice %152 {offsets = [0, 384], sizes = [1, 128], strides = [1, 1]} : vector<1x512xf32> to vector<1x128xf32>
      %cst_59 = arith.constant 5.000000e-01 : f32
      %165 = vector.broadcast %cst_59 : f32 to vector<1x128xf32>
      %166 = arith.mulf %165, %164 : vector<1x128xf32>
      %cst_60 = arith.constant 5.000000e-01 : f32
      %167 = vector.broadcast %cst_60 : f32 to vector<1x128xf32>
      %168 = arith.addf %166, %167 : vector<1x128xf32>
      %169 = arith.mulf %162, %144 : vector<1x128xf32>
      %170 = arith.mulf %157, %163 : vector<1x128xf32>
      %171 = arith.addf %169, %170 : vector<1x128xf32>
      %172 = math.tanh %171 : vector<1x128xf32>
      %173 = arith.mulf %168, %172 : vector<1x128xf32>
      %c5 = arith.constant 5 : index
      %c0_61 = arith.constant 0 : index
      %174 = vector.load %arg6[%c5, %c0_61] : memref<8x128xf32, #tpu.memory_space<vmem>>, vector<1x128xf32>
      tpu.vector_store %arg6[%c5, %c0_61], %173 {strides = array<i32>} : memref<8x128xf32, #tpu.memory_space<vmem>>, vector<1x128xf32>,
      %175 = vector.extract_strided_slice %12 {offsets = [6, 0], sizes = [1, 512], strides = [1, 1]} : vector<8x512xf32> to vector<1x512xf32>
      %176 = arith.truncf %173 : vector<1x128xf32> to vector<1x128xbf16>
      %cst_62 = arith.constant dense<0.000000e+00> : vector<1x512xf32>
      %177 = tpu.matmul %176, %3, %cst_62 {dimension_numbers = #tpu.dot_dimension_numbers<[1], [0], [0], [1], [0, 0, 1, 1], [], []>} : vector<1x128xbf16>, vector<128x512xbf16>, vector<1x512xf32> -> vector<1x512xf32>
      %178 = arith.addf %175, %177 : vector<1x512xf32>
      %179 = math.tanh %178 : vector<1x512xf32>
      %180 = vector.extract_strided_slice %179 {offsets = [0, 0], sizes = [1, 128], strides = [1, 1]} : vector<1x512xf32> to vector<1x128xf32>
      %cst_63 = arith.constant 5.000000e-01 : f32
      %181 = vector.broadcast %cst_63 : f32 to vector<1x128xf32>
      %182 = arith.mulf %181, %180 : vector<1x128xf32>
      %cst_64 = arith.constant 5.000000e-01 : f32
      %183 = vector.broadcast %cst_64 : f32 to vector<1x128xf32>
      %184 = arith.addf %182, %183 : vector<1x128xf32>
      %185 = vector.extract_strided_slice %179 {offsets = [0, 128], sizes = [1, 128], strides = [1, 1]} : vector<1x512xf32> to vector<1x128xf32>
      %cst_65 = arith.constant 5.000000e-01 : f32
      %186 = vector.broadcast %cst_65 : f32 to vector<1x128xf32>
      %187 = arith.mulf %186, %185 : vector<1x128xf32>
      %cst_66 = arith.constant 5.000000e-01 : f32
      %188 = vector.broadcast %cst_66 : f32 to vector<1x128xf32>
      %189 = arith.addf %187, %188 : vector<1x128xf32>
      %190 = vector.extract_strided_slice %179 {offsets = [0, 256], sizes = [1, 128], strides = [1, 1]} : vector<1x512xf32> to vector<1x128xf32>
      %191 = vector.extract_strided_slice %179 {offsets = [0, 384], sizes = [1, 128], strides = [1, 1]} : vector<1x512xf32> to vector<1x128xf32>
      %cst_67 = arith.constant 5.000000e-01 : f32
      %192 = vector.broadcast %cst_67 : f32 to vector<1x128xf32>
      %193 = arith.mulf %192, %191 : vector<1x128xf32>
      %cst_68 = arith.constant 5.000000e-01 : f32
      %194 = vector.broadcast %cst_68 : f32 to vector<1x128xf32>
      %195 = arith.addf %193, %194 : vector<1x128xf32>
      %196 = arith.mulf %189, %171 : vector<1x128xf32>
      %197 = arith.mulf %184, %190 : vector<1x128xf32>
      %198 = arith.addf %196, %197 : vector<1x128xf32>
      %199 = math.tanh %198 : vector<1x128xf32>
      %200 = arith.mulf %195, %199 : vector<1x128xf32>
      %c6 = arith.constant 6 : index
      %c0_69 = arith.constant 0 : index
      %201 = vector.load %arg6[%c6, %c0_69] : memref<8x128xf32, #tpu.memory_space<vmem>>, vector<1x128xf32>
      tpu.vector_store %arg6[%c6, %c0_69], %200 {strides = array<i32>} : memref<8x128xf32, #tpu.memory_space<vmem>>, vector<1x128xf32>,
      %202 = vector.extract_strided_slice %12 {offsets = [7, 0], sizes = [1, 512], strides = [1, 1]} : vector<8x512xf32> to vector<1x512xf32>
      %203 = arith.truncf %200 : vector<1x128xf32> to vector<1x128xbf16>
      %cst_70 = arith.constant dense<0.000000e+00> : vector<1x512xf32>
      %204 = tpu.matmul %203, %3, %cst_70 {dimension_numbers = #tpu.dot_dimension_numbers<[1], [0], [0], [1], [0, 0, 1, 1], [], []>} : vector<1x128xbf16>, vector<128x512xbf16>, vector<1x512xf32> -> vector<1x512xf32>
      %205 = arith.addf %202, %204 : vector<1x512xf32>
      %206 = math.tanh %205 : vector<1x512xf32>
      %207 = vector.extract_strided_slice %206 {offsets = [0, 0], sizes = [1, 128], strides = [1, 1]} : vector<1x512xf32> to vector<1x128xf32>
      %cst_71 = arith.constant 5.000000e-01 : f32
      %208 = vector.broadcast %cst_71 : f32 to vector<1x128xf32>
      %209 = arith.mulf %208, %207 : vector<1x128xf32>
      %cst_72 = arith.constant 5.000000e-01 : f32
      %210 = vector.broadcast %cst_72 : f32 to vector<1x128xf32>
      %211 = arith.addf %209, %210 : vector<1x128xf32>
      %212 = vector.extract_strided_slice %206 {offsets = [0, 128], sizes = [1, 128], strides = [1, 1]} : vector<1x512xf32> to vector<1x128xf32>
      %cst_73 = arith.constant 5.000000e-01 : f32
      %213 = vector.broadcast %cst_73 : f32 to vector<1x128xf32>
      %214 = arith.mulf %213, %212 : vector<1x128xf32>
      %cst_74 = arith.constant 5.000000e-01 : f32
      %215 = vector.broadcast %cst_74 : f32 to vector<1x128xf32>
      %216 = arith.addf %214, %215 : vector<1x128xf32>
      %217 = vector.extract_strided_slice %206 {offsets = [0, 256], sizes = [1, 128], strides = [1, 1]} : vector<1x512xf32> to vector<1x128xf32>
      %218 = vector.extract_strided_slice %206 {offsets = [0, 384], sizes = [1, 128], strides = [1, 1]} : vector<1x512xf32> to vector<1x128xf32>
      %cst_75 = arith.constant 5.000000e-01 : f32
      %219 = vector.broadcast %cst_75 : f32 to vector<1x128xf32>
      %220 = arith.mulf %219, %218 : vector<1x128xf32>
      %cst_76 = arith.constant 5.000000e-01 : f32
      %221 = vector.broadcast %cst_76 : f32 to vector<1x128xf32>
      %222 = arith.addf %220, %221 : vector<1x128xf32>
      %223 = arith.mulf %216, %198 : vector<1x128xf32>
      %224 = arith.mulf %211, %217 : vector<1x128xf32>
      %225 = arith.addf %223, %224 : vector<1x128xf32>
      %226 = math.tanh %225 : vector<1x128xf32>
      %227 = arith.mulf %222, %226 : vector<1x128xf32>
      %c7 = arith.constant 7 : index
      %c0_77 = arith.constant 0 : index
      %228 = vector.load %arg6[%c7, %c0_77] : memref<8x128xf32, #tpu.memory_space<vmem>>, vector<1x128xf32>
      tpu.vector_store %arg6[%c7, %c0_77], %227 {strides = array<i32>} : memref<8x128xf32, #tpu.memory_space<vmem>>, vector<1x128xf32>,
      %c0_78 = arith.constant 0 : index
      %c0_79 = arith.constant 0 : index
      %229 = vector.load %arg6[%c0_78, %c0_79] : memref<8x128xf32, #tpu.memory_space<vmem>>, vector<8x128xf32>
      %230 = arith.index_cast %arg7 : i32 to index
      %c0_80 = arith.constant 0 : index
      %c0_81 = arith.constant 0 : index
      %231 = vector.load %arg3[%230, %c0_80, %c0_81] : memref<2x8x128xf32, #tpu.memory_space<vmem>>, vector<1x8x128xf32>
      %232 = vector.shape_cast %231 : vector<1x8x128xf32> to vector<8x128xf32>
      %233 = vector.shape_cast %229 : vector<8x128xf32> to vector<1x8x128xf32>
      tpu.vector_store %arg3[%230, %c0_80, %c0_81], %233 {strides = array<i32>} : memref<2x8x128xf32, #tpu.memory_space<vmem>>, vector<1x8x128xf32>,
      scf.yield %227, %225 : vector<1x128xf32>, vector<1x128xf32>
    }
    %c2_i32_7 = arith.constant 2 : i32
    %c0_8 = arith.constant 0 : index
    %c0_9 = arith.constant 0 : index
    %8 = vector.load %arg4[%c0_8, %c0_9] : memref<1x128xf32, #tpu.memory_space<vmem>>, vector<1x128xf32>
    tpu.vector_store %arg4[%c0_8, %c0_9], %7#0 {strides = array<i32>} : memref<1x128xf32, #tpu.memory_space<vmem>>, vector<1x128xf32>,
    %c0_10 = arith.constant 0 : index
    %c0_11 = arith.constant 0 : index
    %9 = vector.load %arg5[%c0_10, %c0_11] : memref<1x128xf32, #tpu.memory_space<vmem>>, vector<1x128xf32>
    tpu.vector_store %arg5[%c0_10, %c0_11], %7#1 {strides = array<i32>} : memref<1x128xf32, #tpu.memory_space<vmem>>, vector<1x128xf32>,
    return
  }
  func.func @transform_0(%arg0: i32) -> (i32, i32, i32) {
    %c0_i32 = arith.constant 0 : i32
    %c0_i32_0 = arith.constant 0 : i32
    %c0_i32_1 = arith.constant 0 : i32
    return %arg0, %c0_i32, %c0_i32_0 : i32, i32, i32
  }
  func.func @transform_1(%arg0: i32) -> (i32, i32) {
    %c0_i32 = arith.constant 0 : i32
    %c0_i32_0 = arith.constant 0 : i32
    %c0_i32_1 = arith.constant 0 : i32
    return %c0_i32, %c0_i32_0 : i32, i32
  }
  func.func @transform_2(%arg0: i32) -> (i32, i32, i32) {
    %c0_i32 = arith.constant 0 : i32
    %c0_i32_0 = arith.constant 0 : i32
    %c0_i32_1 = arith.constant 0 : i32
    return %arg0, %c0_i32, %c0_i32_0 : i32, i32, i32
  }
}

module attributes {stable_mosaic.version = 11 : i64} {
  func.func @_lstm12_kernel(%arg0: i32, %arg1: memref<2x1x8x128xf32, #tpu.memory_space<vmem>>, %arg2: memref<256x512xbf16, #tpu.memory_space<vmem>>, %arg3: memref<256x512xbf16, #tpu.memory_space<vmem>>, %arg4: memref<1x512xf32, #tpu.memory_space<vmem>>, %arg5: memref<1x512xf32, #tpu.memory_space<vmem>>, %arg6: memref<128x128xf32, #tpu.memory_space<vmem>>, %arg7: memref<1x128xf32, #tpu.memory_space<vmem>>, %arg8: memref<2x128xf32, #tpu.memory_space<vmem>>, %arg9: memref<2x128xf32, #tpu.memory_space<vmem>>, %arg10: memref<2x128xf32, #tpu.memory_space<vmem>>, %arg11: memref<2x128xf32, #tpu.memory_space<vmem>>, %arg12: memref<2x128xf32, #tpu.memory_space<vmem>>, %arg13: memref<2x128xf32, #tpu.memory_space<vmem>>, %arg14: memref<2x128xf32, #tpu.memory_space<vmem>>, %arg15: memref<2x128xf32, #tpu.memory_space<vmem>>) attributes {dimension_semantics = [#tpu.dimension_semantics<arbitrary>], iteration_bounds = array<i64: 1>, scalar_prefetch = 0 : i64, scratch_operands = 6 : i64, tpu.core_type = #tpu.core_type<tc>, window_params = [{transform_indices = @transform_0, window_bounds = array<i64: 2, 1, 8, 128>}, {pipeline_mode = #tpu.pipeline_mode<synchronous>, transform_indices = @transform_1, window_bounds = array<i64: 256, 512>}, {pipeline_mode = #tpu.pipeline_mode<synchronous>, transform_indices = @transform_2, window_bounds = array<i64: 256, 512>}, {pipeline_mode = #tpu.pipeline_mode<synchronous>, transform_indices = @transform_3, window_bounds = array<i64: 1, 512>}, {pipeline_mode = #tpu.pipeline_mode<synchronous>, transform_indices = @transform_4, window_bounds = array<i64: 1, 512>}, {pipeline_mode = #tpu.pipeline_mode<synchronous>, transform_indices = @transform_5, window_bounds = array<i64: 128, 128>}, {pipeline_mode = #tpu.pipeline_mode<synchronous>, transform_indices = @transform_6, window_bounds = array<i64: 1, 128>}, {pipeline_mode = #tpu.pipeline_mode<synchronous>, transform_indices = @transform_7, window_bounds = array<i64: 2, 128>}, {pipeline_mode = #tpu.pipeline_mode<synchronous>, transform_indices = @transform_8, window_bounds = array<i64: 2, 128>}]} {
    %c0_i32 = arith.constant 0 : i32
    %0 = arith.cmpi eq, %arg0, %c0_i32 : i32
    %1 = arith.extui %0 : i1 to i32
    %c0_i32_0 = arith.constant 0 : i32
    %2 = arith.cmpi ne, %1, %c0_i32_0 : i32
    scf.if %2 {
      %cst_168 = arith.constant 0.000000e+00 : f32
      %507 = vector.broadcast %cst_168 : f32 to vector<2x128xf32>
      %c0_169 = arith.constant 0 : index
      %c0_170 = arith.constant 0 : index
      %508 = vector.load %arg10[%c0_169, %c0_170] : memref<2x128xf32, #tpu.memory_space<vmem>>, vector<2x128xf32>
      tpu.vector_store %arg10[%c0_169, %c0_170], %507 {strides = array<i32>} : memref<2x128xf32, #tpu.memory_space<vmem>>, vector<2x128xf32>,
      %cst_171 = arith.constant 0.000000e+00 : f32
      %509 = vector.broadcast %cst_171 : f32 to vector<2x128xf32>
      %c0_172 = arith.constant 0 : index
      %c0_173 = arith.constant 0 : index
      %510 = vector.load %arg11[%c0_172, %c0_173] : memref<2x128xf32, #tpu.memory_space<vmem>>, vector<2x128xf32>
      tpu.vector_store %arg11[%c0_172, %c0_173], %509 {strides = array<i32>} : memref<2x128xf32, #tpu.memory_space<vmem>>, vector<2x128xf32>,
      %cst_174 = arith.constant 0.000000e+00 : f32
      %511 = vector.broadcast %cst_174 : f32 to vector<2x128xf32>
      %c0_175 = arith.constant 0 : index
      %c0_176 = arith.constant 0 : index
      %512 = vector.load %arg12[%c0_175, %c0_176] : memref<2x128xf32, #tpu.memory_space<vmem>>, vector<2x128xf32>
      tpu.vector_store %arg12[%c0_175, %c0_176], %511 {strides = array<i32>} : memref<2x128xf32, #tpu.memory_space<vmem>>, vector<2x128xf32>,
      %cst_177 = arith.constant 0.000000e+00 : f32
      %513 = vector.broadcast %cst_177 : f32 to vector<2x128xf32>
      %c0_178 = arith.constant 0 : index
      %c0_179 = arith.constant 0 : index
      %514 = vector.load %arg13[%c0_178, %c0_179] : memref<2x128xf32, #tpu.memory_space<vmem>>, vector<2x128xf32>
      tpu.vector_store %arg13[%c0_178, %c0_179], %513 {strides = array<i32>} : memref<2x128xf32, #tpu.memory_space<vmem>>, vector<2x128xf32>,
    } else {
    }
    %c0 = arith.constant 0 : index
    %c0_1 = arith.constant 0 : index
    %3 = vector.load %arg2[%c0, %c0_1] : memref<256x512xbf16, #tpu.memory_space<vmem>>, vector<256x512xbf16>
    %c0_2 = arith.constant 0 : index
    %c0_3 = arith.constant 0 : index
    %4 = vector.load %arg3[%c0_2, %c0_3] : memref<256x512xbf16, #tpu.memory_space<vmem>>, vector<256x512xbf16>
    %c0_4 = arith.constant 0 : index
    %c0_5 = arith.constant 0 : index
    %5 = vector.load %arg4[%c0_4, %c0_5] : memref<1x512xf32, #tpu.memory_space<vmem>>, vector<1x512xf32>
    %6 = vector.shape_cast %5 : vector<1x512xf32> to vector<1x512xf32>
    %7 = vector.broadcast %6 : vector<1x512xf32> to vector<2x512xf32>
    %c0_6 = arith.constant 0 : index
    %c0_7 = arith.constant 0 : index
    %8 = vector.load %arg5[%c0_6, %c0_7] : memref<1x512xf32, #tpu.memory_space<vmem>>, vector<1x512xf32>
    %9 = vector.shape_cast %8 : vector<1x512xf32> to vector<1x512xf32>
    %10 = vector.broadcast %9 : vector<1x512xf32> to vector<2x512xf32>
    %c1_i32 = arith.constant 1 : i32
    %11 = arith.muli %arg0, %c1_i32 : i32
    %c8_i32 = arith.constant 8 : i32
    %12 = arith.muli %11, %c8_i32 : i32
    %c0_8 = arith.constant 0 : index
    %c0_9 = arith.constant 0 : index
    %13 = vector.load %arg10[%c0_8, %c0_9] : memref<2x128xf32, #tpu.memory_space<vmem>>, vector<2x128xf32>
    %c0_10 = arith.constant 0 : index
    %c0_11 = arith.constant 0 : index
    %14 = vector.load %arg11[%c0_10, %c0_11] : memref<2x128xf32, #tpu.memory_space<vmem>>, vector<2x128xf32>
    %c0_12 = arith.constant 0 : index
    %c0_13 = arith.constant 0 : index
    %15 = vector.load %arg12[%c0_12, %c0_13] : memref<2x128xf32, #tpu.memory_space<vmem>>, vector<2x128xf32>
    %c0_14 = arith.constant 0 : index
    %c0_15 = arith.constant 0 : index
    %16 = vector.load %arg13[%c0_14, %c0_15] : memref<2x128xf32, #tpu.memory_space<vmem>>, vector<2x128xf32>
    %c0_i32_16 = arith.constant 0 : i32
    %c0_17 = arith.constant 0 : index
    %17 = arith.index_cast %c0_i32_16 : i32 to index
    %c0_18 = arith.constant 0 : index
    %c0_19 = arith.constant 0 : index
    %18 = vector.load %arg1[%c0_17, %17, %c0_18, %c0_19] : memref<2x1x8x128xf32, #tpu.memory_space<vmem>>, vector<2x1x8x128xf32>
    %19 = vector.shape_cast %18 : vector<2x1x8x128xf32> to vector<2x8x128xf32>
    %20 = vector.extract_strided_slice %19 {offsets = [0, 0, 0], sizes = [2, 1, 128], strides = [1, 1, 1]} : vector<2x8x128xf32> to vector<2x1x128xf32>
    %21 = vector.shape_cast %20 : vector<2x1x128xf32> to vector<2x128xf32>
    %22 = tpu.concatenate %21, %13 in 1 : vector<2x128xf32>, vector<2x128xf32> -> vector<2x256xf32>
    %23 = arith.truncf %22 : vector<2x256xf32> to vector<2x256xbf16>
    %cst = arith.constant dense<0.000000e+00> : vector<2x512xf32>
    %24 = tpu.matmul %23, %3, %cst {dimension_numbers = #tpu.dot_dimension_numbers<[1], [0], [0], [1], [0, 0, 1, 1], [], []>} : vector<2x256xbf16>, vector<256x512xbf16>, vector<2x512xf32> -> vector<2x512xf32>
    %25 = arith.addf %24, %7 : vector<2x512xf32>
    %26 = math.tanh %25 : vector<2x512xf32>
    %27 = vector.extract_strided_slice %26 {offsets = [0, 0], sizes = [2, 128], strides = [1, 1]} : vector<2x512xf32> to vector<2x128xf32>
    %cst_20 = arith.constant 5.000000e-01 : f32
    %28 = vector.broadcast %cst_20 : f32 to vector<2x128xf32>
    %29 = arith.mulf %28, %27 : vector<2x128xf32>
    %cst_21 = arith.constant 5.000000e-01 : f32
    %30 = vector.broadcast %cst_21 : f32 to vector<2x128xf32>
    %31 = arith.addf %29, %30 : vector<2x128xf32>
    %32 = vector.extract_strided_slice %26 {offsets = [0, 128], sizes = [2, 128], strides = [1, 1]} : vector<2x512xf32> to vector<2x128xf32>
    %cst_22 = arith.constant 5.000000e-01 : f32
    %33 = vector.broadcast %cst_22 : f32 to vector<2x128xf32>
    %34 = arith.mulf %33, %32 : vector<2x128xf32>
    %cst_23 = arith.constant 5.000000e-01 : f32
    %35 = vector.broadcast %cst_23 : f32 to vector<2x128xf32>
    %36 = arith.addf %34, %35 : vector<2x128xf32>
    %37 = vector.extract_strided_slice %26 {offsets = [0, 256], sizes = [2, 128], strides = [1, 1]} : vector<2x512xf32> to vector<2x128xf32>
    %38 = vector.extract_strided_slice %26 {offsets = [0, 384], sizes = [2, 128], strides = [1, 1]} : vector<2x512xf32> to vector<2x128xf32>
    %cst_24 = arith.constant 5.000000e-01 : f32
    %39 = vector.broadcast %cst_24 : f32 to vector<2x128xf32>
    %40 = arith.mulf %39, %38 : vector<2x128xf32>
    %cst_25 = arith.constant 5.000000e-01 : f32
    %41 = vector.broadcast %cst_25 : f32 to vector<2x128xf32>
    %42 = arith.addf %40, %41 : vector<2x128xf32>
    %43 = arith.mulf %36, %14 : vector<2x128xf32>
    %44 = arith.mulf %31, %37 : vector<2x128xf32>
    %45 = arith.addf %43, %44 : vector<2x128xf32>
    %46 = math.tanh %45 : vector<2x128xf32>
    %47 = arith.mulf %42, %46 : vector<2x128xf32>
    %48 = tpu.concatenate %47, %15 in 1 : vector<2x128xf32>, vector<2x128xf32> -> vector<2x256xf32>
    %49 = arith.truncf %48 : vector<2x256xf32> to vector<2x256xbf16>
    %cst_26 = arith.constant dense<0.000000e+00> : vector<2x512xf32>
    %50 = tpu.matmul %49, %4, %cst_26 {dimension_numbers = #tpu.dot_dimension_numbers<[1], [0], [0], [1], [0, 0, 1, 1], [], []>} : vector<2x256xbf16>, vector<256x512xbf16>, vector<2x512xf32> -> vector<2x512xf32>
    %51 = arith.addf %50, %10 : vector<2x512xf32>
    %52 = math.tanh %51 : vector<2x512xf32>
    %53 = vector.extract_strided_slice %52 {offsets = [0, 0], sizes = [2, 128], strides = [1, 1]} : vector<2x512xf32> to vector<2x128xf32>
    %cst_27 = arith.constant 5.000000e-01 : f32
    %54 = vector.broadcast %cst_27 : f32 to vector<2x128xf32>
    %55 = arith.mulf %54, %53 : vector<2x128xf32>
    %cst_28 = arith.constant 5.000000e-01 : f32
    %56 = vector.broadcast %cst_28 : f32 to vector<2x128xf32>
    %57 = arith.addf %55, %56 : vector<2x128xf32>
    %58 = vector.extract_strided_slice %52 {offsets = [0, 128], sizes = [2, 128], strides = [1, 1]} : vector<2x512xf32> to vector<2x128xf32>
    %cst_29 = arith.constant 5.000000e-01 : f32
    %59 = vector.broadcast %cst_29 : f32 to vector<2x128xf32>
    %60 = arith.mulf %59, %58 : vector<2x128xf32>
    %cst_30 = arith.constant 5.000000e-01 : f32
    %61 = vector.broadcast %cst_30 : f32 to vector<2x128xf32>
    %62 = arith.addf %60, %61 : vector<2x128xf32>
    %63 = vector.extract_strided_slice %52 {offsets = [0, 256], sizes = [2, 128], strides = [1, 1]} : vector<2x512xf32> to vector<2x128xf32>
    %64 = vector.extract_strided_slice %52 {offsets = [0, 384], sizes = [2, 128], strides = [1, 1]} : vector<2x512xf32> to vector<2x128xf32>
    %cst_31 = arith.constant 5.000000e-01 : f32
    %65 = vector.broadcast %cst_31 : f32 to vector<2x128xf32>
    %66 = arith.mulf %65, %64 : vector<2x128xf32>
    %cst_32 = arith.constant 5.000000e-01 : f32
    %67 = vector.broadcast %cst_32 : f32 to vector<2x128xf32>
    %68 = arith.addf %66, %67 : vector<2x128xf32>
    %69 = arith.mulf %62, %16 : vector<2x128xf32>
    %70 = arith.mulf %57, %63 : vector<2x128xf32>
    %71 = arith.addf %69, %70 : vector<2x128xf32>
    %72 = math.tanh %71 : vector<2x128xf32>
    %73 = arith.mulf %68, %72 : vector<2x128xf32>
    %c8_i32_33 = arith.constant 8 : i32
    %74 = arith.muli %c0_i32_16, %c8_i32_33 : i32
    %75 = arith.addi %12, %74 : i32
    %c0_i32_34 = arith.constant 0 : i32
    %76 = arith.addi %75, %c0_i32_34 : i32
    %c7_i32 = arith.constant 7 : i32
    %77 = arith.cmpi eq, %76, %c7_i32 : i32
    %78 = arith.extui %77 : i1 to i32
    %c0_i32_35 = arith.constant 0 : i32
    %79 = arith.cmpi ne, %78, %c0_i32_35 : i32
    scf.if %79 {
      %c0_168 = arith.constant 0 : index
      %c0_169 = arith.constant 0 : index
      %507 = vector.load %arg14[%c0_168, %c0_169] : memref<2x128xf32, #tpu.memory_space<vmem>>, vector<2x128xf32>
      tpu.vector_store %arg14[%c0_168, %c0_169], %73 {strides = array<i32>} : memref<2x128xf32, #tpu.memory_space<vmem>>, vector<2x128xf32>,
      %c0_170 = arith.constant 0 : index
      %c0_171 = arith.constant 0 : index
      %508 = vector.load %arg15[%c0_170, %c0_171] : memref<2x128xf32, #tpu.memory_space<vmem>>, vector<2x128xf32>
      tpu.vector_store %arg15[%c0_170, %c0_171], %71 {strides = array<i32>} : memref<2x128xf32, #tpu.memory_space<vmem>>, vector<2x128xf32>,
    } else {
    }
    %80 = vector.extract_strided_slice %19 {offsets = [0, 1, 0], sizes = [2, 1, 128], strides = [1, 1, 1]} : vector<2x8x128xf32> to vector<2x1x128xf32>
    %81 = vector.shape_cast %80 : vector<2x1x128xf32> to vector<2x128xf32>
    %82 = tpu.concatenate %81, %47 in 1 : vector<2x128xf32>, vector<2x128xf32> -> vector<2x256xf32>
    %83 = arith.truncf %82 : vector<2x256xf32> to vector<2x256xbf16>
    %cst_36 = arith.constant dense<0.000000e+00> : vector<2x512xf32>
    %84 = tpu.matmul %83, %3, %cst_36 {dimension_numbers = #tpu.dot_dimension_numbers<[1], [0], [0], [1], [0, 0, 1, 1], [], []>} : vector<2x256xbf16>, vector<256x512xbf16>, vector<2x512xf32> -> vector<2x512xf32>
    %85 = arith.addf %84, %7 : vector<2x512xf32>
    %86 = math.tanh %85 : vector<2x512xf32>
    %87 = vector.extract_strided_slice %86 {offsets = [0, 0], sizes = [2, 128], strides = [1, 1]} : vector<2x512xf32> to vector<2x128xf32>
    %cst_37 = arith.constant 5.000000e-01 : f32
    %88 = vector.broadcast %cst_37 : f32 to vector<2x128xf32>
    %89 = arith.mulf %88, %87 : vector<2x128xf32>
    %cst_38 = arith.constant 5.000000e-01 : f32
    %90 = vector.broadcast %cst_38 : f32 to vector<2x128xf32>
    %91 = arith.addf %89, %90 : vector<2x128xf32>
    %92 = vector.extract_strided_slice %86 {offsets = [0, 128], sizes = [2, 128], strides = [1, 1]} : vector<2x512xf32> to vector<2x128xf32>
    %cst_39 = arith.constant 5.000000e-01 : f32
    %93 = vector.broadcast %cst_39 : f32 to vector<2x128xf32>
    %94 = arith.mulf %93, %92 : vector<2x128xf32>
    %cst_40 = arith.constant 5.000000e-01 : f32
    %95 = vector.broadcast %cst_40 : f32 to vector<2x128xf32>
    %96 = arith.addf %94, %95 : vector<2x128xf32>
    %97 = vector.extract_strided_slice %86 {offsets = [0, 256], sizes = [2, 128], strides = [1, 1]} : vector<2x512xf32> to vector<2x128xf32>
    %98 = vector.extract_strided_slice %86 {offsets = [0, 384], sizes = [2, 128], strides = [1, 1]} : vector<2x512xf32> to vector<2x128xf32>
    %cst_41 = arith.constant 5.000000e-01 : f32
    %99 = vector.broadcast %cst_41 : f32 to vector<2x128xf32>
    %100 = arith.mulf %99, %98 : vector<2x128xf32>
    %cst_42 = arith.constant 5.000000e-01 : f32
    %101 = vector.broadcast %cst_42 : f32 to vector<2x128xf32>
    %102 = arith.addf %100, %101 : vector<2x128xf32>
    %103 = arith.mulf %96, %45 : vector<2x128xf32>
    %104 = arith.mulf %91, %97 : vector<2x128xf32>
    %105 = arith.addf %103, %104 : vector<2x128xf32>
    %106 = math.tanh %105 : vector<2x128xf32>
    %107 = arith.mulf %102, %106 : vector<2x128xf32>
    %108 = tpu.concatenate %107, %73 in 1 : vector<2x128xf32>, vector<2x128xf32> -> vector<2x256xf32>
    %109 = arith.truncf %108 : vector<2x256xf32> to vector<2x256xbf16>
    %cst_43 = arith.constant dense<0.000000e+00> : vector<2x512xf32>
    %110 = tpu.matmul %109, %4, %cst_43 {dimension_numbers = #tpu.dot_dimension_numbers<[1], [0], [0], [1], [0, 0, 1, 1], [], []>} : vector<2x256xbf16>, vector<256x512xbf16>, vector<2x512xf32> -> vector<2x512xf32>
    %111 = arith.addf %110, %10 : vector<2x512xf32>
    %112 = math.tanh %111 : vector<2x512xf32>
    %113 = vector.extract_strided_slice %112 {offsets = [0, 0], sizes = [2, 128], strides = [1, 1]} : vector<2x512xf32> to vector<2x128xf32>
    %cst_44 = arith.constant 5.000000e-01 : f32
    %114 = vector.broadcast %cst_44 : f32 to vector<2x128xf32>
    %115 = arith.mulf %114, %113 : vector<2x128xf32>
    %cst_45 = arith.constant 5.000000e-01 : f32
    %116 = vector.broadcast %cst_45 : f32 to vector<2x128xf32>
    %117 = arith.addf %115, %116 : vector<2x128xf32>
    %118 = vector.extract_strided_slice %112 {offsets = [0, 128], sizes = [2, 128], strides = [1, 1]} : vector<2x512xf32> to vector<2x128xf32>
    %cst_46 = arith.constant 5.000000e-01 : f32
    %119 = vector.broadcast %cst_46 : f32 to vector<2x128xf32>
    %120 = arith.mulf %119, %118 : vector<2x128xf32>
    %cst_47 = arith.constant 5.000000e-01 : f32
    %121 = vector.broadcast %cst_47 : f32 to vector<2x128xf32>
    %122 = arith.addf %120, %121 : vector<2x128xf32>
    %123 = vector.extract_strided_slice %112 {offsets = [0, 256], sizes = [2, 128], strides = [1, 1]} : vector<2x512xf32> to vector<2x128xf32>
    %124 = vector.extract_strided_slice %112 {offsets = [0, 384], sizes = [2, 128], strides = [1, 1]} : vector<2x512xf32> to vector<2x128xf32>
    %cst_48 = arith.constant 5.000000e-01 : f32
    %125 = vector.broadcast %cst_48 : f32 to vector<2x128xf32>
    %126 = arith.mulf %125, %124 : vector<2x128xf32>
    %cst_49 = arith.constant 5.000000e-01 : f32
    %127 = vector.broadcast %cst_49 : f32 to vector<2x128xf32>
    %128 = arith.addf %126, %127 : vector<2x128xf32>
    %129 = arith.mulf %122, %71 : vector<2x128xf32>
    %130 = arith.mulf %117, %123 : vector<2x128xf32>
    %131 = arith.addf %129, %130 : vector<2x128xf32>
    %132 = math.tanh %131 : vector<2x128xf32>
    %133 = arith.mulf %128, %132 : vector<2x128xf32>
    %c8_i32_50 = arith.constant 8 : i32
    %134 = arith.muli %c0_i32_16, %c8_i32_50 : i32
    %135 = arith.addi %12, %134 : i32
    %c1_i32_51 = arith.constant 1 : i32
    %136 = arith.addi %135, %c1_i32_51 : i32
    %c7_i32_52 = arith.constant 7 : i32
    %137 = arith.cmpi eq, %136, %c7_i32_52 : i32
    %138 = arith.extui %137 : i1 to i32
    %c0_i32_53 = arith.constant 0 : i32
    %139 = arith.cmpi ne, %138, %c0_i32_53 : i32
    scf.if %139 {
      %c0_168 = arith.constant 0 : index
      %c0_169 = arith.constant 0 : index
      %507 = vector.load %arg14[%c0_168, %c0_169] : memref<2x128xf32, #tpu.memory_space<vmem>>, vector<2x128xf32>
      tpu.vector_store %arg14[%c0_168, %c0_169], %133 {strides = array<i32>} : memref<2x128xf32, #tpu.memory_space<vmem>>, vector<2x128xf32>,
      %c0_170 = arith.constant 0 : index
      %c0_171 = arith.constant 0 : index
      %508 = vector.load %arg15[%c0_170, %c0_171] : memref<2x128xf32, #tpu.memory_space<vmem>>, vector<2x128xf32>
      tpu.vector_store %arg15[%c0_170, %c0_171], %131 {strides = array<i32>} : memref<2x128xf32, #tpu.memory_space<vmem>>, vector<2x128xf32>,
    } else {
    }
    %140 = vector.extract_strided_slice %19 {offsets = [0, 2, 0], sizes = [2, 1, 128], strides = [1, 1, 1]} : vector<2x8x128xf32> to vector<2x1x128xf32>
    %141 = vector.shape_cast %140 : vector<2x1x128xf32> to vector<2x128xf32>
    %142 = tpu.concatenate %141, %107 in 1 : vector<2x128xf32>, vector<2x128xf32> -> vector<2x256xf32>
    %143 = arith.truncf %142 : vector<2x256xf32> to vector<2x256xbf16>
    %cst_54 = arith.constant dense<0.000000e+00> : vector<2x512xf32>
    %144 = tpu.matmul %143, %3, %cst_54 {dimension_numbers = #tpu.dot_dimension_numbers<[1], [0], [0], [1], [0, 0, 1, 1], [], []>} : vector<2x256xbf16>, vector<256x512xbf16>, vector<2x512xf32> -> vector<2x512xf32>
    %145 = arith.addf %144, %7 : vector<2x512xf32>
    %146 = math.tanh %145 : vector<2x512xf32>
    %147 = vector.extract_strided_slice %146 {offsets = [0, 0], sizes = [2, 128], strides = [1, 1]} : vector<2x512xf32> to vector<2x128xf32>
    %cst_55 = arith.constant 5.000000e-01 : f32
    %148 = vector.broadcast %cst_55 : f32 to vector<2x128xf32>
    %149 = arith.mulf %148, %147 : vector<2x128xf32>
    %cst_56 = arith.constant 5.000000e-01 : f32
    %150 = vector.broadcast %cst_56 : f32 to vector<2x128xf32>
    %151 = arith.addf %149, %150 : vector<2x128xf32>
    %152 = vector.extract_strided_slice %146 {offsets = [0, 128], sizes = [2, 128], strides = [1, 1]} : vector<2x512xf32> to vector<2x128xf32>
    %cst_57 = arith.constant 5.000000e-01 : f32
    %153 = vector.broadcast %cst_57 : f32 to vector<2x128xf32>
    %154 = arith.mulf %153, %152 : vector<2x128xf32>
    %cst_58 = arith.constant 5.000000e-01 : f32
    %155 = vector.broadcast %cst_58 : f32 to vector<2x128xf32>
    %156 = arith.addf %154, %155 : vector<2x128xf32>
    %157 = vector.extract_strided_slice %146 {offsets = [0, 256], sizes = [2, 128], strides = [1, 1]} : vector<2x512xf32> to vector<2x128xf32>
    %158 = vector.extract_strided_slice %146 {offsets = [0, 384], sizes = [2, 128], strides = [1, 1]} : vector<2x512xf32> to vector<2x128xf32>
    %cst_59 = arith.constant 5.000000e-01 : f32
    %159 = vector.broadcast %cst_59 : f32 to vector<2x128xf32>
    %160 = arith.mulf %159, %158 : vector<2x128xf32>
    %cst_60 = arith.constant 5.000000e-01 : f32
    %161 = vector.broadcast %cst_60 : f32 to vector<2x128xf32>
    %162 = arith.addf %160, %161 : vector<2x128xf32>
    %163 = arith.mulf %156, %105 : vector<2x128xf32>
    %164 = arith.mulf %151, %157 : vector<2x128xf32>
    %165 = arith.addf %163, %164 : vector<2x128xf32>
    %166 = math.tanh %165 : vector<2x128xf32>
    %167 = arith.mulf %162, %166 : vector<2x128xf32>
    %168 = tpu.concatenate %167, %133 in 1 : vector<2x128xf32>, vector<2x128xf32> -> vector<2x256xf32>
    %169 = arith.truncf %168 : vector<2x256xf32> to vector<2x256xbf16>
    %cst_61 = arith.constant dense<0.000000e+00> : vector<2x512xf32>
    %170 = tpu.matmul %169, %4, %cst_61 {dimension_numbers = #tpu.dot_dimension_numbers<[1], [0], [0], [1], [0, 0, 1, 1], [], []>} : vector<2x256xbf16>, vector<256x512xbf16>, vector<2x512xf32> -> vector<2x512xf32>
    %171 = arith.addf %170, %10 : vector<2x512xf32>
    %172 = math.tanh %171 : vector<2x512xf32>
    %173 = vector.extract_strided_slice %172 {offsets = [0, 0], sizes = [2, 128], strides = [1, 1]} : vector<2x512xf32> to vector<2x128xf32>
    %cst_62 = arith.constant 5.000000e-01 : f32
    %174 = vector.broadcast %cst_62 : f32 to vector<2x128xf32>
    %175 = arith.mulf %174, %173 : vector<2x128xf32>
    %cst_63 = arith.constant 5.000000e-01 : f32
    %176 = vector.broadcast %cst_63 : f32 to vector<2x128xf32>
    %177 = arith.addf %175, %176 : vector<2x128xf32>
    %178 = vector.extract_strided_slice %172 {offsets = [0, 128], sizes = [2, 128], strides = [1, 1]} : vector<2x512xf32> to vector<2x128xf32>
    %cst_64 = arith.constant 5.000000e-01 : f32
    %179 = vector.broadcast %cst_64 : f32 to vector<2x128xf32>
    %180 = arith.mulf %179, %178 : vector<2x128xf32>
    %cst_65 = arith.constant 5.000000e-01 : f32
    %181 = vector.broadcast %cst_65 : f32 to vector<2x128xf32>
    %182 = arith.addf %180, %181 : vector<2x128xf32>
    %183 = vector.extract_strided_slice %172 {offsets = [0, 256], sizes = [2, 128], strides = [1, 1]} : vector<2x512xf32> to vector<2x128xf32>
    %184 = vector.extract_strided_slice %172 {offsets = [0, 384], sizes = [2, 128], strides = [1, 1]} : vector<2x512xf32> to vector<2x128xf32>
    %cst_66 = arith.constant 5.000000e-01 : f32
    %185 = vector.broadcast %cst_66 : f32 to vector<2x128xf32>
    %186 = arith.mulf %185, %184 : vector<2x128xf32>
    %cst_67 = arith.constant 5.000000e-01 : f32
    %187 = vector.broadcast %cst_67 : f32 to vector<2x128xf32>
    %188 = arith.addf %186, %187 : vector<2x128xf32>
    %189 = arith.mulf %182, %131 : vector<2x128xf32>
    %190 = arith.mulf %177, %183 : vector<2x128xf32>
    %191 = arith.addf %189, %190 : vector<2x128xf32>
    %192 = math.tanh %191 : vector<2x128xf32>
    %193 = arith.mulf %188, %192 : vector<2x128xf32>
    %c8_i32_68 = arith.constant 8 : i32
    %194 = arith.muli %c0_i32_16, %c8_i32_68 : i32
    %195 = arith.addi %12, %194 : i32
    %c2_i32 = arith.constant 2 : i32
    %196 = arith.addi %195, %c2_i32 : i32
    %c7_i32_69 = arith.constant 7 : i32
    %197 = arith.cmpi eq, %196, %c7_i32_69 : i32
    %198 = arith.extui %197 : i1 to i32
    %c0_i32_70 = arith.constant 0 : i32
    %199 = arith.cmpi ne, %198, %c0_i32_70 : i32
    scf.if %199 {
      %c0_168 = arith.constant 0 : index
      %c0_169 = arith.constant 0 : index
      %507 = vector.load %arg14[%c0_168, %c0_169] : memref<2x128xf32, #tpu.memory_space<vmem>>, vector<2x128xf32>
      tpu.vector_store %arg14[%c0_168, %c0_169], %193 {strides = array<i32>} : memref<2x128xf32, #tpu.memory_space<vmem>>, vector<2x128xf32>,
      %c0_170 = arith.constant 0 : index
      %c0_171 = arith.constant 0 : index
      %508 = vector.load %arg15[%c0_170, %c0_171] : memref<2x128xf32, #tpu.memory_space<vmem>>, vector<2x128xf32>
      tpu.vector_store %arg15[%c0_170, %c0_171], %191 {strides = array<i32>} : memref<2x128xf32, #tpu.memory_space<vmem>>, vector<2x128xf32>,
    } else {
    }
    %200 = vector.extract_strided_slice %19 {offsets = [0, 3, 0], sizes = [2, 1, 128], strides = [1, 1, 1]} : vector<2x8x128xf32> to vector<2x1x128xf32>
    %201 = vector.shape_cast %200 : vector<2x1x128xf32> to vector<2x128xf32>
    %202 = tpu.concatenate %201, %167 in 1 : vector<2x128xf32>, vector<2x128xf32> -> vector<2x256xf32>
    %203 = arith.truncf %202 : vector<2x256xf32> to vector<2x256xbf16>
    %cst_71 = arith.constant dense<0.000000e+00> : vector<2x512xf32>
    %204 = tpu.matmul %203, %3, %cst_71 {dimension_numbers = #tpu.dot_dimension_numbers<[1], [0], [0], [1], [0, 0, 1, 1], [], []>} : vector<2x256xbf16>, vector<256x512xbf16>, vector<2x512xf32> -> vector<2x512xf32>
    %205 = arith.addf %204, %7 : vector<2x512xf32>
    %206 = math.tanh %205 : vector<2x512xf32>
    %207 = vector.extract_strided_slice %206 {offsets = [0, 0], sizes = [2, 128], strides = [1, 1]} : vector<2x512xf32> to vector<2x128xf32>
    %cst_72 = arith.constant 5.000000e-01 : f32
    %208 = vector.broadcast %cst_72 : f32 to vector<2x128xf32>
    %209 = arith.mulf %208, %207 : vector<2x128xf32>
    %cst_73 = arith.constant 5.000000e-01 : f32
    %210 = vector.broadcast %cst_73 : f32 to vector<2x128xf32>
    %211 = arith.addf %209, %210 : vector<2x128xf32>
    %212 = vector.extract_strided_slice %206 {offsets = [0, 128], sizes = [2, 128], strides = [1, 1]} : vector<2x512xf32> to vector<2x128xf32>
    %cst_74 = arith.constant 5.000000e-01 : f32
    %213 = vector.broadcast %cst_74 : f32 to vector<2x128xf32>
    %214 = arith.mulf %213, %212 : vector<2x128xf32>
    %cst_75 = arith.constant 5.000000e-01 : f32
    %215 = vector.broadcast %cst_75 : f32 to vector<2x128xf32>
    %216 = arith.addf %214, %215 : vector<2x128xf32>
    %217 = vector.extract_strided_slice %206 {offsets = [0, 256], sizes = [2, 128], strides = [1, 1]} : vector<2x512xf32> to vector<2x128xf32>
    %218 = vector.extract_strided_slice %206 {offsets = [0, 384], sizes = [2, 128], strides = [1, 1]} : vector<2x512xf32> to vector<2x128xf32>
    %cst_76 = arith.constant 5.000000e-01 : f32
    %219 = vector.broadcast %cst_76 : f32 to vector<2x128xf32>
    %220 = arith.mulf %219, %218 : vector<2x128xf32>
    %cst_77 = arith.constant 5.000000e-01 : f32
    %221 = vector.broadcast %cst_77 : f32 to vector<2x128xf32>
    %222 = arith.addf %220, %221 : vector<2x128xf32>
    %223 = arith.mulf %216, %165 : vector<2x128xf32>
    %224 = arith.mulf %211, %217 : vector<2x128xf32>
    %225 = arith.addf %223, %224 : vector<2x128xf32>
    %226 = math.tanh %225 : vector<2x128xf32>
    %227 = arith.mulf %222, %226 : vector<2x128xf32>
    %228 = tpu.concatenate %227, %193 in 1 : vector<2x128xf32>, vector<2x128xf32> -> vector<2x256xf32>
    %229 = arith.truncf %228 : vector<2x256xf32> to vector<2x256xbf16>
    %cst_78 = arith.constant dense<0.000000e+00> : vector<2x512xf32>
    %230 = tpu.matmul %229, %4, %cst_78 {dimension_numbers = #tpu.dot_dimension_numbers<[1], [0], [0], [1], [0, 0, 1, 1], [], []>} : vector<2x256xbf16>, vector<256x512xbf16>, vector<2x512xf32> -> vector<2x512xf32>
    %231 = arith.addf %230, %10 : vector<2x512xf32>
    %232 = math.tanh %231 : vector<2x512xf32>
    %233 = vector.extract_strided_slice %232 {offsets = [0, 0], sizes = [2, 128], strides = [1, 1]} : vector<2x512xf32> to vector<2x128xf32>
    %cst_79 = arith.constant 5.000000e-01 : f32
    %234 = vector.broadcast %cst_79 : f32 to vector<2x128xf32>
    %235 = arith.mulf %234, %233 : vector<2x128xf32>
    %cst_80 = arith.constant 5.000000e-01 : f32
    %236 = vector.broadcast %cst_80 : f32 to vector<2x128xf32>
    %237 = arith.addf %235, %236 : vector<2x128xf32>
    %238 = vector.extract_strided_slice %232 {offsets = [0, 128], sizes = [2, 128], strides = [1, 1]} : vector<2x512xf32> to vector<2x128xf32>
    %cst_81 = arith.constant 5.000000e-01 : f32
    %239 = vector.broadcast %cst_81 : f32 to vector<2x128xf32>
    %240 = arith.mulf %239, %238 : vector<2x128xf32>
    %cst_82 = arith.constant 5.000000e-01 : f32
    %241 = vector.broadcast %cst_82 : f32 to vector<2x128xf32>
    %242 = arith.addf %240, %241 : vector<2x128xf32>
    %243 = vector.extract_strided_slice %232 {offsets = [0, 256], sizes = [2, 128], strides = [1, 1]} : vector<2x512xf32> to vector<2x128xf32>
    %244 = vector.extract_strided_slice %232 {offsets = [0, 384], sizes = [2, 128], strides = [1, 1]} : vector<2x512xf32> to vector<2x128xf32>
    %cst_83 = arith.constant 5.000000e-01 : f32
    %245 = vector.broadcast %cst_83 : f32 to vector<2x128xf32>
    %246 = arith.mulf %245, %244 : vector<2x128xf32>
    %cst_84 = arith.constant 5.000000e-01 : f32
    %247 = vector.broadcast %cst_84 : f32 to vector<2x128xf32>
    %248 = arith.addf %246, %247 : vector<2x128xf32>
    %249 = arith.mulf %242, %191 : vector<2x128xf32>
    %250 = arith.mulf %237, %243 : vector<2x128xf32>
    %251 = arith.addf %249, %250 : vector<2x128xf32>
    %252 = math.tanh %251 : vector<2x128xf32>
    %253 = arith.mulf %248, %252 : vector<2x128xf32>
    %c8_i32_85 = arith.constant 8 : i32
    %254 = arith.muli %c0_i32_16, %c8_i32_85 : i32
    %255 = arith.addi %12, %254 : i32
    %c3_i32 = arith.constant 3 : i32
    %256 = arith.addi %255, %c3_i32 : i32
    %c7_i32_86 = arith.constant 7 : i32
    %257 = arith.cmpi eq, %256, %c7_i32_86 : i32
    %258 = arith.extui %257 : i1 to i32
    %c0_i32_87 = arith.constant 0 : i32
    %259 = arith.cmpi ne, %258, %c0_i32_87 : i32
    scf.if %259 {
      %c0_168 = arith.constant 0 : index
      %c0_169 = arith.constant 0 : index
      %507 = vector.load %arg14[%c0_168, %c0_169] : memref<2x128xf32, #tpu.memory_space<vmem>>, vector<2x128xf32>
      tpu.vector_store %arg14[%c0_168, %c0_169], %253 {strides = array<i32>} : memref<2x128xf32, #tpu.memory_space<vmem>>, vector<2x128xf32>,
      %c0_170 = arith.constant 0 : index
      %c0_171 = arith.constant 0 : index
      %508 = vector.load %arg15[%c0_170, %c0_171] : memref<2x128xf32, #tpu.memory_space<vmem>>, vector<2x128xf32>
      tpu.vector_store %arg15[%c0_170, %c0_171], %251 {strides = array<i32>} : memref<2x128xf32, #tpu.memory_space<vmem>>, vector<2x128xf32>,
    } else {
    }
    %260 = vector.extract_strided_slice %19 {offsets = [0, 4, 0], sizes = [2, 1, 128], strides = [1, 1, 1]} : vector<2x8x128xf32> to vector<2x1x128xf32>
    %261 = vector.shape_cast %260 : vector<2x1x128xf32> to vector<2x128xf32>
    %262 = tpu.concatenate %261, %227 in 1 : vector<2x128xf32>, vector<2x128xf32> -> vector<2x256xf32>
    %263 = arith.truncf %262 : vector<2x256xf32> to vector<2x256xbf16>
    %cst_88 = arith.constant dense<0.000000e+00> : vector<2x512xf32>
    %264 = tpu.matmul %263, %3, %cst_88 {dimension_numbers = #tpu.dot_dimension_numbers<[1], [0], [0], [1], [0, 0, 1, 1], [], []>} : vector<2x256xbf16>, vector<256x512xbf16>, vector<2x512xf32> -> vector<2x512xf32>
    %265 = arith.addf %264, %7 : vector<2x512xf32>
    %266 = math.tanh %265 : vector<2x512xf32>
    %267 = vector.extract_strided_slice %266 {offsets = [0, 0], sizes = [2, 128], strides = [1, 1]} : vector<2x512xf32> to vector<2x128xf32>
    %cst_89 = arith.constant 5.000000e-01 : f32
    %268 = vector.broadcast %cst_89 : f32 to vector<2x128xf32>
    %269 = arith.mulf %268, %267 : vector<2x128xf32>
    %cst_90 = arith.constant 5.000000e-01 : f32
    %270 = vector.broadcast %cst_90 : f32 to vector<2x128xf32>
    %271 = arith.addf %269, %270 : vector<2x128xf32>
    %272 = vector.extract_strided_slice %266 {offsets = [0, 128], sizes = [2, 128], strides = [1, 1]} : vector<2x512xf32> to vector<2x128xf32>
    %cst_91 = arith.constant 5.000000e-01 : f32
    %273 = vector.broadcast %cst_91 : f32 to vector<2x128xf32>
    %274 = arith.mulf %273, %272 : vector<2x128xf32>
    %cst_92 = arith.constant 5.000000e-01 : f32
    %275 = vector.broadcast %cst_92 : f32 to vector<2x128xf32>
    %276 = arith.addf %274, %275 : vector<2x128xf32>
    %277 = vector.extract_strided_slice %266 {offsets = [0, 256], sizes = [2, 128], strides = [1, 1]} : vector<2x512xf32> to vector<2x128xf32>
    %278 = vector.extract_strided_slice %266 {offsets = [0, 384], sizes = [2, 128], strides = [1, 1]} : vector<2x512xf32> to vector<2x128xf32>
    %cst_93 = arith.constant 5.000000e-01 : f32
    %279 = vector.broadcast %cst_93 : f32 to vector<2x128xf32>
    %280 = arith.mulf %279, %278 : vector<2x128xf32>
    %cst_94 = arith.constant 5.000000e-01 : f32
    %281 = vector.broadcast %cst_94 : f32 to vector<2x128xf32>
    %282 = arith.addf %280, %281 : vector<2x128xf32>
    %283 = arith.mulf %276, %225 : vector<2x128xf32>
    %284 = arith.mulf %271, %277 : vector<2x128xf32>
    %285 = arith.addf %283, %284 : vector<2x128xf32>
    %286 = math.tanh %285 : vector<2x128xf32>
    %287 = arith.mulf %282, %286 : vector<2x128xf32>
    %288 = tpu.concatenate %287, %253 in 1 : vector<2x128xf32>, vector<2x128xf32> -> vector<2x256xf32>
    %289 = arith.truncf %288 : vector<2x256xf32> to vector<2x256xbf16>
    %cst_95 = arith.constant dense<0.000000e+00> : vector<2x512xf32>
    %290 = tpu.matmul %289, %4, %cst_95 {dimension_numbers = #tpu.dot_dimension_numbers<[1], [0], [0], [1], [0, 0, 1, 1], [], []>} : vector<2x256xbf16>, vector<256x512xbf16>, vector<2x512xf32> -> vector<2x512xf32>
    %291 = arith.addf %290, %10 : vector<2x512xf32>
    %292 = math.tanh %291 : vector<2x512xf32>
    %293 = vector.extract_strided_slice %292 {offsets = [0, 0], sizes = [2, 128], strides = [1, 1]} : vector<2x512xf32> to vector<2x128xf32>
    %cst_96 = arith.constant 5.000000e-01 : f32
    %294 = vector.broadcast %cst_96 : f32 to vector<2x128xf32>
    %295 = arith.mulf %294, %293 : vector<2x128xf32>
    %cst_97 = arith.constant 5.000000e-01 : f32
    %296 = vector.broadcast %cst_97 : f32 to vector<2x128xf32>
    %297 = arith.addf %295, %296 : vector<2x128xf32>
    %298 = vector.extract_strided_slice %292 {offsets = [0, 128], sizes = [2, 128], strides = [1, 1]} : vector<2x512xf32> to vector<2x128xf32>
    %cst_98 = arith.constant 5.000000e-01 : f32
    %299 = vector.broadcast %cst_98 : f32 to vector<2x128xf32>
    %300 = arith.mulf %299, %298 : vector<2x128xf32>
    %cst_99 = arith.constant 5.000000e-01 : f32
    %301 = vector.broadcast %cst_99 : f32 to vector<2x128xf32>
    %302 = arith.addf %300, %301 : vector<2x128xf32>
    %303 = vector.extract_strided_slice %292 {offsets = [0, 256], sizes = [2, 128], strides = [1, 1]} : vector<2x512xf32> to vector<2x128xf32>
    %304 = vector.extract_strided_slice %292 {offsets = [0, 384], sizes = [2, 128], strides = [1, 1]} : vector<2x512xf32> to vector<2x128xf32>
    %cst_100 = arith.constant 5.000000e-01 : f32
    %305 = vector.broadcast %cst_100 : f32 to vector<2x128xf32>
    %306 = arith.mulf %305, %304 : vector<2x128xf32>
    %cst_101 = arith.constant 5.000000e-01 : f32
    %307 = vector.broadcast %cst_101 : f32 to vector<2x128xf32>
    %308 = arith.addf %306, %307 : vector<2x128xf32>
    %309 = arith.mulf %302, %251 : vector<2x128xf32>
    %310 = arith.mulf %297, %303 : vector<2x128xf32>
    %311 = arith.addf %309, %310 : vector<2x128xf32>
    %312 = math.tanh %311 : vector<2x128xf32>
    %313 = arith.mulf %308, %312 : vector<2x128xf32>
    %c8_i32_102 = arith.constant 8 : i32
    %314 = arith.muli %c0_i32_16, %c8_i32_102 : i32
    %315 = arith.addi %12, %314 : i32
    %c4_i32 = arith.constant 4 : i32
    %316 = arith.addi %315, %c4_i32 : i32
    %c7_i32_103 = arith.constant 7 : i32
    %317 = arith.cmpi eq, %316, %c7_i32_103 : i32
    %318 = arith.extui %317 : i1 to i32
    %c0_i32_104 = arith.constant 0 : i32
    %319 = arith.cmpi ne, %318, %c0_i32_104 : i32
    scf.if %319 {
      %c0_168 = arith.constant 0 : index
      %c0_169 = arith.constant 0 : index
      %507 = vector.load %arg14[%c0_168, %c0_169] : memref<2x128xf32, #tpu.memory_space<vmem>>, vector<2x128xf32>
      tpu.vector_store %arg14[%c0_168, %c0_169], %313 {strides = array<i32>} : memref<2x128xf32, #tpu.memory_space<vmem>>, vector<2x128xf32>,
      %c0_170 = arith.constant 0 : index
      %c0_171 = arith.constant 0 : index
      %508 = vector.load %arg15[%c0_170, %c0_171] : memref<2x128xf32, #tpu.memory_space<vmem>>, vector<2x128xf32>
      tpu.vector_store %arg15[%c0_170, %c0_171], %311 {strides = array<i32>} : memref<2x128xf32, #tpu.memory_space<vmem>>, vector<2x128xf32>,
    } else {
    }
    %320 = vector.extract_strided_slice %19 {offsets = [0, 5, 0], sizes = [2, 1, 128], strides = [1, 1, 1]} : vector<2x8x128xf32> to vector<2x1x128xf32>
    %321 = vector.shape_cast %320 : vector<2x1x128xf32> to vector<2x128xf32>
    %322 = tpu.concatenate %321, %287 in 1 : vector<2x128xf32>, vector<2x128xf32> -> vector<2x256xf32>
    %323 = arith.truncf %322 : vector<2x256xf32> to vector<2x256xbf16>
    %cst_105 = arith.constant dense<0.000000e+00> : vector<2x512xf32>
    %324 = tpu.matmul %323, %3, %cst_105 {dimension_numbers = #tpu.dot_dimension_numbers<[1], [0], [0], [1], [0, 0, 1, 1], [], []>} : vector<2x256xbf16>, vector<256x512xbf16>, vector<2x512xf32> -> vector<2x512xf32>
    %325 = arith.addf %324, %7 : vector<2x512xf32>
    %326 = math.tanh %325 : vector<2x512xf32>
    %327 = vector.extract_strided_slice %326 {offsets = [0, 0], sizes = [2, 128], strides = [1, 1]} : vector<2x512xf32> to vector<2x128xf32>
    %cst_106 = arith.constant 5.000000e-01 : f32
    %328 = vector.broadcast %cst_106 : f32 to vector<2x128xf32>
    %329 = arith.mulf %328, %327 : vector<2x128xf32>
    %cst_107 = arith.constant 5.000000e-01 : f32
    %330 = vector.broadcast %cst_107 : f32 to vector<2x128xf32>
    %331 = arith.addf %329, %330 : vector<2x128xf32>
    %332 = vector.extract_strided_slice %326 {offsets = [0, 128], sizes = [2, 128], strides = [1, 1]} : vector<2x512xf32> to vector<2x128xf32>
    %cst_108 = arith.constant 5.000000e-01 : f32
    %333 = vector.broadcast %cst_108 : f32 to vector<2x128xf32>
    %334 = arith.mulf %333, %332 : vector<2x128xf32>
    %cst_109 = arith.constant 5.000000e-01 : f32
    %335 = vector.broadcast %cst_109 : f32 to vector<2x128xf32>
    %336 = arith.addf %334, %335 : vector<2x128xf32>
    %337 = vector.extract_strided_slice %326 {offsets = [0, 256], sizes = [2, 128], strides = [1, 1]} : vector<2x512xf32> to vector<2x128xf32>
    %338 = vector.extract_strided_slice %326 {offsets = [0, 384], sizes = [2, 128], strides = [1, 1]} : vector<2x512xf32> to vector<2x128xf32>
    %cst_110 = arith.constant 5.000000e-01 : f32
    %339 = vector.broadcast %cst_110 : f32 to vector<2x128xf32>
    %340 = arith.mulf %339, %338 : vector<2x128xf32>
    %cst_111 = arith.constant 5.000000e-01 : f32
    %341 = vector.broadcast %cst_111 : f32 to vector<2x128xf32>
    %342 = arith.addf %340, %341 : vector<2x128xf32>
    %343 = arith.mulf %336, %285 : vector<2x128xf32>
    %344 = arith.mulf %331, %337 : vector<2x128xf32>
    %345 = arith.addf %343, %344 : vector<2x128xf32>
    %346 = math.tanh %345 : vector<2x128xf32>
    %347 = arith.mulf %342, %346 : vector<2x128xf32>
    %348 = tpu.concatenate %347, %313 in 1 : vector<2x128xf32>, vector<2x128xf32> -> vector<2x256xf32>
    %349 = arith.truncf %348 : vector<2x256xf32> to vector<2x256xbf16>
    %cst_112 = arith.constant dense<0.000000e+00> : vector<2x512xf32>
    %350 = tpu.matmul %349, %4, %cst_112 {dimension_numbers = #tpu.dot_dimension_numbers<[1], [0], [0], [1], [0, 0, 1, 1], [], []>} : vector<2x256xbf16>, vector<256x512xbf16>, vector<2x512xf32> -> vector<2x512xf32>
    %351 = arith.addf %350, %10 : vector<2x512xf32>
    %352 = math.tanh %351 : vector<2x512xf32>
    %353 = vector.extract_strided_slice %352 {offsets = [0, 0], sizes = [2, 128], strides = [1, 1]} : vector<2x512xf32> to vector<2x128xf32>
    %cst_113 = arith.constant 5.000000e-01 : f32
    %354 = vector.broadcast %cst_113 : f32 to vector<2x128xf32>
    %355 = arith.mulf %354, %353 : vector<2x128xf32>
    %cst_114 = arith.constant 5.000000e-01 : f32
    %356 = vector.broadcast %cst_114 : f32 to vector<2x128xf32>
    %357 = arith.addf %355, %356 : vector<2x128xf32>
    %358 = vector.extract_strided_slice %352 {offsets = [0, 128], sizes = [2, 128], strides = [1, 1]} : vector<2x512xf32> to vector<2x128xf32>
    %cst_115 = arith.constant 5.000000e-01 : f32
    %359 = vector.broadcast %cst_115 : f32 to vector<2x128xf32>
    %360 = arith.mulf %359, %358 : vector<2x128xf32>
    %cst_116 = arith.constant 5.000000e-01 : f32
    %361 = vector.broadcast %cst_116 : f32 to vector<2x128xf32>
    %362 = arith.addf %360, %361 : vector<2x128xf32>
    %363 = vector.extract_strided_slice %352 {offsets = [0, 256], sizes = [2, 128], strides = [1, 1]} : vector<2x512xf32> to vector<2x128xf32>
    %364 = vector.extract_strided_slice %352 {offsets = [0, 384], sizes = [2, 128], strides = [1, 1]} : vector<2x512xf32> to vector<2x128xf32>
    %cst_117 = arith.constant 5.000000e-01 : f32
    %365 = vector.broadcast %cst_117 : f32 to vector<2x128xf32>
    %366 = arith.mulf %365, %364 : vector<2x128xf32>
    %cst_118 = arith.constant 5.000000e-01 : f32
    %367 = vector.broadcast %cst_118 : f32 to vector<2x128xf32>
    %368 = arith.addf %366, %367 : vector<2x128xf32>
    %369 = arith.mulf %362, %311 : vector<2x128xf32>
    %370 = arith.mulf %357, %363 : vector<2x128xf32>
    %371 = arith.addf %369, %370 : vector<2x128xf32>
    %372 = math.tanh %371 : vector<2x128xf32>
    %373 = arith.mulf %368, %372 : vector<2x128xf32>
    %c8_i32_119 = arith.constant 8 : i32
    %374 = arith.muli %c0_i32_16, %c8_i32_119 : i32
    %375 = arith.addi %12, %374 : i32
    %c5_i32 = arith.constant 5 : i32
    %376 = arith.addi %375, %c5_i32 : i32
    %c7_i32_120 = arith.constant 7 : i32
    %377 = arith.cmpi eq, %376, %c7_i32_120 : i32
    %378 = arith.extui %377 : i1 to i32
    %c0_i32_121 = arith.constant 0 : i32
    %379 = arith.cmpi ne, %378, %c0_i32_121 : i32
    scf.if %379 {
      %c0_168 = arith.constant 0 : index
      %c0_169 = arith.constant 0 : index
      %507 = vector.load %arg14[%c0_168, %c0_169] : memref<2x128xf32, #tpu.memory_space<vmem>>, vector<2x128xf32>
      tpu.vector_store %arg14[%c0_168, %c0_169], %373 {strides = array<i32>} : memref<2x128xf32, #tpu.memory_space<vmem>>, vector<2x128xf32>,
      %c0_170 = arith.constant 0 : index
      %c0_171 = arith.constant 0 : index
      %508 = vector.load %arg15[%c0_170, %c0_171] : memref<2x128xf32, #tpu.memory_space<vmem>>, vector<2x128xf32>
      tpu.vector_store %arg15[%c0_170, %c0_171], %371 {strides = array<i32>} : memref<2x128xf32, #tpu.memory_space<vmem>>, vector<2x128xf32>,
    } else {
    }
    %380 = vector.extract_strided_slice %19 {offsets = [0, 6, 0], sizes = [2, 1, 128], strides = [1, 1, 1]} : vector<2x8x128xf32> to vector<2x1x128xf32>
    %381 = vector.shape_cast %380 : vector<2x1x128xf32> to vector<2x128xf32>
    %382 = tpu.concatenate %381, %347 in 1 : vector<2x128xf32>, vector<2x128xf32> -> vector<2x256xf32>
    %383 = arith.truncf %382 : vector<2x256xf32> to vector<2x256xbf16>
    %cst_122 = arith.constant dense<0.000000e+00> : vector<2x512xf32>
    %384 = tpu.matmul %383, %3, %cst_122 {dimension_numbers = #tpu.dot_dimension_numbers<[1], [0], [0], [1], [0, 0, 1, 1], [], []>} : vector<2x256xbf16>, vector<256x512xbf16>, vector<2x512xf32> -> vector<2x512xf32>
    %385 = arith.addf %384, %7 : vector<2x512xf32>
    %386 = math.tanh %385 : vector<2x512xf32>
    %387 = vector.extract_strided_slice %386 {offsets = [0, 0], sizes = [2, 128], strides = [1, 1]} : vector<2x512xf32> to vector<2x128xf32>
    %cst_123 = arith.constant 5.000000e-01 : f32
    %388 = vector.broadcast %cst_123 : f32 to vector<2x128xf32>
    %389 = arith.mulf %388, %387 : vector<2x128xf32>
    %cst_124 = arith.constant 5.000000e-01 : f32
    %390 = vector.broadcast %cst_124 : f32 to vector<2x128xf32>
    %391 = arith.addf %389, %390 : vector<2x128xf32>
    %392 = vector.extract_strided_slice %386 {offsets = [0, 128], sizes = [2, 128], strides = [1, 1]} : vector<2x512xf32> to vector<2x128xf32>
    %cst_125 = arith.constant 5.000000e-01 : f32
    %393 = vector.broadcast %cst_125 : f32 to vector<2x128xf32>
    %394 = arith.mulf %393, %392 : vector<2x128xf32>
    %cst_126 = arith.constant 5.000000e-01 : f32
    %395 = vector.broadcast %cst_126 : f32 to vector<2x128xf32>
    %396 = arith.addf %394, %395 : vector<2x128xf32>
    %397 = vector.extract_strided_slice %386 {offsets = [0, 256], sizes = [2, 128], strides = [1, 1]} : vector<2x512xf32> to vector<2x128xf32>
    %398 = vector.extract_strided_slice %386 {offsets = [0, 384], sizes = [2, 128], strides = [1, 1]} : vector<2x512xf32> to vector<2x128xf32>
    %cst_127 = arith.constant 5.000000e-01 : f32
    %399 = vector.broadcast %cst_127 : f32 to vector<2x128xf32>
    %400 = arith.mulf %399, %398 : vector<2x128xf32>
    %cst_128 = arith.constant 5.000000e-01 : f32
    %401 = vector.broadcast %cst_128 : f32 to vector<2x128xf32>
    %402 = arith.addf %400, %401 : vector<2x128xf32>
    %403 = arith.mulf %396, %345 : vector<2x128xf32>
    %404 = arith.mulf %391, %397 : vector<2x128xf32>
    %405 = arith.addf %403, %404 : vector<2x128xf32>
    %406 = math.tanh %405 : vector<2x128xf32>
    %407 = arith.mulf %402, %406 : vector<2x128xf32>
    %408 = tpu.concatenate %407, %373 in 1 : vector<2x128xf32>, vector<2x128xf32> -> vector<2x256xf32>
    %409 = arith.truncf %408 : vector<2x256xf32> to vector<2x256xbf16>
    %cst_129 = arith.constant dense<0.000000e+00> : vector<2x512xf32>
    %410 = tpu.matmul %409, %4, %cst_129 {dimension_numbers = #tpu.dot_dimension_numbers<[1], [0], [0], [1], [0, 0, 1, 1], [], []>} : vector<2x256xbf16>, vector<256x512xbf16>, vector<2x512xf32> -> vector<2x512xf32>
    %411 = arith.addf %410, %10 : vector<2x512xf32>
    %412 = math.tanh %411 : vector<2x512xf32>
    %413 = vector.extract_strided_slice %412 {offsets = [0, 0], sizes = [2, 128], strides = [1, 1]} : vector<2x512xf32> to vector<2x128xf32>
    %cst_130 = arith.constant 5.000000e-01 : f32
    %414 = vector.broadcast %cst_130 : f32 to vector<2x128xf32>
    %415 = arith.mulf %414, %413 : vector<2x128xf32>
    %cst_131 = arith.constant 5.000000e-01 : f32
    %416 = vector.broadcast %cst_131 : f32 to vector<2x128xf32>
    %417 = arith.addf %415, %416 : vector<2x128xf32>
    %418 = vector.extract_strided_slice %412 {offsets = [0, 128], sizes = [2, 128], strides = [1, 1]} : vector<2x512xf32> to vector<2x128xf32>
    %cst_132 = arith.constant 5.000000e-01 : f32
    %419 = vector.broadcast %cst_132 : f32 to vector<2x128xf32>
    %420 = arith.mulf %419, %418 : vector<2x128xf32>
    %cst_133 = arith.constant 5.000000e-01 : f32
    %421 = vector.broadcast %cst_133 : f32 to vector<2x128xf32>
    %422 = arith.addf %420, %421 : vector<2x128xf32>
    %423 = vector.extract_strided_slice %412 {offsets = [0, 256], sizes = [2, 128], strides = [1, 1]} : vector<2x512xf32> to vector<2x128xf32>
    %424 = vector.extract_strided_slice %412 {offsets = [0, 384], sizes = [2, 128], strides = [1, 1]} : vector<2x512xf32> to vector<2x128xf32>
    %cst_134 = arith.constant 5.000000e-01 : f32
    %425 = vector.broadcast %cst_134 : f32 to vector<2x128xf32>
    %426 = arith.mulf %425, %424 : vector<2x128xf32>
    %cst_135 = arith.constant 5.000000e-01 : f32
    %427 = vector.broadcast %cst_135 : f32 to vector<2x128xf32>
    %428 = arith.addf %426, %427 : vector<2x128xf32>
    %429 = arith.mulf %422, %371 : vector<2x128xf32>
    %430 = arith.mulf %417, %423 : vector<2x128xf32>
    %431 = arith.addf %429, %430 : vector<2x128xf32>
    %432 = math.tanh %431 : vector<2x128xf32>
    %433 = arith.mulf %428, %432 : vector<2x128xf32>
    %c8_i32_136 = arith.constant 8 : i32
    %434 = arith.muli %c0_i32_16, %c8_i32_136 : i32
    %435 = arith.addi %12, %434 : i32
    %c6_i32 = arith.constant 6 : i32
    %436 = arith.addi %435, %c6_i32 : i32
    %c7_i32_137 = arith.constant 7 : i32
    %437 = arith.cmpi eq, %436, %c7_i32_137 : i32
    %438 = arith.extui %437 : i1 to i32
    %c0_i32_138 = arith.constant 0 : i32
    %439 = arith.cmpi ne, %438, %c0_i32_138 : i32
    scf.if %439 {
      %c0_168 = arith.constant 0 : index
      %c0_169 = arith.constant 0 : index
      %507 = vector.load %arg14[%c0_168, %c0_169] : memref<2x128xf32, #tpu.memory_space<vmem>>, vector<2x128xf32>
      tpu.vector_store %arg14[%c0_168, %c0_169], %433 {strides = array<i32>} : memref<2x128xf32, #tpu.memory_space<vmem>>, vector<2x128xf32>,
      %c0_170 = arith.constant 0 : index
      %c0_171 = arith.constant 0 : index
      %508 = vector.load %arg15[%c0_170, %c0_171] : memref<2x128xf32, #tpu.memory_space<vmem>>, vector<2x128xf32>
      tpu.vector_store %arg15[%c0_170, %c0_171], %431 {strides = array<i32>} : memref<2x128xf32, #tpu.memory_space<vmem>>, vector<2x128xf32>,
    } else {
    }
    %440 = vector.extract_strided_slice %19 {offsets = [0, 7, 0], sizes = [2, 1, 128], strides = [1, 1, 1]} : vector<2x8x128xf32> to vector<2x1x128xf32>
    %441 = vector.shape_cast %440 : vector<2x1x128xf32> to vector<2x128xf32>
    %442 = tpu.concatenate %441, %407 in 1 : vector<2x128xf32>, vector<2x128xf32> -> vector<2x256xf32>
    %443 = arith.truncf %442 : vector<2x256xf32> to vector<2x256xbf16>
    %cst_139 = arith.constant dense<0.000000e+00> : vector<2x512xf32>
    %444 = tpu.matmul %443, %3, %cst_139 {dimension_numbers = #tpu.dot_dimension_numbers<[1], [0], [0], [1], [0, 0, 1, 1], [], []>} : vector<2x256xbf16>, vector<256x512xbf16>, vector<2x512xf32> -> vector<2x512xf32>
    %445 = arith.addf %444, %7 : vector<2x512xf32>
    %446 = math.tanh %445 : vector<2x512xf32>
    %447 = vector.extract_strided_slice %446 {offsets = [0, 0], sizes = [2, 128], strides = [1, 1]} : vector<2x512xf32> to vector<2x128xf32>
    %cst_140 = arith.constant 5.000000e-01 : f32
    %448 = vector.broadcast %cst_140 : f32 to vector<2x128xf32>
    %449 = arith.mulf %448, %447 : vector<2x128xf32>
    %cst_141 = arith.constant 5.000000e-01 : f32
    %450 = vector.broadcast %cst_141 : f32 to vector<2x128xf32>
    %451 = arith.addf %449, %450 : vector<2x128xf32>
    %452 = vector.extract_strided_slice %446 {offsets = [0, 128], sizes = [2, 128], strides = [1, 1]} : vector<2x512xf32> to vector<2x128xf32>
    %cst_142 = arith.constant 5.000000e-01 : f32
    %453 = vector.broadcast %cst_142 : f32 to vector<2x128xf32>
    %454 = arith.mulf %453, %452 : vector<2x128xf32>
    %cst_143 = arith.constant 5.000000e-01 : f32
    %455 = vector.broadcast %cst_143 : f32 to vector<2x128xf32>
    %456 = arith.addf %454, %455 : vector<2x128xf32>
    %457 = vector.extract_strided_slice %446 {offsets = [0, 256], sizes = [2, 128], strides = [1, 1]} : vector<2x512xf32> to vector<2x128xf32>
    %458 = vector.extract_strided_slice %446 {offsets = [0, 384], sizes = [2, 128], strides = [1, 1]} : vector<2x512xf32> to vector<2x128xf32>
    %cst_144 = arith.constant 5.000000e-01 : f32
    %459 = vector.broadcast %cst_144 : f32 to vector<2x128xf32>
    %460 = arith.mulf %459, %458 : vector<2x128xf32>
    %cst_145 = arith.constant 5.000000e-01 : f32
    %461 = vector.broadcast %cst_145 : f32 to vector<2x128xf32>
    %462 = arith.addf %460, %461 : vector<2x128xf32>
    %463 = arith.mulf %456, %405 : vector<2x128xf32>
    %464 = arith.mulf %451, %457 : vector<2x128xf32>
    %465 = arith.addf %463, %464 : vector<2x128xf32>
    %466 = math.tanh %465 : vector<2x128xf32>
    %467 = arith.mulf %462, %466 : vector<2x128xf32>
    %468 = tpu.concatenate %467, %433 in 1 : vector<2x128xf32>, vector<2x128xf32> -> vector<2x256xf32>
    %469 = arith.truncf %468 : vector<2x256xf32> to vector<2x256xbf16>
    %cst_146 = arith.constant dense<0.000000e+00> : vector<2x512xf32>
    %470 = tpu.matmul %469, %4, %cst_146 {dimension_numbers = #tpu.dot_dimension_numbers<[1], [0], [0], [1], [0, 0, 1, 1], [], []>} : vector<2x256xbf16>, vector<256x512xbf16>, vector<2x512xf32> -> vector<2x512xf32>
    %471 = arith.addf %470, %10 : vector<2x512xf32>
    %472 = math.tanh %471 : vector<2x512xf32>
    %473 = vector.extract_strided_slice %472 {offsets = [0, 0], sizes = [2, 128], strides = [1, 1]} : vector<2x512xf32> to vector<2x128xf32>
    %cst_147 = arith.constant 5.000000e-01 : f32
    %474 = vector.broadcast %cst_147 : f32 to vector<2x128xf32>
    %475 = arith.mulf %474, %473 : vector<2x128xf32>
    %cst_148 = arith.constant 5.000000e-01 : f32
    %476 = vector.broadcast %cst_148 : f32 to vector<2x128xf32>
    %477 = arith.addf %475, %476 : vector<2x128xf32>
    %478 = vector.extract_strided_slice %472 {offsets = [0, 128], sizes = [2, 128], strides = [1, 1]} : vector<2x512xf32> to vector<2x128xf32>
    %cst_149 = arith.constant 5.000000e-01 : f32
    %479 = vector.broadcast %cst_149 : f32 to vector<2x128xf32>
    %480 = arith.mulf %479, %478 : vector<2x128xf32>
    %cst_150 = arith.constant 5.000000e-01 : f32
    %481 = vector.broadcast %cst_150 : f32 to vector<2x128xf32>
    %482 = arith.addf %480, %481 : vector<2x128xf32>
    %483 = vector.extract_strided_slice %472 {offsets = [0, 256], sizes = [2, 128], strides = [1, 1]} : vector<2x512xf32> to vector<2x128xf32>
    %484 = vector.extract_strided_slice %472 {offsets = [0, 384], sizes = [2, 128], strides = [1, 1]} : vector<2x512xf32> to vector<2x128xf32>
    %cst_151 = arith.constant 5.000000e-01 : f32
    %485 = vector.broadcast %cst_151 : f32 to vector<2x128xf32>
    %486 = arith.mulf %485, %484 : vector<2x128xf32>
    %cst_152 = arith.constant 5.000000e-01 : f32
    %487 = vector.broadcast %cst_152 : f32 to vector<2x128xf32>
    %488 = arith.addf %486, %487 : vector<2x128xf32>
    %489 = arith.mulf %482, %431 : vector<2x128xf32>
    %490 = arith.mulf %477, %483 : vector<2x128xf32>
    %491 = arith.addf %489, %490 : vector<2x128xf32>
    %492 = math.tanh %491 : vector<2x128xf32>
    %493 = arith.mulf %488, %492 : vector<2x128xf32>
    %c8_i32_153 = arith.constant 8 : i32
    %494 = arith.muli %c0_i32_16, %c8_i32_153 : i32
    %495 = arith.addi %12, %494 : i32
    %c7_i32_154 = arith.constant 7 : i32
    %496 = arith.addi %495, %c7_i32_154 : i32
    %c7_i32_155 = arith.constant 7 : i32
    %497 = arith.cmpi eq, %496, %c7_i32_155 : i32
    %498 = arith.extui %497 : i1 to i32
    %c0_i32_156 = arith.constant 0 : i32
    %499 = arith.cmpi ne, %498, %c0_i32_156 : i32
    scf.if %499 {
      %c0_168 = arith.constant 0 : index
      %c0_169 = arith.constant 0 : index
      %507 = vector.load %arg14[%c0_168, %c0_169] : memref<2x128xf32, #tpu.memory_space<vmem>>, vector<2x128xf32>
      tpu.vector_store %arg14[%c0_168, %c0_169], %493 {strides = array<i32>} : memref<2x128xf32, #tpu.memory_space<vmem>>, vector<2x128xf32>,
      %c0_170 = arith.constant 0 : index
      %c0_171 = arith.constant 0 : index
      %508 = vector.load %arg15[%c0_170, %c0_171] : memref<2x128xf32, #tpu.memory_space<vmem>>, vector<2x128xf32>
      tpu.vector_store %arg15[%c0_170, %c0_171], %491 {strides = array<i32>} : memref<2x128xf32, #tpu.memory_space<vmem>>, vector<2x128xf32>,
    } else {
    }
    %c1_i32_157 = arith.constant 1 : i32
    %c0_158 = arith.constant 0 : index
    %c0_159 = arith.constant 0 : index
    %500 = vector.load %arg10[%c0_158, %c0_159] : memref<2x128xf32, #tpu.memory_space<vmem>>, vector<2x128xf32>
    tpu.vector_store %arg10[%c0_158, %c0_159], %467 {strides = array<i32>} : memref<2x128xf32, #tpu.memory_space<vmem>>, vector<2x128xf32>,
    %c0_160 = arith.constant 0 : index
    %c0_161 = arith.constant 0 : index
    %501 = vector.load %arg11[%c0_160, %c0_161] : memref<2x128xf32, #tpu.memory_space<vmem>>, vector<2x128xf32>
    tpu.vector_store %arg11[%c0_160, %c0_161], %465 {strides = array<i32>} : memref<2x128xf32, #tpu.memory_space<vmem>>, vector<2x128xf32>,
    %c0_162 = arith.constant 0 : index
    %c0_163 = arith.constant 0 : index
    %502 = vector.load %arg12[%c0_162, %c0_163] : memref<2x128xf32, #tpu.memory_space<vmem>>, vector<2x128xf32>
    tpu.vector_store %arg12[%c0_162, %c0_163], %493 {strides = array<i32>} : memref<2x128xf32, #tpu.memory_space<vmem>>, vector<2x128xf32>,
    %c0_164 = arith.constant 0 : index
    %c0_165 = arith.constant 0 : index
    %503 = vector.load %arg13[%c0_164, %c0_165] : memref<2x128xf32, #tpu.memory_space<vmem>>, vector<2x128xf32>
    tpu.vector_store %arg13[%c0_164, %c0_165], %491 {strides = array<i32>} : memref<2x128xf32, #tpu.memory_space<vmem>>, vector<2x128xf32>,
    %c0_i32_166 = arith.constant 0 : i32
    %504 = arith.cmpi eq, %arg0, %c0_i32_166 : i32
    %505 = arith.extui %504 : i1 to i32
    %c0_i32_167 = arith.constant 0 : i32
    %506 = arith.cmpi ne, %505, %c0_i32_167 : i32
    scf.if %506 {
      %c0_168 = arith.constant 0 : index
      %c0_169 = arith.constant 0 : index
      %507 = vector.load %arg14[%c0_168, %c0_169] : memref<2x128xf32, #tpu.memory_space<vmem>>, vector<2x128xf32>
      %c0_170 = arith.constant 0 : index
      %c0_171 = arith.constant 0 : index
      %508 = vector.load %arg6[%c0_170, %c0_171] : memref<128x128xf32, #tpu.memory_space<vmem>>, vector<128x128xf32>
      %cst_172 = arith.constant dense<0.000000e+00> : vector<2x128xf32>
      %509 = tpu.matmul %507, %508, %cst_172 {dimension_numbers = #tpu.dot_dimension_numbers<[1], [0], [0], [1], [0, 0, 1, 1], [], []>} : vector<2x128xf32>, vector<128x128xf32>, vector<2x128xf32> -> vector<2x128xf32>
      %c0_173 = arith.constant 0 : index
      %c0_174 = arith.constant 0 : index
      %510 = vector.load %arg7[%c0_173, %c0_174] : memref<1x128xf32, #tpu.memory_space<vmem>>, vector<1x128xf32>
      %511 = vector.broadcast %510 : vector<1x128xf32> to vector<2x128xf32>
      %512 = arith.addf %509, %511 : vector<2x128xf32>
      %c0_175 = arith.constant 0 : index
      %c0_176 = arith.constant 0 : index
      %513 = vector.load %arg8[%c0_175, %c0_176] : memref<2x128xf32, #tpu.memory_space<vmem>>, vector<2x128xf32>
      tpu.vector_store %arg8[%c0_175, %c0_176], %512 {strides = array<i32>} : memref<2x128xf32, #tpu.memory_space<vmem>>, vector<2x128xf32>,
      %c0_177 = arith.constant 0 : index
      %c0_178 = arith.constant 0 : index
      %514 = vector.load %arg15[%c0_177, %c0_178] : memref<2x128xf32, #tpu.memory_space<vmem>>, vector<2x128xf32>
      %c0_179 = arith.constant 0 : index
      %c0_180 = arith.constant 0 : index
      %515 = vector.load %arg9[%c0_179, %c0_180] : memref<2x128xf32, #tpu.memory_space<vmem>>, vector<2x128xf32>
      tpu.vector_store %arg9[%c0_179, %c0_180], %514 {strides = array<i32>} : memref<2x128xf32, #tpu.memory_space<vmem>>, vector<2x128xf32>,
    } else {
    }
    return
  }
  func.func @transform_0(%arg0: i32) -> (i32, i32, i32, i32) {
    %c0_i32 = arith.constant 0 : i32
    %c0_i32_0 = arith.constant 0 : i32
    %c0_i32_1 = arith.constant 0 : i32
    %c0_i32_2 = arith.constant 0 : i32
    return %c0_i32, %arg0, %c0_i32_0, %c0_i32_1 : i32, i32, i32, i32
  }
  func.func @transform_1(%arg0: i32) -> (i32, i32) {
    %c0_i32 = arith.constant 0 : i32
    %c0_i32_0 = arith.constant 0 : i32
    %c0_i32_1 = arith.constant 0 : i32
    return %c0_i32, %c0_i32_0 : i32, i32
  }
  func.func @transform_2(%arg0: i32) -> (i32, i32) {
    %c0_i32 = arith.constant 0 : i32
    %c0_i32_0 = arith.constant 0 : i32
    %c0_i32_1 = arith.constant 0 : i32
    return %c0_i32, %c0_i32_0 : i32, i32
  }
  func.func @transform_3(%arg0: i32) -> (i32, i32) {
    %c0_i32 = arith.constant 0 : i32
    %c0_i32_0 = arith.constant 0 : i32
    %c0_i32_1 = arith.constant 0 : i32
    return %c0_i32, %c0_i32_0 : i32, i32
  }
  func.func @transform_4(%arg0: i32) -> (i32, i32) {
    %c0_i32 = arith.constant 0 : i32
    %c0_i32_0 = arith.constant 0 : i32
    %c0_i32_1 = arith.constant 0 : i32
    return %c0_i32, %c0_i32_0 : i32, i32
  }
  func.func @transform_5(%arg0: i32) -> (i32, i32) {
    %c0_i32 = arith.constant 0 : i32
    %c0_i32_0 = arith.constant 0 : i32
    %c0_i32_1 = arith.constant 0 : i32
    return %c0_i32, %c0_i32_0 : i32, i32
  }
  func.func @transform_6(%arg0: i32) -> (i32, i32) {
    %c0_i32 = arith.constant 0 : i32
    %c0_i32_0 = arith.constant 0 : i32
    %c0_i32_1 = arith.constant 0 : i32
    return %c0_i32, %c0_i32_0 : i32, i32
  }
  func.func @transform_7(%arg0: i32) -> (i32, i32) {
    %c0_i32 = arith.constant 0 : i32
    %c0_i32_0 = arith.constant 0 : i32
    %c0_i32_1 = arith.constant 0 : i32
    return %c0_i32, %c0_i32_0 : i32, i32
  }
  func.func @transform_8(%arg0: i32) -> (i32, i32) {
    %c0_i32 = arith.constant 0 : i32
    %c0_i32_0 = arith.constant 0 : i32
    %c0_i32_1 = arith.constant 0 : i32
    return %c0_i32, %c0_i32_0 : i32, i32
  }
}

</mosaic_0001>

<llo_original>
// kernel: lstm_df_forward.2
$region0: #{lstm_df_forward.2}
  #allocation0 [shape = 'u32[]', space=smem, size = 0x4, offset = 0x4, fixed_abs, tag = 'smem constant byte address 0x4 - core index']
  #allocation1 [shape = 'u32[144,128]{1,0:T(1,128)}', space=vmem, size = 0x12000, scoped, tag = 'internal scratch']
  #allocation2 [shape = 'f32[1,128]{1,0:T(1,128)}', space=vmem, size = 0x200, scoped, tag = 'scratch operand']
  #allocation3 [shape = 'f32[1,128]{1,0:T(1,128)}', space=vmem, size = 0x200, scoped, tag = 'scratch operand']
  #allocation4 [shape = 'f32[8,128]{1,0:T(8,128)}', space=vmem, size = 0x1000, scoped, tag = 'scratch operand']
  %s0 = inlined_call_operand.vmem [shape: f32[2,8,512], index: 0, kind: input, shape index: {}]
  %s1 = inlined_call_operand.vmem [shape: bf16[128,512], index: 1, kind: input, shape index: {}]
  %s2 = inlined_call_operand.vmem [shape: f32[2,8,128], index: 2, kind: output, shape index: {}]
  %s3 = sld [smem:[#allocation0]]
  $region29: #{lstm_df_forward.2} parent=0
    _
  %s5 = ssub.s32 1, %s3
  %s6 = scalar_select 0, %s5, %s3
  // Predicated region
  $region2: #{lstm_df_forward.2} parent=0 // pred_check
    _
  $region3: #{lstm_df_forward.2} parent=0 // pred_check_branch
    %8 = sbr.rel (0) target = $region5
  $region4: #{lstm_df_forward.2} parent=0 // pred_region
    _
  $region5: #{lstm_df_forward.2} parent=0 // pred_fallthru
    _
  // Predicated region
  $region6: #{lstm_df_forward.2} parent=0 // pred_check
    _
  $region7: #{lstm_df_forward.2} parent=0 // pred_check_branch
    %10 = sbr.rel (0) target = $region9
  $region8: #{lstm_df_forward.2} parent=0 // pred_region
    _
  $region9: #{lstm_df_forward.2} parent=0 // pred_fallthru
    _
  %p12 = scmp.eq.s32.totalorder 0, 0
  // Predicated region
  $region10: #{lstm_df_forward.2} parent=0 // pred_check
    %p13 = pneg %p12
  $region11: #{lstm_df_forward.2} parent=0 // pred_check_branch
    %15 = sbr.rel (%p13) target = $region13
  $region12: #{lstm_df_forward.2} parent=0 // pred_region
    %16 = vst [vmem:[#allocation2] sm:$0x1] 0.0
    %17 = vst [vmem:[#allocation3] sm:$0x1] 0.0
  $region13: #{lstm_df_forward.2} parent=0 // pred_fallthru
    _
  %v18 = vld [vmem:[%s1] sm:$0xff]
  %v19 = vld [vmem:[%s1 + $0x8] sm:$0xff]
  %v20 = vld [vmem:[%s1 + $0x10] sm:$0xff]
  %v21 = vld [vmem:[%s1 + $0x18] sm:$0xff]
  %v22 = vld [vmem:[%s1 + $0x20] sm:$0xff]
  %v23 = vld [vmem:[%s1 + $0x28] sm:$0xff]
  %v24 = vld [vmem:[%s1 + $0x30] sm:$0xff]
  %v25 = vld [vmem:[%s1 + $0x38] sm:$0xff]
  %v26 = vld [vmem:[%s1 + $0x40] sm:$0xff]
  %v27 = vld [vmem:[%s1 + $0x48] sm:$0xff]
  %v28 = vld [vmem:[%s1 + $0x50] sm:$0xff]
  %v29 = vld [vmem:[%s1 + $0x58] sm:$0xff]
  %v30 = vld [vmem:[%s1 + $0x60] sm:$0xff]
  %v31 = vld [vmem:[%s1 + $0x68] sm:$0xff]
  %v32 = vld [vmem:[%s1 + $0x70] sm:$0xff]
  %v33 = vld [vmem:[%s1 + $0x78] sm:$0xff]
  %v34 = vld [vmem:[%s1 + $0x80] sm:$0xff]
  %v35 = vld [vmem:[%s1 + $0x88] sm:$0xff]
  %v36 = vld [vmem:[%s1 + $0x90] sm:$0xff]
  %v37 = vld [vmem:[%s1 + $0x98] sm:$0xff]
  %v38 = vld [vmem:[%s1 + $0xa0] sm:$0xff]
  %v39 = vld [vmem:[%s1 + $0xa8] sm:$0xff]
  %v40 = vld [vmem:[%s1 + $0xb0] sm:$0xff]
  %v41 = vld [vmem:[%s1 + $0xb8] sm:$0xff]
  %v42 = vld [vmem:[%s1 + $0xc0] sm:$0xff]
  %v43 = vld [vmem:[%s1 + $0xc8] sm:$0xff]
  %v44 = vld [vmem:[%s1 + $0xd0] sm:$0xff]
  %v45 = vld [vmem:[%s1 + $0xd8] sm:$0xff]
  %v46 = vld [vmem:[%s1 + $0xe0] sm:$0xff]
  %v47 = vld [vmem:[%s1 + $0xe8] sm:$0xff]
  %v48 = vld [vmem:[%s1 + $0xf0] sm:$0xff]
  %v49 = vld [vmem:[%s1 + $0xf8] sm:$0xff]
  %v50 = vld [vmem:[#allocation2] sm:$0x1]
  %v51 = vld [vmem:[#allocation3] sm:$0x1]
  loop: start=0, step=1, limit=2
  $region14: #{lstm_df_forward.2} parent=0 // loop_pre_header
    _
  $region15: #{lstm_df_forward.2} parent=0 // loop_header
    %s53 = sphi 0, %s57
    %p54 = scmp.ge.s32.totalorder %s53, 2
    %v58 = vphi %v50, %v1184
    %v59 = vphi %v51, %v1187
  $region16: #{lstm_df_forward.2} parent=0 // loop_header_branch
    %56 = sbr.rel (%p54) target = $region20
  $region17: #{lstm_df_forward.2} parent=0 // loop_body
    %s60 = smul.u32 %s53, 4
    %s61 = smul.addr %s60, 8
    %s62 = scalar_lea.vmem %s0, %s61
    %v63 = vld [vmem:[%s62] sm:$0xff]
    %v64 = vld [vmem:[%s62 + $0x8] sm:$0xff]
    %v65 = vld [vmem:[%s62 + $0x10] sm:$0xff]
    %v66 = vld [vmem:[%s62 + $0x18] sm:$0xff]
    %v67 = vpack.c.bf16 %v58, %v58
    %v100 = vunpack.c.l.b16 %v18
    %v101 = vunpack.c.h.b16 %v18
    %v102 = vunpack.c.l.b16 %v19
    %v103 = vunpack.c.h.b16 %v19
    %v104 = vunpack.c.l.b16 %v20
    %v105 = vunpack.c.h.b16 %v20
    %v106 = vunpack.c.l.b16 %v21
    %v107 = vunpack.c.h.b16 %v21
    %v108 = vunpack.c.l.b16 %v22
    %v109 = vunpack.c.h.b16 %v22
    %v110 = vunpack.c.l.b16 %v23
    %v111 = vunpack.c.h.b16 %v23
    %v112 = vunpack.c.l.b16 %v24
    %v113 = vunpack.c.h.b16 %v24
    %v114 = vunpack.c.l.b16 %v25
    %v115 = vunpack.c.h.b16 %v25
    %v116 = vunpack.c.l.b16 %v26
    %v117 = vunpack.c.h.b16 %v26
    %v118 = vunpack.c.l.b16 %v27
    %v119 = vunpack.c.h.b16 %v27
    %v120 = vunpack.c.l.b16 %v28
    %v121 = vunpack.c.h.b16 %v28
    %v122 = vunpack.c.l.b16 %v29
    %v123 = vunpack.c.h.b16 %v29
    %v124 = vunpack.c.l.b16 %v30
    %v125 = vunpack.c.h.b16 %v30
    %v126 = vunpack.c.l.b16 %v31
    %v127 = vunpack.c.h.b16 %v31
    %v128 = vunpack.c.l.b16 %v32
    %v129 = vunpack.c.h.b16 %v32
    %v130 = vunpack.c.l.b16 %v33
    %v131 = vunpack.c.h.b16 %v33
    %v132 = vunpack.c.l.b16 %v34
    %v133 = vunpack.c.h.b16 %v34
    %v134 = vunpack.c.l.b16 %v35
    %v135 = vunpack.c.h.b16 %v35
    %v136 = vunpack.c.l.b16 %v36
    %v137 = vunpack.c.h.b16 %v36
    %v138 = vunpack.c.l.b16 %v37
    %v139 = vunpack.c.h.b16 %v37
    %v140 = vunpack.c.l.b16 %v38
    %v141 = vunpack.c.h.b16 %v38
    %v142 = vunpack.c.l.b16 %v39
    %v143 = vunpack.c.h.b16 %v39
    %v144 = vunpack.c.l.b16 %v40
    %v145 = vunpack.c.h.b16 %v40
    %v146 = vunpack.c.l.b16 %v41
    %v147 = vunpack.c.h.b16 %v41
    %v148 = vunpack.c.l.b16 %v42
    %v149 = vunpack.c.h.b16 %v42
    %v150 = vunpack.c.l.b16 %v43
    %v151 = vunpack.c.h.b16 %v43
    %v152 = vunpack.c.l.b16 %v44
    %v153 = vunpack.c.h.b16 %v44
    %v154 = vunpack.c.l.b16 %v45
    %v155 = vunpack.c.h.b16 %v45
    %v156 = vunpack.c.l.b16 %v46
    %v157 = vunpack.c.h.b16 %v46
    %v158 = vunpack.c.l.b16 %v47
    %v159 = vunpack.c.h.b16 %v47
    %v160 = vunpack.c.l.b16 %v48
    %v161 = vunpack.c.h.b16 %v48
    %v162 = vunpack.c.l.b16 %v49
    %v163 = vunpack.c.h.b16 %v49
    %v164 = vpack.c.b16 %v104, %v100
    %v165 = vpack.c.b16 %v105, %v101
    %v166 = vpack.c.b16 %v106, %v102
    %v167 = vpack.c.b16 %v107, %v103
    %v168 = vpack.c.b16 %v112, %v108
    %v169 = vpack.c.b16 %v113, %v109
    %v170 = vpack.c.b16 %v114, %v110
    %v171 = vpack.c.b16 %v115, %v111
    %v172 = vpack.c.b16 %v120, %v116
    %v173 = vpack.c.b16 %v121, %v117
    %v174 = vpack.c.b16 %v122, %v118
    %v175 = vpack.c.b16 %v123, %v119
    %v176 = vpack.c.b16 %v128, %v124
    %v177 = vpack.c.b16 %v129, %v125
    %v178 = vpack.c.b16 %v130, %v126
    %v179 = vpack.c.b16 %v131, %v127
    %v180 = vpack.c.b16 %v136, %v132
    %v181 = vpack.c.b16 %v137, %v133
    %v182 = vpack.c.b16 %v138, %v134
    %v183 = vpack.c.b16 %v139, %v135
    %v184 = vpack.c.b16 %v144, %v140
    %v185 = vpack.c.b16 %v145, %v141
    %v186 = vpack.c.b16 %v146, %v142
    %v187 = vpack.c.b16 %v147, %v143
    %v188 = vpack.c.b16 %v152, %v148
    %v189 = vpack.c.b16 %v153, %v149
    %v190 = vpack.c.b16 %v154, %v150
    %v191 = vpack.c.b16 %v155, %v151
    %v192 = vpack.c.b16 %v160, %v156
    %v193 = vpack.c.b16 %v161, %v157
    %v194 = vpack.c.b16 %v162, %v158
    %v195 = vpack.c.b16 %v163, %v159
    %228 = vmatprep.subr.bf16.mxu0 %v165
    %229 = vmatpush1.bf16.msra.mxu0 %v164
    %230 = vmatprep.subr.bf16.mxu0 %v169
    %231 = vmatpush1.bf16.msra.mxu0 %v168
    %232 = vmatprep.subr.bf16.mxu0 %v173
    %233 = vmatpush1.bf16.msra.mxu0 %v172
    %234 = vmatprep.subr.bf16.mxu0 %v177
    %235 = vmatpush1.bf16.msra.mxu0 %v176
    %236 = vmatprep.subr.bf16.mxu0 %v181
    %237 = vmatpush1.bf16.msra.mxu0 %v180
    %238 = vmatprep.subr.bf16.mxu0 %v185
    %239 = vmatpush1.bf16.msra.mxu0 %v184
    %240 = vmatprep.subr.bf16.mxu0 %v189
    %241 = vmatpush1.bf16.msra.mxu0 %v188
    %242 = vmatprep.subr.bf16.mxu0 %v193
    %243 = vmatpush1.bf16.msra.mxu0 %v192
    %244 = vmatprep.subr.bf16.mxu0 0
    %245 = vmatpush1.bf16.msra.mxu0 0
    %246 = vmatprep.subr.bf16.mxu0 0
    %247 = vmatpush1.bf16.msra.mxu0 0
    %248 = vmatprep.subr.bf16.mxu0 0
    %249 = vmatpush1.bf16.msra.mxu0 0
    %250 = vmatprep.subr.bf16.mxu0 0
    %251 = vmatpush1.bf16.msra.mxu0 0
    %252 = vmatprep.subr.bf16.mxu0 0
    %253 = vmatpush1.bf16.msra.mxu0 0
    %254 = vmatprep.subr.bf16.mxu0 0
    %255 = vmatpush1.bf16.msra.mxu0 0
    %256 = vmatprep.subr.bf16.mxu0 0
    %257 = vmatpush1.bf16.msra.mxu0 0
    %258 = vmatprep.subr.bf16.mxu0 0
    %259 = vmatpush1.bf16.msra.mxu0 0
    %260 = vmatprep.mubr.bf16.mxu0 0
    %261 = vmatmul.mubr.bf16.gmra.mrb[0].mxu0 %v67
    %v262 = vpop.f32.mrb[0].mxu0
    %v263 = vadd.f32 0.0, %v262
    %v264 = vpop.f32.mrb[0].mxu0
    %v265 = vadd.f32 0.0, %v264
    %v266 = vpop.f32.mrb[0].mxu0
    %v267 = vpop.f32.mrb[0].mxu0
    %268 = vdwg.mxu0
    %269 = vmatprep.subr.bf16.mxu0 %v167
    %270 = vmatpush1.bf16.msra.mxu0 %v166
    %271 = vmatprep.subr.bf16.mxu0 %v171
    %272 = vmatpush1.bf16.msra.mxu0 %v170
    %273 = vmatprep.subr.bf16.mxu0 %v175
    %274 = vmatpush1.bf16.msra.mxu0 %v174
    %275 = vmatprep.subr.bf16.mxu0 %v179
    %276 = vmatpush1.bf16.msra.mxu0 %v178
    %277 = vmatprep.subr.bf16.mxu0 %v183
    %278 = vmatpush1.bf16.msra.mxu0 %v182
    %279 = vmatprep.subr.bf16.mxu0 %v187
    %280 = vmatpush1.bf16.msra.mxu0 %v186
    %281 = vmatprep.subr.bf16.mxu0 %v191
    %282 = vmatpush1.bf16.msra.mxu0 %v190
    %283 = vmatprep.subr.bf16.mxu0 %v195
    %284 = vmatpush1.bf16.msra.mxu0 %v194
    %285 = vmatprep.subr.bf16.mxu0 0
    %286 = vmatpush1.bf16.msra.mxu0 0
    %287 = vmatprep.subr.bf16.mxu0 0
    %288 = vmatpush1.bf16.msra.mxu0 0
    %289 = vmatprep.subr.bf16.mxu0 0
    %290 = vmatpush1.bf16.msra.mxu0 0
    %291 = vmatprep.subr.bf16.mxu0 0
    %292 = vmatpush1.bf16.msra.mxu0 0
    %293 = vmatprep.subr.bf16.mxu0 0
    %294 = vmatpush1.bf16.msra.mxu0 0
    %295 = vmatprep.subr.bf16.mxu0 0
    %296 = vmatpush1.bf16.msra.mxu0 0
    %297 = vmatprep.subr.bf16.mxu0 0
    %298 = vmatpush1.bf16.msra.mxu0 0
    %299 = vmatprep.subr.bf16.mxu0 0
    %300 = vmatpush1.bf16.msra.mxu0 0
    %301 = vmatprep.mubr.bf16.mxu0 0
    %302 = vmatmul.mubr.bf16.gmra.mrb[0].mxu0 %v67
    %v303 = vpop.f32.mrb[0].mxu0
    %v304 = vadd.f32 0.0, %v303
    %v305 = vpop.f32.mrb[0].mxu0
    %v306 = vadd.f32 0.0, %v305
    %v307 = vpop.f32.mrb[0].mxu0
    %v308 = vpop.f32.mrb[0].mxu0
    %309 = vdwg.mxu0
    %v310 = vadd.f32 %v63, %v263
    %v311 = vadd.f32 %v64, %v265
    %v312 = vadd.f32 %v65, %v304
    %v313 = vadd.f32 %v66, %v306
    %v314 = vtanh.pop %v310
    %v315 = vtanh.pop %v311
    %v316 = vtanh.pop %v312
    %v317 = vtanh.pop %v313
    %v318 = vmul.f32 %v314, 0.5
    %v319 = vadd.f32 %v318, 0.5
    %v320 = vmul.f32 %v315, 0.5
    %v321 = vadd.f32 %v320, 0.5
    %v322 = vmul.f32 %v317, 0.5
    %v323 = vadd.f32 %v322, 0.5
    %v324 = vmul.f32 %v321, %v59
    %v325 = vmul.f32 %v319, %v316
    %v326 = vadd.f32 %v324, %v325
    %v327 = vtanh.pop %v326
    %v328 = vmul.f32 %v323, %v327
    %329 = vst [vmem:[#allocation4] sm:$0x1] %v328
    %v330 = vpack.c.bf16 %v328, %v328
    %331 = vmatprep.subr.bf16.mxu0 %v165
    %332 = vmatpush1.bf16.msra.mxu0 %v164
    %333 = vmatprep.subr.bf16.mxu0 %v169
    %334 = vmatpush1.bf16.msra.mxu0 %v168
    %335 = vmatprep.subr.bf16.mxu0 %v173
    %336 = vmatpush1.bf16.msra.mxu0 %v172
    %337 = vmatprep.subr.bf16.mxu0 %v177
    %338 = vmatpush1.bf16.msra.mxu0 %v176
    %339 = vmatprep.subr.bf16.mxu0 %v181
    %340 = vmatpush1.bf16.msra.mxu0 %v180
    %341 = vmatprep.subr.bf16.mxu0 %v185
    %342 = vmatpush1.bf16.msra.mxu0 %v184
    %343 = vmatprep.subr.bf16.mxu0 %v189
    %344 = vmatpush1.bf16.msra.mxu0 %v188
    %345 = vmatprep.subr.bf16.mxu0 %v193
    %346 = vmatpush1.bf16.msra.mxu0 %v192
    %347 = vmatprep.subr.bf16.mxu0 0
    %348 = vmatpush1.bf16.msra.mxu0 0
    %349 = vmatprep.subr.bf16.mxu0 0
    %350 = vmatpush1.bf16.msra.mxu0 0
    %351 = vmatprep.subr.bf16.mxu0 0
    %352 = vmatpush1.bf16.msra.mxu0 0
    %353 = vmatprep.subr.bf16.mxu0 0
    %354 = vmatpush1.bf16.msra.mxu0 0
    %355 = vmatprep.subr.bf16.mxu0 0
    %356 = vmatpush1.bf16.msra.mxu0 0
    %357 = vmatprep.subr.bf16.mxu0 0
    %358 = vmatpush1.bf16.msra.mxu0 0
    %359 = vmatprep.subr.bf16.mxu0 0
    %360 = vmatpush1.bf16.msra.mxu0 0
    %361 = vmatprep.subr.bf16.mxu0 0
    %362 = vmatpush1.bf16.msra.mxu0 0
    %363 = vmatprep.mubr.bf16.mxu0 0
    %364 = vmatmul.mubr.bf16.gmra.mrb[0].mxu0 %v330
    %v365 = vpop.f32.mrb[0].mxu0
    %v366 = vadd.f32 0.0, %v365
    %v367 = vpop.f32.mrb[0].mxu0
    %v368 = vadd.f32 0.0, %v367
    %v369 = vpop.f32.mrb[0].mxu0
    %v370 = vpop.f32.mrb[0].mxu0
    %371 = vdwg.mxu0
    %372 = vmatprep.subr.bf16.mxu0 %v167
    %373 = vmatpush1.bf16.msra.mxu0 %v166
    %374 = vmatprep.subr.bf16.mxu0 %v171
    %375 = vmatpush1.bf16.msra.mxu0 %v170
    %376 = vmatprep.subr.bf16.mxu0 %v175
    %377 = vmatpush1.bf16.msra.mxu0 %v174
    %378 = vmatprep.subr.bf16.mxu0 %v179
    %379 = vmatpush1.bf16.msra.mxu0 %v178
    %380 = vmatprep.subr.bf16.mxu0 %v183
    %381 = vmatpush1.bf16.msra.mxu0 %v182
    %382 = vmatprep.subr.bf16.mxu0 %v187
    %383 = vmatpush1.bf16.msra.mxu0 %v186
    %384 = vmatprep.subr.bf16.mxu0 %v191
    %385 = vmatpush1.bf16.msra.mxu0 %v190
    %386 = vmatprep.subr.bf16.mxu0 %v195
    %387 = vmatpush1.bf16.msra.mxu0 %v194
    %388 = vmatprep.subr.bf16.mxu0 0
    %389 = vmatpush1.bf16.msra.mxu0 0
    %390 = vmatprep.subr.bf16.mxu0 0
    %391 = vmatpush1.bf16.msra.mxu0 0
    %392 = vmatprep.subr.bf16.mxu0 0
    %393 = vmatpush1.bf16.msra.mxu0 0
    %394 = vmatprep.subr.bf16.mxu0 0
    %395 = vmatpush1.bf16.msra.mxu0 0
    %396 = vmatprep.subr.bf16.mxu0 0
    %397 = vmatpush1.bf16.msra.mxu0 0
    %398 = vmatprep.subr.bf16.mxu0 0
    %399 = vmatpush1.bf16.msra.mxu0 0
    %400 = vmatprep.subr.bf16.mxu0 0
    %401 = vmatpush1.bf16.msra.mxu0 0
    %402 = vmatprep.subr.bf16.mxu0 0
    %403 = vmatpush1.bf16.msra.mxu0 0
    %404 = vmatprep.mubr.bf16.mxu0 0
    %405 = vmatmul.mubr.bf16.gmra.mrb[0].mxu0 %v330
    %v406 = vpop.f32.mrb[0].mxu0
    %v407 = vadd.f32 0.0, %v406
    %v408 = vpop.f32.mrb[0].mxu0
    %v409 = vadd.f32 0.0, %v408
    %v410 = vpop.f32.mrb[0].mxu0
    %v411 = vpop.f32.mrb[0].mxu0
    %412 = vdwg.mxu0
    %v417 = vrot.slane %v366, 7
    %v418 = vrot.slane %v368, 7
    %v419 = vrot.slane %v407, 7
    %v420 = vrot.slane %v409, 7
    %v425 = vadd.f32 %v63, %v417
    %v426 = vadd.f32 %v64, %v418
    %v427 = vadd.f32 %v65, %v419
    %v428 = vadd.f32 %v66, %v420
    %v429 = vtanh.pop %v425
    %v430 = vtanh.pop %v426
    %v431 = vtanh.pop %v427
    %v432 = vtanh.pop %v428
    %v433 = vmul.f32 %v429, 0.5
    %v434 = vadd.f32 %v433, 0.5
    %v435 = vmul.f32 %v430, 0.5
    %v436 = vadd.f32 %v435, 0.5
    %v437 = vmul.f32 %v432, 0.5
    %v438 = vadd.f32 %v437, 0.5
    %v440 = vrot.slane %v326, 7
    %v442 = vmul.f32 %v436, %v440
    %v443 = vmul.f32 %v434, %v431
    %v444 = vadd.f32 %v442, %v443
    %v445 = vtanh.pop %v444
    %v446 = vmul.f32 %v438, %v445
    %447 = vst [vmem:[#allocation4] sm:$0x2] %v446
    %v448 = vpack.c.bf16 %v446, %v446
    %v450 = vshrl.u32 %v448, 16
    %453 = vmatprep.subr.bf16.mxu0 %v165
    %454 = vmatpush1.bf16.msra.mxu0 %v164
    %455 = vmatprep.subr.bf16.mxu0 %v169
    %456 = vmatpush1.bf16.msra.mxu0 %v168
    %457 = vmatprep.subr.bf16.mxu0 %v173
    %458 = vmatpush1.bf16.msra.mxu0 %v172
    %459 = vmatprep.subr.bf16.mxu0 %v177
    %460 = vmatpush1.bf16.msra.mxu0 %v176
    %461 = vmatprep.subr.bf16.mxu0 %v181
    %462 = vmatpush1.bf16.msra.mxu0 %v180
    %463 = vmatprep.subr.bf16.mxu0 %v185
    %464 = vmatpush1.bf16.msra.mxu0 %v184
    %465 = vmatprep.subr.bf16.mxu0 %v189
    %466 = vmatpush1.bf16.msra.mxu0 %v188
    %467 = vmatprep.subr.bf16.mxu0 %v193
    %468 = vmatpush1.bf16.msra.mxu0 %v192
    %469 = vmatprep.subr.bf16.mxu0 0
    %470 = vmatpush1.bf16.msra.mxu0 0
    %471 = vmatprep.subr.bf16.mxu0 0
    %472 = vmatpush1.bf16.msra.mxu0 0
    %473 = vmatprep.subr.bf16.mxu0 0
    %474 = vmatpush1.bf16.msra.mxu0 0
    %475 = vmatprep.subr.bf16.mxu0 0
    %476 = vmatpush1.bf16.msra.mxu0 0
    %477 = vmatprep.subr.bf16.mxu0 0
    %478 = vmatpush1.bf16.msra.mxu0 0
    %479 = vmatprep.subr.bf16.mxu0 0
    %480 = vmatpush1.bf16.msra.mxu0 0
    %481 = vmatprep.subr.bf16.mxu0 0
    %482 = vmatpush1.bf16.msra.mxu0 0
    %483 = vmatprep.subr.bf16.mxu0 0
    %484 = vmatpush1.bf16.msra.mxu0 0
    %485 = vmatprep.mubr.bf16.mxu0 0
    %486 = vmatmul.mubr.bf16.gmra.mrb[0].mxu0 %v450
    %v487 = vpop.f32.mrb[0].mxu0
    %v488 = vadd.f32 0.0, %v487
    %v489 = vpop.f32.mrb[0].mxu0
    %v490 = vadd.f32 0.0, %v489
    %v491 = vpop.f32.mrb[0].mxu0
    %v492 = vpop.f32.mrb[0].mxu0
    %493 = vdwg.mxu0
    %494 = vmatprep.subr.bf16.mxu0 %v167
    %495 = vmatpush1.bf16.msra.mxu0 %v166
    %496 = vmatprep.subr.bf16.mxu0 %v171
    %497 = vmatpush1.bf16.msra.mxu0 %v170
    %498 = vmatprep.subr.bf16.mxu0 %v175
    %499 = vmatpush1.bf16.msra.mxu0 %v174
    %500 = vmatprep.subr.bf16.mxu0 %v179
    %501 = vmatpush1.bf16.msra.mxu0 %v178
    %502 = vmatprep.subr.bf16.mxu0 %v183
    %503 = vmatpush1.bf16.msra.mxu0 %v182
    %504 = vmatprep.subr.bf16.mxu0 %v187
    %505 = vmatpush1.bf16.msra.mxu0 %v186
    %506 = vmatprep.subr.bf16.mxu0 %v191
    %507 = vmatpush1.bf16.msra.mxu0 %v190
    %508 = vmatprep.subr.bf16.mxu0 %v195
    %509 = vmatpush1.bf16.msra.mxu0 %v194
    %510 = vmatprep.subr.bf16.mxu0 0
    %511 = vmatpush1.bf16.msra.mxu0 0
    %512 = vmatprep.subr.bf16.mxu0 0
    %513 = vmatpush1.bf16.msra.mxu0 0
    %514 = vmatprep.subr.bf16.mxu0 0
    %515 = vmatpush1.bf16.msra.mxu0 0
    %516 = vmatprep.subr.bf16.mxu0 0
    %517 = vmatpush1.bf16.msra.mxu0 0
    %518 = vmatprep.subr.bf16.mxu0 0
    %519 = vmatpush1.bf16.msra.mxu0 0
    %520 = vmatprep.subr.bf16.mxu0 0
    %521 = vmatpush1.bf16.msra.mxu0 0
    %522 = vmatprep.subr.bf16.mxu0 0
    %523 = vmatpush1.bf16.msra.mxu0 0
    %524 = vmatprep.subr.bf16.mxu0 0
    %525 = vmatpush1.bf16.msra.mxu0 0
    %526 = vmatprep.mubr.bf16.mxu0 0
    %527 = vmatmul.mubr.bf16.gmra.mrb[0].mxu0 %v450
    %v528 = vpop.f32.mrb[0].mxu0
    %v529 = vadd.f32 0.0, %v528
    %v530 = vpop.f32.mrb[0].mxu0
    %v531 = vadd.f32 0.0, %v530
    %v532 = vpop.f32.mrb[0].mxu0
    %v533 = vpop.f32.mrb[0].mxu0
    %534 = vdwg.mxu0
    %v539 = vrot.slane %v488, 6
    %v540 = vrot.slane %v490, 6
    %v541 = vrot.slane %v529, 6
    %v542 = vrot.slane %v531, 6
    %v547 = vadd.f32 %v63, %v539
    %v548 = vadd.f32 %v64, %v540
    %v549 = vadd.f32 %v65, %v541
    %v550 = vadd.f32 %v66, %v542
    %v551 = vtanh.pop %v547
    %v552 = vtanh.pop %v548
    %v553 = vtanh.pop %v549
    %v554 = vtanh.pop %v550
    %v555 = vmul.f32 %v551, 0.5
    %v556 = vadd.f32 %v555, 0.5
    %v557 = vmul.f32 %v552, 0.5
    %v558 = vadd.f32 %v557, 0.5
    %v559 = vmul.f32 %v554, 0.5
    %v560 = vadd.f32 %v559, 0.5
    %v562 = vrot.slane %v444, 7
    %v564 = vmul.f32 %v558, %v562
    %v565 = vmul.f32 %v556, %v553
    %v566 = vadd.f32 %v564, %v565
    %v567 = vtanh.pop %v566
    %v568 = vmul.f32 %v560, %v567
    %569 = vst [vmem:[#allocation4] sm:$0x4] %v568
    %v570 = vpack.c.bf16 %v568, %v568
    %v572 = vrot.slane %v570, 1
    %574 = vmatprep.subr.bf16.mxu0 %v165
    %575 = vmatpush1.bf16.msra.mxu0 %v164
    %576 = vmatprep.subr.bf16.mxu0 %v169
    %577 = vmatpush1.bf16.msra.mxu0 %v168
    %578 = vmatprep.subr.bf16.mxu0 %v173
    %579 = vmatpush1.bf16.msra.mxu0 %v172
    %580 = vmatprep.subr.bf16.mxu0 %v177
    %581 = vmatpush1.bf16.msra.mxu0 %v176
    %582 = vmatprep.subr.bf16.mxu0 %v181
    %583 = vmatpush1.bf16.msra.mxu0 %v180
    %584 = vmatprep.subr.bf16.mxu0 %v185
    %585 = vmatpush1.bf16.msra.mxu0 %v184
    %586 = vmatprep.subr.bf16.mxu0 %v189
    %587 = vmatpush1.bf16.msra.mxu0 %v188
    %588 = vmatprep.subr.bf16.mxu0 %v193
    %589 = vmatpush1.bf16.msra.mxu0 %v192
    %590 = vmatprep.subr.bf16.mxu0 0
    %591 = vmatpush1.bf16.msra.mxu0 0
    %592 = vmatprep.subr.bf16.mxu0 0
    %593 = vmatpush1.bf16.msra.mxu0 0
    %594 = vmatprep.subr.bf16.mxu0 0
    %595 = vmatpush1.bf16.msra.mxu0 0
    %596 = vmatprep.subr.bf16.mxu0 0
    %597 = vmatpush1.bf16.msra.mxu0 0
    %598 = vmatprep.subr.bf16.mxu0 0
    %599 = vmatpush1.bf16.msra.mxu0 0
    %600 = vmatprep.subr.bf16.mxu0 0
    %601 = vmatpush1.bf16.msra.mxu0 0
    %602 = vmatprep.subr.bf16.mxu0 0
    %603 = vmatpush1.bf16.msra.mxu0 0
    %604 = vmatprep.subr.bf16.mxu0 0
    %605 = vmatpush1.bf16.msra.mxu0 0
    %606 = vmatprep.mubr.bf16.mxu0 0
    %607 = vmatmul.mubr.bf16.gmra.mrb[0].mxu0 %v572
    %v608 = vpop.f32.mrb[0].mxu0
    %v609 = vadd.f32 0.0, %v608
    %v610 = vpop.f32.mrb[0].mxu0
    %v611 = vadd.f32 0.0, %v610
    %v612 = vpop.f32.mrb[0].mxu0
    %v613 = vpop.f32.mrb[0].mxu0
    %614 = vdwg.mxu0
    %615 = vmatprep.subr.bf16.mxu0 %v167
    %616 = vmatpush1.bf16.msra.mxu0 %v166
    %617 = vmatprep.subr.bf16.mxu0 %v171
    %618 = vmatpush1.bf16.msra.mxu0 %v170
    %619 = vmatprep.subr.bf16.mxu0 %v175
    %620 = vmatpush1.bf16.msra.mxu0 %v174
    %621 = vmatprep.subr.bf16.mxu0 %v179
    %622 = vmatpush1.bf16.msra.mxu0 %v178
    %623 = vmatprep.subr.bf16.mxu0 %v183
    %624 = vmatpush1.bf16.msra.mxu0 %v182
    %625 = vmatprep.subr.bf16.mxu0 %v187
    %626 = vmatpush1.bf16.msra.mxu0 %v186
    %627 = vmatprep.subr.bf16.mxu0 %v191
    %628 = vmatpush1.bf16.msra.mxu0 %v190
    %629 = vmatprep.subr.bf16.mxu0 %v195
    %630 = vmatpush1.bf16.msra.mxu0 %v194
    %631 = vmatprep.subr.bf16.mxu0 0
    %632 = vmatpush1.bf16.msra.mxu0 0
    %633 = vmatprep.subr.bf16.mxu0 0
    %634 = vmatpush1.bf16.msra.mxu0 0
    %635 = vmatprep.subr.bf16.mxu0 0
    %636 = vmatpush1.bf16.msra.mxu0 0
    %637 = vmatprep.subr.bf16.mxu0 0
    %638 = vmatpush1.bf16.msra.mxu0 0
    %639 = vmatprep.subr.bf16.mxu0 0
    %640 = vmatpush1.bf16.msra.mxu0 0
    %641 = vmatprep.subr.bf16.mxu0 0
    %642 = vmatpush1.bf16.msra.mxu0 0
    %643 = vmatprep.subr.bf16.mxu0 0
    %644 = vmatpush1.bf16.msra.mxu0 0
    %645 = vmatprep.subr.bf16.mxu0 0
    %646 = vmatpush1.bf16.msra.mxu0 0
    %647 = vmatprep.mubr.bf16.mxu0 0
    %648 = vmatmul.mubr.bf16.gmra.mrb[0].mxu0 %v572
    %v649 = vpop.f32.mrb[0].mxu0
    %v650 = vadd.f32 0.0, %v649
    %v651 = vpop.f32.mrb[0].mxu0
    %v652 = vadd.f32 0.0, %v651
    %v653 = vpop.f32.mrb[0].mxu0
    %v654 = vpop.f32.mrb[0].mxu0
    %655 = vdwg.mxu0
    %v660 = vrot.slane %v609, 5
    %v661 = vrot.slane %v611, 5
    %v662 = vrot.slane %v650, 5
    %v663 = vrot.slane %v652, 5
    %v668 = vadd.f32 %v63, %v660
    %v669 = vadd.f32 %v64, %v661
    %v670 = vadd.f32 %v65, %v662
    %v671 = vadd.f32 %v66, %v663
    %v672 = vtanh.pop %v668
    %v673 = vtanh.pop %v669
    %v674 = vtanh.pop %v670
    %v675 = vtanh.pop %v671
    %v676 = vmul.f32 %v672, 0.5
    %v677 = vadd.f32 %v676, 0.5
    %v678 = vmul.f32 %v673, 0.5
    %v679 = vadd.f32 %v678, 0.5
    %v680 = vmul.f32 %v675, 0.5
    %v681 = vadd.f32 %v680, 0.5
    %v683 = vrot.slane %v566, 7
    %v685 = vmul.f32 %v679, %v683
    %v686 = vmul.f32 %v677, %v674
    %v687 = vadd.f32 %v685, %v686
    %v688 = vtanh.pop %v687
    %v689 = vmul.f32 %v681, %v688
    %690 = vst [vmem:[#allocation4] sm:$0x8] %v689
    %v691 = vpack.c.bf16 %v689, %v689
    %v693 = vshrl.u32 %v691, 16
    %v695 = vrot.slane %v693, 1
    %697 = vmatprep.subr.bf16.mxu0 %v165
    %698 = vmatpush1.bf16.msra.mxu0 %v164
    %699 = vmatprep.subr.bf16.mxu0 %v169
    %700 = vmatpush1.bf16.msra.mxu0 %v168
    %701 = vmatprep.subr.bf16.mxu0 %v173
    %702 = vmatpush1.bf16.msra.mxu0 %v172
    %703 = vmatprep.subr.bf16.mxu0 %v177
    %704 = vmatpush1.bf16.msra.mxu0 %v176
    %705 = vmatprep.subr.bf16.mxu0 %v181
    %706 = vmatpush1.bf16.msra.mxu0 %v180
    %707 = vmatprep.subr.bf16.mxu0 %v185
    %708 = vmatpush1.bf16.msra.mxu0 %v184
    %709 = vmatprep.subr.bf16.mxu0 %v189
    %710 = vmatpush1.bf16.msra.mxu0 %v188
    %711 = vmatprep.subr.bf16.mxu0 %v193
    %712 = vmatpush1.bf16.msra.mxu0 %v192
    %713 = vmatprep.subr.bf16.mxu0 0
    %714 = vmatpush1.bf16.msra.mxu0 0
    %715 = vmatprep.subr.bf16.mxu0 0
    %716 = vmatpush1.bf16.msra.mxu0 0
    %717 = vmatprep.subr.bf16.mxu0 0
    %718 = vmatpush1.bf16.msra.mxu0 0
    %719 = vmatprep.subr.bf16.mxu0 0
    %720 = vmatpush1.bf16.msra.mxu0 0
    %721 = vmatprep.subr.bf16.mxu0 0
    %722 = vmatpush1.bf16.msra.mxu0 0
    %723 = vmatprep.subr.bf16.mxu0 0
    %724 = vmatpush1.bf16.msra.mxu0 0
    %725 = vmatprep.subr.bf16.mxu0 0
    %726 = vmatpush1.bf16.msra.mxu0 0
    %727 = vmatprep.subr.bf16.mxu0 0
    %728 = vmatpush1.bf16.msra.mxu0 0
    %729 = vmatprep.mubr.bf16.mxu0 0
    %730 = vmatmul.mubr.bf16.gmra.mrb[0].mxu0 %v695
    %v731 = vpop.f32.mrb[0].mxu0
    %v732 = vadd.f32 0.0, %v731
    %v733 = vpop.f32.mrb[0].mxu0
    %v734 = vadd.f32 0.0, %v733
    %v735 = vpop.f32.mrb[0].mxu0
    %v736 = vpop.f32.mrb[0].mxu0
    %737 = vdwg.mxu0
    %738 = vmatprep.subr.bf16.mxu0 %v167
    %739 = vmatpush1.bf16.msra.mxu0 %v166
    %740 = vmatprep.subr.bf16.mxu0 %v171
    %741 = vmatpush1.bf16.msra.mxu0 %v170
    %742 = vmatprep.subr.bf16.mxu0 %v175
    %743 = vmatpush1.bf16.msra.mxu0 %v174
    %744 = vmatprep.subr.bf16.mxu0 %v179
    %745 = vmatpush1.bf16.msra.mxu0 %v178
    %746 = vmatprep.subr.bf16.mxu0 %v183
    %747 = vmatpush1.bf16.msra.mxu0 %v182
    %748 = vmatprep.subr.bf16.mxu0 %v187
    %749 = vmatpush1.bf16.msra.mxu0 %v186
    %750 = vmatprep.subr.bf16.mxu0 %v191
    %751 = vmatpush1.bf16.msra.mxu0 %v190
    %752 = vmatprep.subr.bf16.mxu0 %v195
    %753 = vmatpush1.bf16.msra.mxu0 %v194
    %754 = vmatprep.subr.bf16.mxu0 0
    %755 = vmatpush1.bf16.msra.mxu0 0
    %756 = vmatprep.subr.bf16.mxu0 0
    %757 = vmatpush1.bf16.msra.mxu0 0
    %758 = vmatprep.subr.bf16.mxu0 0
    %759 = vmatpush1.bf16.msra.mxu0 0
    %760 = vmatprep.subr.bf16.mxu0 0
    %761 = vmatpush1.bf16.msra.mxu0 0
    %762 = vmatprep.subr.bf16.mxu0 0
    %763 = vmatpush1.bf16.msra.mxu0 0
    %764 = vmatprep.subr.bf16.mxu0 0
    %765 = vmatpush1.bf16.msra.mxu0 0
    %766 = vmatprep.subr.bf16.mxu0 0
    %767 = vmatpush1.bf16.msra.mxu0 0
    %768 = vmatprep.subr.bf16.mxu0 0
    %769 = vmatpush1.bf16.msra.mxu0 0
    %770 = vmatprep.mubr.bf16.mxu0 0
    %771 = vmatmul.mubr.bf16.gmra.mrb[0].mxu0 %v695
    %v772 = vpop.f32.mrb[0].mxu0
    %v773 = vadd.f32 0.0, %v772
    %v774 = vpop.f32.mrb[0].mxu0
    %v775 = vadd.f32 0.0, %v774
    %v776 = vpop.f32.mrb[0].mxu0
    %v777 = vpop.f32.mrb[0].mxu0
    %778 = vdwg.mxu0
    %v783 = vrot.slane %v732, 4
    %v784 = vrot.slane %v734, 4
    %v785 = vrot.slane %v773, 4
    %v786 = vrot.slane %v775, 4
    %v791 = vadd.f32 %v63, %v783
    %v792 = vadd.f32 %v64, %v784
    %v793 = vadd.f32 %v65, %v785
    %v794 = vadd.f32 %v66, %v786
    %v795 = vtanh.pop %v791
    %v796 = vtanh.pop %v792
    %v797 = vtanh.pop %v793
    %v798 = vtanh.pop %v794
    %v799 = vmul.f32 %v795, 0.5
    %v800 = vadd.f32 %v799, 0.5
    %v801 = vmul.f32 %v796, 0.5
    %v802 = vadd.f32 %v801, 0.5
    %v803 = vmul.f32 %v798, 0.5
    %v804 = vadd.f32 %v803, 0.5
    %v806 = vrot.slane %v687, 7
    %v808 = vmul.f32 %v802, %v806
    %v809 = vmul.f32 %v800, %v797
    %v810 = vadd.f32 %v808, %v809
    %v811 = vtanh.pop %v810
    %v812 = vmul.f32 %v804, %v811
    %813 = vst [vmem:[#allocation4] sm:$0x10] %v812
    %v814 = vpack.c.bf16 %v812, %v812
    %v816 = vrot.slane %v814, 2
    %818 = vmatprep.subr.bf16.mxu0 %v165
    %819 = vmatpush1.bf16.msra.mxu0 %v164
    %820 = vmatprep.subr.bf16.mxu0 %v169
    %821 = vmatpush1.bf16.msra.mxu0 %v168
    %822 = vmatprep.subr.bf16.mxu0 %v173
    %823 = vmatpush1.bf16.msra.mxu0 %v172
    %824 = vmatprep.subr.bf16.mxu0 %v177
    %825 = vmatpush1.bf16.msra.mxu0 %v176
    %826 = vmatprep.subr.bf16.mxu0 %v181
    %827 = vmatpush1.bf16.msra.mxu0 %v180
    %828 = vmatprep.subr.bf16.mxu0 %v185
    %829 = vmatpush1.bf16.msra.mxu0 %v184
    %830 = vmatprep.subr.bf16.mxu0 %v189
    %831 = vmatpush1.bf16.msra.mxu0 %v188
    %832 = vmatprep.subr.bf16.mxu0 %v193
    %833 = vmatpush1.bf16.msra.mxu0 %v192
    %834 = vmatprep.subr.bf16.mxu0 0
    %835 = vmatpush1.bf16.msra.mxu0 0
    %836 = vmatprep.subr.bf16.mxu0 0
    %837 = vmatpush1.bf16.msra.mxu0 0
    %838 = vmatprep.subr.bf16.mxu0 0
    %839 = vmatpush1.bf16.msra.mxu0 0
    %840 = vmatprep.subr.bf16.mxu0 0
    %841 = vmatpush1.bf16.msra.mxu0 0
    %842 = vmatprep.subr.bf16.mxu0 0
    %843 = vmatpush1.bf16.msra.mxu0 0
    %844 = vmatprep.subr.bf16.mxu0 0
    %845 = vmatpush1.bf16.msra.mxu0 0
    %846 = vmatprep.subr.bf16.mxu0 0
    %847 = vmatpush1.bf16.msra.mxu0 0
    %848 = vmatprep.subr.bf16.mxu0 0
    %849 = vmatpush1.bf16.msra.mxu0 0
    %850 = vmatprep.mubr.bf16.mxu0 0
    %851 = vmatmul.mubr.bf16.gmra.mrb[0].mxu0 %v816
    %v852 = vpop.f32.mrb[0].mxu0
    %v853 = vadd.f32 0.0, %v852
    %v854 = vpop.f32.mrb[0].mxu0
    %v855 = vadd.f32 0.0, %v854
    %v856 = vpop.f32.mrb[0].mxu0
    %v857 = vpop.f32.mrb[0].mxu0
    %858 = vdwg.mxu0
    %859 = vmatprep.subr.bf16.mxu0 %v167
    %860 = vmatpush1.bf16.msra.mxu0 %v166
    %861 = vmatprep.subr.bf16.mxu0 %v171
    %862 = vmatpush1.bf16.msra.mxu0 %v170
    %863 = vmatprep.subr.bf16.mxu0 %v175
    %864 = vmatpush1.bf16.msra.mxu0 %v174
    %865 = vmatprep.subr.bf16.mxu0 %v179
    %866 = vmatpush1.bf16.msra.mxu0 %v178
    %867 = vmatprep.subr.bf16.mxu0 %v183
    %868 = vmatpush1.bf16.msra.mxu0 %v182
    %869 = vmatprep.subr.bf16.mxu0 %v187
    %870 = vmatpush1.bf16.msra.mxu0 %v186
    %871 = vmatprep.subr.bf16.mxu0 %v191
    %872 = vmatpush1.bf16.msra.mxu0 %v190
    %873 = vmatprep.subr.bf16.mxu0 %v195
    %874 = vmatpush1.bf16.msra.mxu0 %v194
    %875 = vmatprep.subr.bf16.mxu0 0
    %876 = vmatpush1.bf16.msra.mxu0 0
    %877 = vmatprep.subr.bf16.mxu0 0
    %878 = vmatpush1.bf16.msra.mxu0 0
    %879 = vmatprep.subr.bf16.mxu0 0
    %880 = vmatpush1.bf16.msra.mxu0 0
    %881 = vmatprep.subr.bf16.mxu0 0
    %882 = vmatpush1.bf16.msra.mxu0 0
    %883 = vmatprep.subr.bf16.mxu0 0
    %884 = vmatpush1.bf16.msra.mxu0 0
    %885 = vmatprep.subr.bf16.mxu0 0
    %886 = vmatpush1.bf16.msra.mxu0 0
    %887 = vmatprep.subr.bf16.mxu0 0
    %888 = vmatpush1.bf16.msra.mxu0 0
    %889 = vmatprep.subr.bf16.mxu0 0
    %890 = vmatpush1.bf16.msra.mxu0 0
    %891 = vmatprep.mubr.bf16.mxu0 0
    %892 = vmatmul.mubr.bf16.gmra.mrb[0].mxu0 %v816
    %v893 = vpop.f32.mrb[0].mxu0
    %v894 = vadd.f32 0.0, %v893
    %v895 = vpop.f32.mrb[0].mxu0
    %v896 = vadd.f32 0.0, %v895
    %v897 = vpop.f32.mrb[0].mxu0
    %v898 = vpop.f32.mrb[0].mxu0
    %899 = vdwg.mxu0
    %v904 = vrot.slane %v853, 3
    %v905 = vrot.slane %v855, 3
    %v906 = vrot.slane %v894, 3
    %v907 = vrot.slane %v896, 3
    %v912 = vadd.f32 %v63, %v904
    %v913 = vadd.f32 %v64, %v905
    %v914 = vadd.f32 %v65, %v906
    %v915 = vadd.f32 %v66, %v907
    %v916 = vtanh.pop %v912
    %v917 = vtanh.pop %v913
    %v918 = vtanh.pop %v914
    %v919 = vtanh.pop %v915
    %v920 = vmul.f32 %v916, 0.5
    %v921 = vadd.f32 %v920, 0.5
    %v922 = vmul.f32 %v917, 0.5
    %v923 = vadd.f32 %v922, 0.5
    %v924 = vmul.f32 %v919, 0.5
    %v925 = vadd.f32 %v924, 0.5
    %v927 = vrot.slane %v810, 7
    %v929 = vmul.f32 %v923, %v927
    %v930 = vmul.f32 %v921, %v918
    %v931 = vadd.f32 %v929, %v930
    %v932 = vtanh.pop %v931
    %v933 = vmul.f32 %v925, %v932
    %934 = vst [vmem:[#allocation4] sm:$0x20] %v933
    %v935 = vpack.c.bf16 %v933, %v933
    %v937 = vshrl.u32 %v935, 16
    %v939 = vrot.slane %v937, 2
    %941 = vmatprep.subr.bf16.mxu0 %v165
    %942 = vmatpush1.bf16.msra.mxu0 %v164
    %943 = vmatprep.subr.bf16.mxu0 %v169
    %944 = vmatpush1.bf16.msra.mxu0 %v168
    %945 = vmatprep.subr.bf16.mxu0 %v173
    %946 = vmatpush1.bf16.msra.mxu0 %v172
    %947 = vmatprep.subr.bf16.mxu0 %v177
    %948 = vmatpush1.bf16.msra.mxu0 %v176
    %949 = vmatprep.subr.bf16.mxu0 %v181
    %950 = vmatpush1.bf16.msra.mxu0 %v180
    %951 = vmatprep.subr.bf16.mxu0 %v185
    %952 = vmatpush1.bf16.msra.mxu0 %v184
    %953 = vmatprep.subr.bf16.mxu0 %v189
    %954 = vmatpush1.bf16.msra.mxu0 %v188
    %955 = vmatprep.subr.bf16.mxu0 %v193
    %956 = vmatpush1.bf16.msra.mxu0 %v192
    %957 = vmatprep.subr.bf16.mxu0 0
    %958 = vmatpush1.bf16.msra.mxu0 0
    %959 = vmatprep.subr.bf16.mxu0 0
    %960 = vmatpush1.bf16.msra.mxu0 0
    %961 = vmatprep.subr.bf16.mxu0 0
    %962 = vmatpush1.bf16.msra.mxu0 0
    %963 = vmatprep.subr.bf16.mxu0 0
    %964 = vmatpush1.bf16.msra.mxu0 0
    %965 = vmatprep.subr.bf16.mxu0 0
    %966 = vmatpush1.bf16.msra.mxu0 0
    %967 = vmatprep.subr.bf16.mxu0 0
    %968 = vmatpush1.bf16.msra.mxu0 0
    %969 = vmatprep.subr.bf16.mxu0 0
    %970 = vmatpush1.bf16.msra.mxu0 0
    %971 = vmatprep.subr.bf16.mxu0 0
    %972 = vmatpush1.bf16.msra.mxu0 0
    %973 = vmatprep.mubr.bf16.mxu0 0
    %974 = vmatmul.mubr.bf16.gmra.mrb[0].mxu0 %v939
    %v975 = vpop.f32.mrb[0].mxu0
    %v976 = vadd.f32 0.0, %v975
    %v977 = vpop.f32.mrb[0].mxu0
    %v978 = vadd.f32 0.0, %v977
    %v979 = vpop.f32.mrb[0].mxu0
    %v980 = vpop.f32.mrb[0].mxu0
    %981 = vdwg.mxu0
    %982 = vmatprep.subr.bf16.mxu0 %v167
    %983 = vmatpush1.bf16.msra.mxu0 %v166
    %984 = vmatprep.subr.bf16.mxu0 %v171
    %985 = vmatpush1.bf16.msra.mxu0 %v170
    %986 = vmatprep.subr.bf16.mxu0 %v175
    %987 = vmatpush1.bf16.msra.mxu0 %v174
    %988 = vmatprep.subr.bf16.mxu0 %v179
    %989 = vmatpush1.bf16.msra.mxu0 %v178
    %990 = vmatprep.subr.bf16.mxu0 %v183
    %991 = vmatpush1.bf16.msra.mxu0 %v182
    %992 = vmatprep.subr.bf16.mxu0 %v187
    %993 = vmatpush1.bf16.msra.mxu0 %v186
    %994 = vmatprep.subr.bf16.mxu0 %v191
    %995 = vmatpush1.bf16.msra.mxu0 %v190
    %996 = vmatprep.subr.bf16.mxu0 %v195
    %997 = vmatpush1.bf16.msra.mxu0 %v194
    %998 = vmatprep.subr.bf16.mxu0 0
    %999 = vmatpush1.bf16.msra.mxu0 0
    %1000 = vmatprep.subr.bf16.mxu0 0
    %1001 = vmatpush1.bf16.msra.mxu0 0
    %1002 = vmatprep.subr.bf16.mxu0 0
    %1003 = vmatpush1.bf16.msra.mxu0 0
    %1004 = vmatprep.subr.bf16.mxu0 0
    %1005 = vmatpush1.bf16.msra.mxu0 0
    %1006 = vmatprep.subr.bf16.mxu0 0
    %1007 = vmatpush1.bf16.msra.mxu0 0
    %1008 = vmatprep.subr.bf16.mxu0 0
    %1009 = vmatpush1.bf16.msra.mxu0 0
    %1010 = vmatprep.subr.bf16.mxu0 0
    %1011 = vmatpush1.bf16.msra.mxu0 0
    %1012 = vmatprep.subr.bf16.mxu0 0
    %1013 = vmatpush1.bf16.msra.mxu0 0
    %1014 = vmatprep.mubr.bf16.mxu0 0
    %1015 = vmatmul.mubr.bf16.gmra.mrb[0].mxu0 %v939
    %v1016 = vpop.f32.mrb[0].mxu0
    %v1017 = vadd.f32 0.0, %v1016
    %v1018 = vpop.f32.mrb[0].mxu0
    %v1019 = vadd.f32 0.0, %v1018
    %v1020 = vpop.f32.mrb[0].mxu0
    %v1021 = vpop.f32.mrb[0].mxu0
    %1022 = vdwg.mxu0
    %v1027 = vrot.slane %v976, 2
    %v1028 = vrot.slane %v978, 2
    %v1029 = vrot.slane %v1017, 2
    %v1030 = vrot.slane %v1019, 2
    %v1035 = vadd.f32 %v63, %v1027
    %v1036 = vadd.f32 %v64, %v1028
    %v1037 = vadd.f32 %v65, %v1029
    %v1038 = vadd.f32 %v66, %v1030
    %v1039 = vtanh.pop %v1035
    %v1040 = vtanh.pop %v1036
    %v1041 = vtanh.pop %v1037
    %v1042 = vtanh.pop %v1038
    %v1043 = vmul.f32 %v1039, 0.5
    %v1044 = vadd.f32 %v1043, 0.5
    %v1045 = vmul.f32 %v1040, 0.5
    %v1046 = vadd.f32 %v1045, 0.5
    %v1047 = vmul.f32 %v1042, 0.5
    %v1048 = vadd.f32 %v1047, 0.5
    %v1050 = vrot.slane %v931, 7
    %v1052 = vmul.f32 %v1046, %v1050
    %v1053 = vmul.f32 %v1044, %v1041
    %v1054 = vadd.f32 %v1052, %v1053
    %v1055 = vtanh.pop %v1054
    %v1056 = vmul.f32 %v1048, %v1055
    %1057 = vst [vmem:[#allocation4] sm:$0x40] %v1056
    %v1058 = vpack.c.bf16 %v1056, %v1056
    %v1060 = vrot.slane %v1058, 3
    %1062 = vmatprep.subr.bf16.mxu0 %v165
    %1063 = vmatpush1.bf16.msra.mxu0 %v164
    %1064 = vmatprep.subr.bf16.mxu0 %v169
    %1065 = vmatpush1.bf16.msra.mxu0 %v168
    %1066 = vmatprep.subr.bf16.mxu0 %v173
    %1067 = vmatpush1.bf16.msra.mxu0 %v172
    %1068 = vmatprep.subr.bf16.mxu0 %v177
    %1069 = vmatpush1.bf16.msra.mxu0 %v176
    %1070 = vmatprep.subr.bf16.mxu0 %v181
    %1071 = vmatpush1.bf16.msra.mxu0 %v180
    %1072 = vmatprep.subr.bf16.mxu0 %v185
    %1073 = vmatpush1.bf16.msra.mxu0 %v184
    %1074 = vmatprep.subr.bf16.mxu0 %v189
    %1075 = vmatpush1.bf16.msra.mxu0 %v188
    %1076 = vmatprep.subr.bf16.mxu0 %v193
    %1077 = vmatpush1.bf16.msra.mxu0 %v192
    %1078 = vmatprep.subr.bf16.mxu0 0
    %1079 = vmatpush1.bf16.msra.mxu0 0
    %1080 = vmatprep.subr.bf16.mxu0 0
    %1081 = vmatpush1.bf16.msra.mxu0 0
    %1082 = vmatprep.subr.bf16.mxu0 0
    %1083 = vmatpush1.bf16.msra.mxu0 0
    %1084 = vmatprep.subr.bf16.mxu0 0
    %1085 = vmatpush1.bf16.msra.mxu0 0
    %1086 = vmatprep.subr.bf16.mxu0 0
    %1087 = vmatpush1.bf16.msra.mxu0 0
    %1088 = vmatprep.subr.bf16.mxu0 0
    %1089 = vmatpush1.bf16.msra.mxu0 0
    %1090 = vmatprep.subr.bf16.mxu0 0
    %1091 = vmatpush1.bf16.msra.mxu0 0
    %1092 = vmatprep.subr.bf16.mxu0 0
    %1093 = vmatpush1.bf16.msra.mxu0 0
    %1094 = vmatprep.mubr.bf16.mxu0 0
    %1095 = vmatmul.mubr.bf16.gmra.mrb[0].mxu0 %v1060
    %v1096 = vpop.f32.mrb[0].mxu0
    %v1097 = vadd.f32 0.0, %v1096
    %v1098 = vpop.f32.mrb[0].mxu0
    %v1099 = vadd.f32 0.0, %v1098
    %v1100 = vpop.f32.mrb[0].mxu0
    %v1101 = vpop.f32.mrb[0].mxu0
    %1102 = vdwg.mxu0
    %1103 = vmatprep.subr.bf16.mxu0 %v167
    %1104 = vmatpush1.bf16.msra.mxu0 %v166
    %1105 = vmatprep.subr.bf16.mxu0 %v171
    %1106 = vmatpush1.bf16.msra.mxu0 %v170
    %1107 = vmatprep.subr.bf16.mxu0 %v175
    %1108 = vmatpush1.bf16.msra.mxu0 %v174
    %1109 = vmatprep.subr.bf16.mxu0 %v179
    %1110 = vmatpush1.bf16.msra.mxu0 %v178
    %1111 = vmatprep.subr.bf16.mxu0 %v183
    %1112 = vmatpush1.bf16.msra.mxu0 %v182
    %1113 = vmatprep.subr.bf16.mxu0 %v187
    %1114 = vmatpush1.bf16.msra.mxu0 %v186
    %1115 = vmatprep.subr.bf16.mxu0 %v191
    %1116 = vmatpush1.bf16.msra.mxu0 %v190
    %1117 = vmatprep.subr.bf16.mxu0 %v195
    %1118 = vmatpush1.bf16.msra.mxu0 %v194
    %1119 = vmatprep.subr.bf16.mxu0 0
    %1120 = vmatpush1.bf16.msra.mxu0 0
    %1121 = vmatprep.subr.bf16.mxu0 0
    %1122 = vmatpush1.bf16.msra.mxu0 0
    %1123 = vmatprep.subr.bf16.mxu0 0
    %1124 = vmatpush1.bf16.msra.mxu0 0
    %1125 = vmatprep.subr.bf16.mxu0 0
    %1126 = vmatpush1.bf16.msra.mxu0 0
    %1127 = vmatprep.subr.bf16.mxu0 0
    %1128 = vmatpush1.bf16.msra.mxu0 0
    %1129 = vmatprep.subr.bf16.mxu0 0
    %1130 = vmatpush1.bf16.msra.mxu0 0
    %1131 = vmatprep.subr.bf16.mxu0 0
    %1132 = vmatpush1.bf16.msra.mxu0 0
    %1133 = vmatprep.subr.bf16.mxu0 0
    %1134 = vmatpush1.bf16.msra.mxu0 0
    %1135 = vmatprep.mubr.bf16.mxu0 0
    %1136 = vmatmul.mubr.bf16.gmra.mrb[0].mxu0 %v1060
    %v1137 = vpop.f32.mrb[0].mxu0
    %v1138 = vadd.f32 0.0, %v1137
    %v1139 = vpop.f32.mrb[0].mxu0
    %v1140 = vadd.f32 0.0, %v1139
    %v1141 = vpop.f32.mrb[0].mxu0
    %v1142 = vpop.f32.mrb[0].mxu0
    %1143 = vdwg.mxu0
    %v1148 = vrot.slane %v1097, 1
    %v1149 = vrot.slane %v1099, 1
    %v1150 = vrot.slane %v1138, 1
    %v1151 = vrot.slane %v1140, 1
    %v1156 = vadd.f32 %v63, %v1148
    %v1157 = vadd.f32 %v64, %v1149
    %v1158 = vadd.f32 %v65, %v1150
    %v1159 = vadd.f32 %v66, %v1151
    %v1160 = vtanh.pop %v1156
    %v1161 = vtanh.pop %v1157
    %v1162 = vtanh.pop %v1158
    %v1163 = vtanh.pop %v1159
    %v1164 = vmul.f32 %v1160, 0.5
    %v1165 = vadd.f32 %v1164, 0.5
    %v1166 = vmul.f32 %v1161, 0.5
    %v1167 = vadd.f32 %v1166, 0.5
    %v1168 = vmul.f32 %v1163, 0.5
    %v1169 = vadd.f32 %v1168, 0.5
    %v1171 = vrot.slane %v1054, 7
    %v1173 = vmul.f32 %v1167, %v1171
    %v1174 = vmul.f32 %v1165, %v1162
    %v1175 = vadd.f32 %v1173, %v1174
    %v1176 = vtanh.pop %v1175
    %v1177 = vmul.f32 %v1169, %v1176
    %1178 = vst [vmem:[#allocation4] sm:$0x80] %v1177
    %v1179 = vld [vmem:[#allocation4] sm:$0xff]
    %s1180 = smul.u32 %s53, 8
    %s1181 = scalar_lea.vmem %s2, %s1180
    %1182 = vst [vmem:[%s1181] sm:$0xff] %v1179
    %v1184 = vrot.slane %v1177, 7
    %v1187 = vrot.slane %v1175, 7
  $region18: #{lstm_df_forward.2} parent=0 // loop_footer
    %s57 = sadd.s32 1, %s53
  $region19: #{lstm_df_forward.2} parent=0 // loop_footer_branch
    %52 = sbr.rel target = $region15
  $region20: #{lstm_df_forward.2} parent=0 // loop_exit
    _
  %1189 = vst [vmem:[#allocation2] sm:$0x1] %v58
  %1190 = vst [vmem:[#allocation3] sm:$0x1] %v59
  // Predicated region
  $region21: #{lstm_df_forward.2} parent=0 // pred_check
    _
  $region22: #{lstm_df_forward.2} parent=0 // pred_check_branch
    %1192 = sbr.rel (0) target = $region24
  $region23: #{lstm_df_forward.2} parent=0 // pred_region
    _
  $region24: #{lstm_df_forward.2} parent=0 // pred_fallthru
    _
  // Predicated region
  $region25: #{lstm_df_forward.2} parent=0 // pred_check
    _
  $region26: #{lstm_df_forward.2} parent=0 // pred_check_branch
    %1194 = sbr.rel (0) target = $region28
  $region27: #{lstm_df_forward.2} parent=0 // pred_region
    _
  $region28: #{lstm_df_forward.2} parent=0 // pred_fallthru
    _

// kernel: lstm_df_forward.3
$region0: #{lstm_df_forward.3}
  #allocation0 [shape = 'u32[]', space=smem, size = 0x4, offset = 0x4, fixed_abs, tag = 'smem constant byte address 0x4 - core index']
  #allocation1 [shape = 'u32[144,128]{1,0:T(1,128)}', space=vmem, size = 0x12000, scoped, tag = 'internal scratch']
  #allocation2 [shape = 'f32[2,128]{1,0:T(2,128)}', space=vmem, size = 0x400, scoped, tag = 'scratch operand']
  #allocation3 [shape = 'f32[2,128]{1,0:T(2,128)}', space=vmem, size = 0x400, scoped, tag = 'scratch operand']
  #allocation4 [shape = 'f32[2,128]{1,0:T(2,128)}', space=vmem, size = 0x400, scoped, tag = 'scratch operand']
  #allocation5 [shape = 'f32[2,128]{1,0:T(2,128)}', space=vmem, size = 0x400, scoped, tag = 'scratch operand']
  #allocation6 [shape = 'f32[2,128]{1,0:T(2,128)}', space=vmem, size = 0x400, scoped, tag = 'scratch operand']
  #allocation7 [shape = 'f32[2,128]{1,0:T(2,128)}', space=vmem, size = 0x400, scoped, tag = 'scratch operand']
  %s0 = inlined_call_operand.vmem [shape: f32[2,1,8,128], index: 0, kind: input, shape index: {}]
  %s1 = inlined_call_operand.vmem [shape: bf16[256,512], index: 1, kind: input, shape index: {}]
  %s2 = inlined_call_operand.vmem [shape: bf16[256,512], index: 2, kind: input, shape index: {}]
  %s3 = inlined_call_operand.vmem [shape: f32[1,512], index: 3, kind: input, shape index: {}]
  %s4 = inlined_call_operand.vmem [shape: f32[1,512], index: 4, kind: input, shape index: {}]
  %s5 = inlined_call_operand.vmem [shape: f32[128,128], index: 5, kind: input, shape index: {}]
  %s6 = inlined_call_operand.vmem [shape: f32[1,128], index: 6, kind: input, shape index: {}]
  %s7 = inlined_call_operand.hbm [shape: f32[2,128], index: 7, kind: output, shape index: {0}]
  %s8 = inlined_call_operand.vmem [shape: f32[2,128], index: 8, kind: output, shape index: {1}]
  %9 = xla_tuple %s7, %s8
  %s10 = sld [smem:[#allocation0]]
  $region86: #{lstm_df_forward.3} parent=0
    _
  %s12 = ssub.s32 1, %s10
  %s13 = scalar_select 0, %s12, %s10
  $region1: #{lstm_df_forward.3} parent=0
    #allocation8 [shape = 'u8[1024]{0}', space=vmem, size = 0x400, scoped, tag = 'output window, operand 0, single buffered']
    #allocation9 [shape = 's32[1]{0}', space=sflag, size = 0x4, scoped, tag = 'scoped memory for lstm_df_forward.3']
    %14 = vsyncpa [#allocation9], 0
    // Predicated region
    $region2: #{lstm_df_forward.3} parent=1 // pred_check
      _
    $region3: #{lstm_df_forward.3} parent=1 // pred_check_branch
      %16 = sbr.rel (0) target = $region5
    $region4: #{lstm_df_forward.3} parent=1 // pred_region
      _
    $region5: #{lstm_df_forward.3} parent=1 // pred_fallthru
      _
    // Predicated region
    $region6: #{lstm_df_forward.3} parent=1 // pred_check
      _
    $region7: #{lstm_df_forward.3} parent=1 // pred_check_branch
      %18 = sbr.rel (0) target = $region9
    $region8: #{lstm_df_forward.3} parent=1 // pred_region
      _
    $region9: #{lstm_df_forward.3} parent=1 // pred_fallthru
      _
    // Predicated region
    $region10: #{lstm_df_forward.3} parent=1 // pred_check
      _
    $region11: #{lstm_df_forward.3} parent=1 // pred_check_branch
      %20 = sbr.rel (0) target = $region13
    $region12: #{lstm_df_forward.3} parent=1 // pred_region
      _
    $region13: #{lstm_df_forward.3} parent=1 // pred_fallthru
      _
    // Predicated region
    $region14: #{lstm_df_forward.3} parent=1 // pred_check
      _
    $region15: #{lstm_df_forward.3} parent=1 // pred_check_branch
      %22 = sbr.rel (0) target = $region17
    $region16: #{lstm_df_forward.3} parent=1 // pred_region
      _
    $region17: #{lstm_df_forward.3} parent=1 // pred_fallthru
      _
    // Predicated region
    $region18: #{lstm_df_forward.3} parent=1 // pred_check
      _
    $region19: #{lstm_df_forward.3} parent=1 // pred_check_branch
      %24 = sbr.rel (0) target = $region21
    $region20: #{lstm_df_forward.3} parent=1 // pred_region
      _
    $region21: #{lstm_df_forward.3} parent=1 // pred_fallthru
      _
    // Predicated region
    $region22: #{lstm_df_forward.3} parent=1 // pred_check
      _
    $region23: #{lstm_df_forward.3} parent=1 // pred_check_branch
      %26 = sbr.rel (0) target = $region25
    $region24: #{lstm_df_forward.3} parent=1 // pred_region
      _
    $region25: #{lstm_df_forward.3} parent=1 // pred_fallthru
      _
    // Predicated region
    $region26: #{lstm_df_forward.3} parent=1 // pred_check
      _
    $region27: #{lstm_df_forward.3} parent=1 // pred_check_branch
      %28 = sbr.rel (0) target = $region29
    $region28: #{lstm_df_forward.3} parent=1 // pred_region
      _
    $region29: #{lstm_df_forward.3} parent=1 // pred_fallthru
      _
    %p29 = scmp.eq.s32.totalorder 0, 0
    // Predicated region
    $region30: #{lstm_df_forward.3} parent=1 // pred_check
      %p30 = pneg %p29
    $region31: #{lstm_df_forward.3} parent=1 // pred_check_branch
      %32 = sbr.rel (%p30) target = $region33
    $region32: #{lstm_df_forward.3} parent=1 // pred_region
      %33 = vst [vmem:[#allocation2] sm:$0x3] 0.0
      %34 = vst [vmem:[#allocation3] sm:$0x3] 0.0
      %35 = vst [vmem:[#allocation4] sm:$0x3] 0.0
      %36 = vst [vmem:[#allocation5] sm:$0x3] 0.0
    $region33: #{lstm_df_forward.3} parent=1 // pred_fallthru
      _
    %v37 = vld [vmem:[%s1] sm:$0xff]
    %v38 = vld [vmem:[%s1 + $0x8] sm:$0xff]
    %v39 = vld [vmem:[%s1 + $0x10] sm:$0xff]
    %v40 = vld [vmem:[%s1 + $0x18] sm:$0xff]
    %v41 = vld [vmem:[%s1 + $0x20] sm:$0xff]
    %v42 = vld [vmem:[%s1 + $0x28] sm:$0xff]
    %v43 = vld [vmem:[%s1 + $0x30] sm:$0xff]
    %v44 = vld [vmem:[%s1 + $0x38] sm:$0xff]
    %v45 = vld [vmem:[%s1 + $0x40] sm:$0xff]
    %v46 = vld [vmem:[%s1 + $0x48] sm:$0xff]
    %v47 = vld [vmem:[%s1 + $0x50] sm:$0xff]
    %v48 = vld [vmem:[%s1 + $0x58] sm:$0xff]
    %v49 = vld [vmem:[%s1 + $0x60] sm:$0xff]
    %v50 = vld [vmem:[%s1 + $0x68] sm:$0xff]
    %v51 = vld [vmem:[%s1 + $0x70] sm:$0xff]
    %v52 = vld [vmem:[%s1 + $0x78] sm:$0xff]
    %v53 = vld [vmem:[%s1 + $0x80] sm:$0xff]
    %v54 = vld [vmem:[%s1 + $0x88] sm:$0xff]
    %v55 = vld [vmem:[%s1 + $0x90] sm:$0xff]
    %v56 = vld [vmem:[%s1 + $0x98] sm:$0xff]
    %v57 = vld [vmem:[%s1 + $0xa0] sm:$0xff]
    %v58 = vld [vmem:[%s1 + $0xa8] sm:$0xff]
    %v59 = vld [vmem:[%s1 + $0xb0] sm:$0xff]
    %v60 = vld [vmem:[%s1 + $0xb8] sm:$0xff]
    %v61 = vld [vmem:[%s1 + $0xc0] sm:$0xff]
    %v62 = vld [vmem:[%s1 + $0xc8] sm:$0xff]
    %v63 = vld [vmem:[%s1 + $0xd0] sm:$0xff]
    %v64 = vld [vmem:[%s1 + $0xd8] sm:$0xff]
    %v65 = vld [vmem:[%s1 + $0xe0] sm:$0xff]
    %v66 = vld [vmem:[%s1 + $0xe8] sm:$0xff]
    %v67 = vld [vmem:[%s1 + $0xf0] sm:$0xff]
    %v68 = vld [vmem:[%s1 + $0xf8] sm:$0xff]
    %v69 = vld [vmem:[%s1 + $0x100] sm:$0xff]
    %v70 = vld [vmem:[%s1 + $0x108] sm:$0xff]
    %v71 = vld [vmem:[%s1 + $0x110] sm:$0xff]
    %v72 = vld [vmem:[%s1 + $0x118] sm:$0xff]
    %v73 = vld [vmem:[%s1 + $0x120] sm:$0xff]
    %v74 = vld [vmem:[%s1 + $0x128] sm:$0xff]
    %v75 = vld [vmem:[%s1 + $0x130] sm:$0xff]
    %v76 = vld [vmem:[%s1 + $0x138] sm:$0xff]
    %v77 = vld [vmem:[%s1 + $0x140] sm:$0xff]
    %v78 = vld [vmem:[%s1 + $0x148] sm:$0xff]
    %v79 = vld [vmem:[%s1 + $0x150] sm:$0xff]
    %v80 = vld [vmem:[%s1 + $0x158] sm:$0xff]
    %v81 = vld [vmem:[%s1 + $0x160] sm:$0xff]
    %v82 = vld [vmem:[%s1 + $0x168] sm:$0xff]
    %v83 = vld [vmem:[%s1 + $0x170] sm:$0xff]
    %v84 = vld [vmem:[%s1 + $0x178] sm:$0xff]
    %v85 = vld [vmem:[%s1 + $0x180] sm:$0xff]
    %v86 = vld [vmem:[%s1 + $0x188] sm:$0xff]
    %v87 = vld [vmem:[%s1 + $0x190] sm:$0xff]
    %v88 = vld [vmem:[%s1 + $0x198] sm:$0xff]
    %v89 = vld [vmem:[%s1 + $0x1a0] sm:$0xff]
    %v90 = vld [vmem:[%s1 + $0x1a8] sm:$0xff]
    %v91 = vld [vmem:[%s1 + $0x1b0] sm:$0xff]
    %v92 = vld [vmem:[%s1 + $0x1b8] sm:$0xff]
    %v93 = vld [vmem:[%s1 + $0x1c0] sm:$0xff]
    %v94 = vld [vmem:[%s1 + $0x1c8] sm:$0xff]
    %v95 = vld [vmem:[%s1 + $0x1d0] sm:$0xff]
    %v96 = vld [vmem:[%s1 + $0x1d8] sm:$0xff]
    %v97 = vld [vmem:[%s1 + $0x1e0] sm:$0xff]
    %v98 = vld [vmem:[%s1 + $0x1e8] sm:$0xff]
    %v99 = vld [vmem:[%s1 + $0x1f0] sm:$0xff]
    %v100 = vld [vmem:[%s1 + $0x1f8] sm:$0xff]
    %v101 = vld [vmem:[%s2] sm:$0xff]
    %v102 = vld [vmem:[%s2 + $0x8] sm:$0xff]
    %v103 = vld [vmem:[%s2 + $0x10] sm:$0xff]
    %v104 = vld [vmem:[%s2 + $0x18] sm:$0xff]
    %v105 = vld [vmem:[%s2 + $0x20] sm:$0xff]
    %v106 = vld [vmem:[%s2 + $0x28] sm:$0xff]
    %v107 = vld [vmem:[%s2 + $0x30] sm:$0xff]
    %v108 = vld [vmem:[%s2 + $0x38] sm:$0xff]
    %v109 = vld [vmem:[%s2 + $0x40] sm:$0xff]
    %v110 = vld [vmem:[%s2 + $0x48] sm:$0xff]
    %v111 = vld [vmem:[%s2 + $0x50] sm:$0xff]
    %v112 = vld [vmem:[%s2 + $0x58] sm:$0xff]
    %v113 = vld [vmem:[%s2 + $0x60] sm:$0xff]
    %v114 = vld [vmem:[%s2 + $0x68] sm:$0xff]
    %v115 = vld [vmem:[%s2 + $0x70] sm:$0xff]
    %v116 = vld [vmem:[%s2 + $0x78] sm:$0xff]
    %v117 = vld [vmem:[%s2 + $0x80] sm:$0xff]
    %v118 = vld [vmem:[%s2 + $0x88] sm:$0xff]
    %v119 = vld [vmem:[%s2 + $0x90] sm:$0xff]
    %v120 = vld [vmem:[%s2 + $0x98] sm:$0xff]
    %v121 = vld [vmem:[%s2 + $0xa0] sm:$0xff]
    %v122 = vld [vmem:[%s2 + $0xa8] sm:$0xff]
    %v123 = vld [vmem:[%s2 + $0xb0] sm:$0xff]
    %v124 = vld [vmem:[%s2 + $0xb8] sm:$0xff]
    %v125 = vld [vmem:[%s2 + $0xc0] sm:$0xff]
    %v126 = vld [vmem:[%s2 + $0xc8] sm:$0xff]
    %v127 = vld [vmem:[%s2 + $0xd0] sm:$0xff]
    %v128 = vld [vmem:[%s2 + $0xd8] sm:$0xff]
    %v129 = vld [vmem:[%s2 + $0xe0] sm:$0xff]
    %v130 = vld [vmem:[%s2 + $0xe8] sm:$0xff]
    %v131 = vld [vmem:[%s2 + $0xf0] sm:$0xff]
    %v132 = vld [vmem:[%s2 + $0xf8] sm:$0xff]
    %v133 = vld [vmem:[%s2 + $0x100] sm:$0xff]
    %v134 = vld [vmem:[%s2 + $0x108] sm:$0xff]
    %v135 = vld [vmem:[%s2 + $0x110] sm:$0xff]
    %v136 = vld [vmem:[%s2 + $0x118] sm:$0xff]
    %v137 = vld [vmem:[%s2 + $0x120] sm:$0xff]
    %v138 = vld [vmem:[%s2 + $0x128] sm:$0xff]
    %v139 = vld [vmem:[%s2 + $0x130] sm:$0xff]
    %v140 = vld [vmem:[%s2 + $0x138] sm:$0xff]
    %v141 = vld [vmem:[%s2 + $0x140] sm:$0xff]
    %v142 = vld [vmem:[%s2 + $0x148] sm:$0xff]
    %v143 = vld [vmem:[%s2 + $0x150] sm:$0xff]
    %v144 = vld [vmem:[%s2 + $0x158] sm:$0xff]
    %v145 = vld [vmem:[%s2 + $0x160] sm:$0xff]
    %v146 = vld [vmem:[%s2 + $0x168] sm:$0xff]
    %v147 = vld [vmem:[%s2 + $0x170] sm:$0xff]
    %v148 = vld [vmem:[%s2 + $0x178] sm:$0xff]
    %v149 = vld [vmem:[%s2 + $0x180] sm:$0xff]
    %v150 = vld [vmem:[%s2 + $0x188] sm:$0xff]
    %v151 = vld [vmem:[%s2 + $0x190] sm:$0xff]
    %v152 = vld [vmem:[%s2 + $0x198] sm:$0xff]
    %v153 = vld [vmem:[%s2 + $0x1a0] sm:$0xff]
    %v154 = vld [vmem:[%s2 + $0x1a8] sm:$0xff]
    %v155 = vld [vmem:[%s2 + $0x1b0] sm:$0xff]
    %v156 = vld [vmem:[%s2 + $0x1b8] sm:$0xff]
    %v157 = vld [vmem:[%s2 + $0x1c0] sm:$0xff]
    %v158 = vld [vmem:[%s2 + $0x1c8] sm:$0xff]
    %v159 = vld [vmem:[%s2 + $0x1d0] sm:$0xff]
    %v160 = vld [vmem:[%s2 + $0x1d8] sm:$0xff]
    %v161 = vld [vmem:[%s2 + $0x1e0] sm:$0xff]
    %v162 = vld [vmem:[%s2 + $0x1e8] sm:$0xff]
    %v163 = vld [vmem:[%s2 + $0x1f0] sm:$0xff]
    %v164 = vld [vmem:[%s2 + $0x1f8] sm:$0xff]
    %v165 = vld [vmem:[%s3] sm:$0xf]
    %v167 = vlaneseq
    %v168 = vshrl.u32 %v167, 7
    %v169 = vsub.s32 0, %v168
    %v170 = vrot.slane %v165, %v169
    %v171 = vlaneseq
    %v172 = vshrl.u32 %v171, 7
    %v173 = vsub.s32 1, %v172
    %v174 = vrot.slane %v165, %v173
    %v175 = vlaneseq
    %v176 = vshrl.u32 %v175, 7
    %v177 = vsub.s32 2, %v176
    %v178 = vrot.slane %v165, %v177
    %v179 = vlaneseq
    %v180 = vshrl.u32 %v179, 7
    %v181 = vsub.s32 3, %v180
    %v182 = vrot.slane %v165, %v181
    %v187 = vld [vmem:[%s4] sm:$0xf]
    %v189 = vlaneseq
    %v190 = vshrl.u32 %v189, 7
    %v191 = vsub.s32 0, %v190
    %v192 = vrot.slane %v187, %v191
    %v193 = vlaneseq
    %v194 = vshrl.u32 %v193, 7
    %v195 = vsub.s32 1, %v194
    %v196 = vrot.slane %v187, %v195
    %v197 = vlaneseq
    %v198 = vshrl.u32 %v197, 7
    %v199 = vsub.s32 2, %v198
    %v200 = vrot.slane %v187, %v199
    %v201 = vlaneseq
    %v202 = vshrl.u32 %v201, 7
    %v203 = vsub.s32 3, %v202
    %v204 = vrot.slane %v187, %v203
    %s209 = smul.u32 0, 8
    %v210 = vld [vmem:[#allocation2] sm:$0x3]
    %v211 = vld [vmem:[#allocation3] sm:$0x3]
    %v212 = vld [vmem:[#allocation4] sm:$0x3]
    %v213 = vld [vmem:[#allocation5] sm:$0x3]
    %v214 = vld [vmem:[%s0] sm:$0xff]
    %v215 = vld [vmem:[%s0 + $0x8] sm:$0xff]
    %v218 = vrot.slane %v215, 7
    %vm219 = vcmask 1041409
    %v220 = vsel %vm219, %v218, %v214
    %v222 = vpack.c.bf16 %v220, %v220
    %v223 = vpack.c.bf16 %v210, %v210
    %v288 = vunpack.c.l.b16 %v37
    %v289 = vunpack.c.h.b16 %v37
    %v290 = vunpack.c.l.b16 %v38
    %v291 = vunpack.c.h.b16 %v38
    %v292 = vunpack.c.l.b16 %v39
    %v293 = vunpack.c.h.b16 %v39
    %v294 = vunpack.c.l.b16 %v40
    %v295 = vunpack.c.h.b16 %v40
    %v296 = vunpack.c.l.b16 %v41
    %v297 = vunpack.c.h.b16 %v41
    %v298 = vunpack.c.l.b16 %v42
    %v299 = vunpack.c.h.b16 %v42
    %v300 = vunpack.c.l.b16 %v43
    %v301 = vunpack.c.h.b16 %v43
    %v302 = vunpack.c.l.b16 %v44
    %v303 = vunpack.c.h.b16 %v44
    %v304 = vunpack.c.l.b16 %v45
    %v305 = vunpack.c.h.b16 %v45
    %v306 = vunpack.c.l.b16 %v46
    %v307 = vunpack.c.h.b16 %v46
    %v308 = vunpack.c.l.b16 %v47
    %v309 = vunpack.c.h.b16 %v47
    %v310 = vunpack.c.l.b16 %v48
    %v311 = vunpack.c.h.b16 %v48
    %v312 = vunpack.c.l.b16 %v49
    %v313 = vunpack.c.h.b16 %v49
    %v314 = vunpack.c.l.b16 %v50
    %v315 = vunpack.c.h.b16 %v50
    %v316 = vunpack.c.l.b16 %v51
    %v317 = vunpack.c.h.b16 %v51
    %v318 = vunpack.c.l.b16 %v52
    %v319 = vunpack.c.h.b16 %v52
    %v320 = vunpack.c.l.b16 %v53
    %v321 = vunpack.c.h.b16 %v53
    %v322 = vunpack.c.l.b16 %v54
    %v323 = vunpack.c.h.b16 %v54
    %v324 = vunpack.c.l.b16 %v55
    %v325 = vunpack.c.h.b16 %v55
    %v326 = vunpack.c.l.b16 %v56
    %v327 = vunpack.c.h.b16 %v56
    %v328 = vunpack.c.l.b16 %v57
    %v329 = vunpack.c.h.b16 %v57
    %v330 = vunpack.c.l.b16 %v58
    %v331 = vunpack.c.h.b16 %v58
    %v332 = vunpack.c.l.b16 %v59
    %v333 = vunpack.c.h.b16 %v59
    %v334 = vunpack.c.l.b16 %v60
    %v335 = vunpack.c.h.b16 %v60
    %v336 = vunpack.c.l.b16 %v61
    %v337 = vunpack.c.h.b16 %v61
    %v338 = vunpack.c.l.b16 %v62
    %v339 = vunpack.c.h.b16 %v62
    %v340 = vunpack.c.l.b16 %v63
    %v341 = vunpack.c.h.b16 %v63
    %v342 = vunpack.c.l.b16 %v64
    %v343 = vunpack.c.h.b16 %v64
    %v344 = vunpack.c.l.b16 %v65
    %v345 = vunpack.c.h.b16 %v65
    %v346 = vunpack.c.l.b16 %v66
    %v347 = vunpack.c.h.b16 %v66
    %v348 = vunpack.c.l.b16 %v67
    %v349 = vunpack.c.h.b16 %v67
    %v350 = vunpack.c.l.b16 %v68
    %v351 = vunpack.c.h.b16 %v68
    %v352 = vunpack.c.l.b16 %v69
    %v353 = vunpack.c.h.b16 %v69
    %v354 = vunpack.c.l.b16 %v70
    %v355 = vunpack.c.h.b16 %v70
    %v356 = vunpack.c.l.b16 %v71
    %v357 = vunpack.c.h.b16 %v71
    %v358 = vunpack.c.l.b16 %v72
    %v359 = vunpack.c.h.b16 %v72
    %v360 = vunpack.c.l.b16 %v73
    %v361 = vunpack.c.h.b16 %v73
    %v362 = vunpack.c.l.b16 %v74
    %v363 = vunpack.c.h.b16 %v74
    %v364 = vunpack.c.l.b16 %v75
    %v365 = vunpack.c.h.b16 %v75
    %v366 = vunpack.c.l.b16 %v76
    %v367 = vunpack.c.h.b16 %v76
    %v368 = vunpack.c.l.b16 %v77
    %v369 = vunpack.c.h.b16 %v77
    %v370 = vunpack.c.l.b16 %v78
    %v371 = vunpack.c.h.b16 %v78
    %v372 = vunpack.c.l.b16 %v79
    %v373 = vunpack.c.h.b16 %v79
    %v374 = vunpack.c.l.b16 %v80
    %v375 = vunpack.c.h.b16 %v80
    %v376 = vunpack.c.l.b16 %v81
    %v377 = vunpack.c.h.b16 %v81
    %v378 = vunpack.c.l.b16 %v82
    %v379 = vunpack.c.h.b16 %v82
    %v380 = vunpack.c.l.b16 %v83
    %v381 = vunpack.c.h.b16 %v83
    %v382 = vunpack.c.l.b16 %v84
    %v383 = vunpack.c.h.b16 %v84
    %v384 = vunpack.c.l.b16 %v85
    %v385 = vunpack.c.h.b16 %v85
    %v386 = vunpack.c.l.b16 %v86
    %v387 = vunpack.c.h.b16 %v86
    %v388 = vunpack.c.l.b16 %v87
    %v389 = vunpack.c.h.b16 %v87
    %v390 = vunpack.c.l.b16 %v88
    %v391 = vunpack.c.h.b16 %v88
    %v392 = vunpack.c.l.b16 %v89
    %v393 = vunpack.c.h.b16 %v89
    %v394 = vunpack.c.l.b16 %v90
    %v395 = vunpack.c.h.b16 %v90
    %v396 = vunpack.c.l.b16 %v91
    %v397 = vunpack.c.h.b16 %v91
    %v398 = vunpack.c.l.b16 %v92
    %v399 = vunpack.c.h.b16 %v92
    %v400 = vunpack.c.l.b16 %v93
    %v401 = vunpack.c.h.b16 %v93
    %v402 = vunpack.c.l.b16 %v94
    %v403 = vunpack.c.h.b16 %v94
    %v404 = vunpack.c.l.b16 %v95
    %v405 = vunpack.c.h.b16 %v95
    %v406 = vunpack.c.l.b16 %v96
    %v407 = vunpack.c.h.b16 %v96
    %v408 = vunpack.c.l.b16 %v97
    %v409 = vunpack.c.h.b16 %v97
    %v410 = vunpack.c.l.b16 %v98
    %v411 = vunpack.c.h.b16 %v98
    %v412 = vunpack.c.l.b16 %v99
    %v413 = vunpack.c.h.b16 %v99
    %v414 = vunpack.c.l.b16 %v100
    %v415 = vunpack.c.h.b16 %v100
    %v416 = vpack.c.b16 %v292, %v288
    %v417 = vpack.c.b16 %v293, %v289
    %v418 = vpack.c.b16 %v294, %v290
    %v419 = vpack.c.b16 %v295, %v291
    %v420 = vpack.c.b16 %v300, %v296
    %v421 = vpack.c.b16 %v301, %v297
    %v422 = vpack.c.b16 %v302, %v298
    %v423 = vpack.c.b16 %v303, %v299
    %v424 = vpack.c.b16 %v308, %v304
    %v425 = vpack.c.b16 %v309, %v305
    %v426 = vpack.c.b16 %v310, %v306
    %v427 = vpack.c.b16 %v311, %v307
    %v428 = vpack.c.b16 %v316, %v312
    %v429 = vpack.c.b16 %v317, %v313
    %v430 = vpack.c.b16 %v318, %v314
    %v431 = vpack.c.b16 %v319, %v315
    %v432 = vpack.c.b16 %v324, %v320
    %v433 = vpack.c.b16 %v325, %v321
    %v434 = vpack.c.b16 %v326, %v322
    %v435 = vpack.c.b16 %v327, %v323
    %v436 = vpack.c.b16 %v332, %v328
    %v437 = vpack.c.b16 %v333, %v329
    %v438 = vpack.c.b16 %v334, %v330
    %v439 = vpack.c.b16 %v335, %v331
    %v440 = vpack.c.b16 %v340, %v336
    %v441 = vpack.c.b16 %v341, %v337
    %v442 = vpack.c.b16 %v342, %v338
    %v443 = vpack.c.b16 %v343, %v339
    %v444 = vpack.c.b16 %v348, %v344
    %v445 = vpack.c.b16 %v349, %v345
    %v446 = vpack.c.b16 %v350, %v346
    %v447 = vpack.c.b16 %v351, %v347
    %v448 = vpack.c.b16 %v356, %v352
    %v449 = vpack.c.b16 %v357, %v353
    %v450 = vpack.c.b16 %v358, %v354
    %v451 = vpack.c.b16 %v359, %v355
    %v452 = vpack.c.b16 %v364, %v360
    %v453 = vpack.c.b16 %v365, %v361
    %v454 = vpack.c.b16 %v366, %v362
    %v455 = vpack.c.b16 %v367, %v363
    %v456 = vpack.c.b16 %v372, %v368
    %v457 = vpack.c.b16 %v373, %v369
    %v458 = vpack.c.b16 %v374, %v370
    %v459 = vpack.c.b16 %v375, %v371
    %v460 = vpack.c.b16 %v380, %v376
    %v461 = vpack.c.b16 %v381, %v377
    %v462 = vpack.c.b16 %v382, %v378
    %v463 = vpack.c.b16 %v383, %v379
    %v464 = vpack.c.b16 %v388, %v384
    %v465 = vpack.c.b16 %v389, %v385
    %v466 = vpack.c.b16 %v390, %v386
    %v467 = vpack.c.b16 %v391, %v387
    %v468 = vpack.c.b16 %v396, %v392
    %v469 = vpack.c.b16 %v397, %v393
    %v470 = vpack.c.b16 %v398, %v394
    %v471 = vpack.c.b16 %v399, %v395
    %v472 = vpack.c.b16 %v404, %v400
    %v473 = vpack.c.b16 %v405, %v401
    %v474 = vpack.c.b16 %v406, %v402
    %v475 = vpack.c.b16 %v407, %v403
    %v476 = vpack.c.b16 %v412, %v408
    %v477 = vpack.c.b16 %v413, %v409
    %v478 = vpack.c.b16 %v414, %v410
    %v479 = vpack.c.b16 %v415, %v411
    %544 = vmatprep.subr.bf16.mxu0 %v417
    %545 = vmatpush1.bf16.msra.mxu0 %v416
    %546 = vmatprep.subr.bf16.mxu0 %v421
    %547 = vmatpush1.bf16.msra.mxu0 %v420
    %548 = vmatprep.subr.bf16.mxu0 %v425
    %549 = vmatpush1.bf16.msra.mxu0 %v424
    %550 = vmatprep.subr.bf16.mxu0 %v429
    %551 = vmatpush1.bf16.msra.mxu0 %v428
    %552 = vmatprep.subr.bf16.mxu0 %v433
    %553 = vmatpush1.bf16.msra.mxu0 %v432
    %554 = vmatprep.subr.bf16.mxu0 %v437
    %555 = vmatpush1.bf16.msra.mxu0 %v436
    %556 = vmatprep.subr.bf16.mxu0 %v441
    %557 = vmatpush1.bf16.msra.mxu0 %v440
    %558 = vmatprep.subr.bf16.mxu0 %v445
    %559 = vmatpush1.bf16.msra.mxu0 %v444
    %560 = vmatprep.subr.bf16.mxu0 %v449
    %561 = vmatpush1.bf16.msra.mxu0 %v448
    %562 = vmatprep.subr.bf16.mxu0 %v453
    %563 = vmatpush1.bf16.msra.mxu0 %v452
    %564 = vmatprep.subr.bf16.mxu0 %v457
    %565 = vmatpush1.bf16.msra.mxu0 %v456
    %566 = vmatprep.subr.bf16.mxu0 %v461
    %567 = vmatpush1.bf16.msra.mxu0 %v460
    %568 = vmatprep.subr.bf16.mxu0 %v465
    %569 = vmatpush1.bf16.msra.mxu0 %v464
    %570 = vmatprep.subr.bf16.mxu0 %v469
    %571 = vmatpush1.bf16.msra.mxu0 %v468
    %572 = vmatprep.subr.bf16.mxu0 %v473
    %573 = vmatpush1.bf16.msra.mxu0 %v472
    %574 = vmatprep.subr.bf16.mxu0 %v477
    %575 = vmatpush1.bf16.msra.mxu0 %v476
    %576 = vmatprep.mubr.bf16.mxu0 %v223
    %577 = vmatmul.mubr.bf16.gmra.mrb[0].mxu0 %v222
    %v578 = vpop.f32.mrb[0].mxu0
    %v579 = vadd.f32 %v170, %v578
    %v580 = vpop.f32.mrb[0].mxu0
    %v581 = vadd.f32 %v174, %v580
    %v582 = vpop.f32.mrb[0].mxu0
    %v583 = vpop.f32.mrb[0].mxu0
    %584 = vdwg.mxu0
    %585 = vmatprep.subr.bf16.mxu0 %v419
    %586 = vmatpush1.bf16.msra.mxu0 %v418
    %587 = vmatprep.subr.bf16.mxu0 %v423
    %588 = vmatpush1.bf16.msra.mxu0 %v422
    %589 = vmatprep.subr.bf16.mxu0 %v427
    %590 = vmatpush1.bf16.msra.mxu0 %v426
    %591 = vmatprep.subr.bf16.mxu0 %v431
    %592 = vmatpush1.bf16.msra.mxu0 %v430
    %593 = vmatprep.subr.bf16.mxu0 %v435
    %594 = vmatpush1.bf16.msra.mxu0 %v434
    %595 = vmatprep.subr.bf16.mxu0 %v439
    %596 = vmatpush1.bf16.msra.mxu0 %v438
    %597 = vmatprep.subr.bf16.mxu0 %v443
    %598 = vmatpush1.bf16.msra.mxu0 %v442
    %599 = vmatprep.subr.bf16.mxu0 %v447
    %600 = vmatpush1.bf16.msra.mxu0 %v446
    %601 = vmatprep.subr.bf16.mxu0 %v451
    %602 = vmatpush1.bf16.msra.mxu0 %v450
    %603 = vmatprep.subr.bf16.mxu0 %v455
    %604 = vmatpush1.bf16.msra.mxu0 %v454
    %605 = vmatprep.subr.bf16.mxu0 %v459
    %606 = vmatpush1.bf16.msra.mxu0 %v458
    %607 = vmatprep.subr.bf16.mxu0 %v463
    %608 = vmatpush1.bf16.msra.mxu0 %v462
    %609 = vmatprep.subr.bf16.mxu0 %v467
    %610 = vmatpush1.bf16.msra.mxu0 %v466
    %611 = vmatprep.subr.bf16.mxu0 %v471
    %612 = vmatpush1.bf16.msra.mxu0 %v470
    %613 = vmatprep.subr.bf16.mxu0 %v475
    %614 = vmatpush1.bf16.msra.mxu0 %v474
    %615 = vmatprep.subr.bf16.mxu0 %v479
    %616 = vmatpush1.bf16.msra.mxu0 %v478
    %617 = vmatprep.mubr.bf16.mxu0 %v223
    %618 = vmatmul.mubr.bf16.gmra.mrb[0].mxu0 %v222
    %v619 = vpop.f32.mrb[0].mxu0
    %v620 = vadd.f32 %v178, %v619
    %v621 = vpop.f32.mrb[0].mxu0
    %v622 = vadd.f32 %v182, %v621
    %v623 = vpop.f32.mrb[0].mxu0
    %v624 = vpop.f32.mrb[0].mxu0
    %625 = vdwg.mxu0
    %v626 = vtanh.pop %v579
    %v627 = vtanh.pop %v581
    %v628 = vtanh.pop %v620
    %v629 = vtanh.pop %v622
    %v630 = vmul.f32 %v626, 0.5
    %v631 = vadd.f32 %v630, 0.5
    %v632 = vmul.f32 %v627, 0.5
    %v633 = vadd.f32 %v632, 0.5
    %v634 = vmul.f32 %v629, 0.5
    %v635 = vadd.f32 %v634, 0.5
    %v636 = vmul.f32 %v633, %v211
    %v637 = vmul.f32 %v631, %v628
    %v638 = vadd.f32 %v636, %v637
    %v639 = vtanh.pop %v638
    %v640 = vmul.f32 %v635, %v639
    %v641 = vpack.c.bf16 %v640, %v640
    %v642 = vpack.c.bf16 %v212, %v212
    %v707 = vunpack.c.l.b16 %v101
    %v708 = vunpack.c.h.b16 %v101
    %v709 = vunpack.c.l.b16 %v102
    %v710 = vunpack.c.h.b16 %v102
    %v711 = vunpack.c.l.b16 %v103
    %v712 = vunpack.c.h.b16 %v103
    %v713 = vunpack.c.l.b16 %v104
    %v714 = vunpack.c.h.b16 %v104
    %v715 = vunpack.c.l.b16 %v105
    %v716 = vunpack.c.h.b16 %v105
    %v717 = vunpack.c.l.b16 %v106
    %v718 = vunpack.c.h.b16 %v106
    %v719 = vunpack.c.l.b16 %v107
    %v720 = vunpack.c.h.b16 %v107
    %v721 = vunpack.c.l.b16 %v108
    %v722 = vunpack.c.h.b16 %v108
    %v723 = vunpack.c.l.b16 %v109
    %v724 = vunpack.c.h.b16 %v109
    %v725 = vunpack.c.l.b16 %v110
    %v726 = vunpack.c.h.b16 %v110
    %v727 = vunpack.c.l.b16 %v111
    %v728 = vunpack.c.h.b16 %v111
    %v729 = vunpack.c.l.b16 %v112
    %v730 = vunpack.c.h.b16 %v112
    %v731 = vunpack.c.l.b16 %v113
    %v732 = vunpack.c.h.b16 %v113
    %v733 = vunpack.c.l.b16 %v114
    %v734 = vunpack.c.h.b16 %v114
    %v735 = vunpack.c.l.b16 %v115
    %v736 = vunpack.c.h.b16 %v115
    %v737 = vunpack.c.l.b16 %v116
    %v738 = vunpack.c.h.b16 %v116
    %v739 = vunpack.c.l.b16 %v117
    %v740 = vunpack.c.h.b16 %v117
    %v741 = vunpack.c.l.b16 %v118
    %v742 = vunpack.c.h.b16 %v118
    %v743 = vunpack.c.l.b16 %v119
    %v744 = vunpack.c.h.b16 %v119
    %v745 = vunpack.c.l.b16 %v120
    %v746 = vunpack.c.h.b16 %v120
    %v747 = vunpack.c.l.b16 %v121
    %v748 = vunpack.c.h.b16 %v121
    %v749 = vunpack.c.l.b16 %v122
    %v750 = vunpack.c.h.b16 %v122
    %v751 = vunpack.c.l.b16 %v123
    %v752 = vunpack.c.h.b16 %v123
    %v753 = vunpack.c.l.b16 %v124
    %v754 = vunpack.c.h.b16 %v124
    %v755 = vunpack.c.l.b16 %v125
    %v756 = vunpack.c.h.b16 %v125
    %v757 = vunpack.c.l.b16 %v126
    %v758 = vunpack.c.h.b16 %v126
    %v759 = vunpack.c.l.b16 %v127
    %v760 = vunpack.c.h.b16 %v127
    %v761 = vunpack.c.l.b16 %v128
    %v762 = vunpack.c.h.b16 %v128
    %v763 = vunpack.c.l.b16 %v129
    %v764 = vunpack.c.h.b16 %v129
    %v765 = vunpack.c.l.b16 %v130
    %v766 = vunpack.c.h.b16 %v130
    %v767 = vunpack.c.l.b16 %v131
    %v768 = vunpack.c.h.b16 %v131
    %v769 = vunpack.c.l.b16 %v132
    %v770 = vunpack.c.h.b16 %v132
    %v771 = vunpack.c.l.b16 %v133
    %v772 = vunpack.c.h.b16 %v133
    %v773 = vunpack.c.l.b16 %v134
    %v774 = vunpack.c.h.b16 %v134
    %v775 = vunpack.c.l.b16 %v135
    %v776 = vunpack.c.h.b16 %v135
    %v777 = vunpack.c.l.b16 %v136
    %v778 = vunpack.c.h.b16 %v136
    %v779 = vunpack.c.l.b16 %v137
    %v780 = vunpack.c.h.b16 %v137
    %v781 = vunpack.c.l.b16 %v138
    %v782 = vunpack.c.h.b16 %v138
    %v783 = vunpack.c.l.b16 %v139
    %v784 = vunpack.c.h.b16 %v139
    %v785 = vunpack.c.l.b16 %v140
    %v786 = vunpack.c.h.b16 %v140
    %v787 = vunpack.c.l.b16 %v141
    %v788 = vunpack.c.h.b16 %v141
    %v789 = vunpack.c.l.b16 %v142
    %v790 = vunpack.c.h.b16 %v142
    %v791 = vunpack.c.l.b16 %v143
    %v792 = vunpack.c.h.b16 %v143
    %v793 = vunpack.c.l.b16 %v144
    %v794 = vunpack.c.h.b16 %v144
    %v795 = vunpack.c.l.b16 %v145
    %v796 = vunpack.c.h.b16 %v145
    %v797 = vunpack.c.l.b16 %v146
    %v798 = vunpack.c.h.b16 %v146
    %v799 = vunpack.c.l.b16 %v147
    %v800 = vunpack.c.h.b16 %v147
    %v801 = vunpack.c.l.b16 %v148
    %v802 = vunpack.c.h.b16 %v148
    %v803 = vunpack.c.l.b16 %v149
    %v804 = vunpack.c.h.b16 %v149
    %v805 = vunpack.c.l.b16 %v150
    %v806 = vunpack.c.h.b16 %v150
    %v807 = vunpack.c.l.b16 %v151
    %v808 = vunpack.c.h.b16 %v151
    %v809 = vunpack.c.l.b16 %v152
    %v810 = vunpack.c.h.b16 %v152
    %v811 = vunpack.c.l.b16 %v153
    %v812 = vunpack.c.h.b16 %v153
    %v813 = vunpack.c.l.b16 %v154
    %v814 = vunpack.c.h.b16 %v154
    %v815 = vunpack.c.l.b16 %v155
    %v816 = vunpack.c.h.b16 %v155
    %v817 = vunpack.c.l.b16 %v156
    %v818 = vunpack.c.h.b16 %v156
    %v819 = vunpack.c.l.b16 %v157
    %v820 = vunpack.c.h.b16 %v157
    %v821 = vunpack.c.l.b16 %v158
    %v822 = vunpack.c.h.b16 %v158
    %v823 = vunpack.c.l.b16 %v159
    %v824 = vunpack.c.h.b16 %v159
    %v825 = vunpack.c.l.b16 %v160
    %v826 = vunpack.c.h.b16 %v160
    %v827 = vunpack.c.l.b16 %v161
    %v828 = vunpack.c.h.b16 %v161
    %v829 = vunpack.c.l.b16 %v162
    %v830 = vunpack.c.h.b16 %v162
    %v831 = vunpack.c.l.b16 %v163
    %v832 = vunpack.c.h.b16 %v163
    %v833 = vunpack.c.l.b16 %v164
    %v834 = vunpack.c.h.b16 %v164
    %v835 = vpack.c.b16 %v711, %v707
    %v836 = vpack.c.b16 %v712, %v708
    %v837 = vpack.c.b16 %v713, %v709
    %v838 = vpack.c.b16 %v714, %v710
    %v839 = vpack.c.b16 %v719, %v715
    %v840 = vpack.c.b16 %v720, %v716
    %v841 = vpack.c.b16 %v721, %v717
    %v842 = vpack.c.b16 %v722, %v718
    %v843 = vpack.c.b16 %v727, %v723
    %v844 = vpack.c.b16 %v728, %v724
    %v845 = vpack.c.b16 %v729, %v725
    %v846 = vpack.c.b16 %v730, %v726
    %v847 = vpack.c.b16 %v735, %v731
    %v848 = vpack.c.b16 %v736, %v732
    %v849 = vpack.c.b16 %v737, %v733
    %v850 = vpack.c.b16 %v738, %v734
    %v851 = vpack.c.b16 %v743, %v739
    %v852 = vpack.c.b16 %v744, %v740
    %v853 = vpack.c.b16 %v745, %v741
    %v854 = vpack.c.b16 %v746, %v742
    %v855 = vpack.c.b16 %v751, %v747
    %v856 = vpack.c.b16 %v752, %v748
    %v857 = vpack.c.b16 %v753, %v749
    %v858 = vpack.c.b16 %v754, %v750
    %v859 = vpack.c.b16 %v759, %v755
    %v860 = vpack.c.b16 %v760, %v756
    %v861 = vpack.c.b16 %v761, %v757
    %v862 = vpack.c.b16 %v762, %v758
    %v863 = vpack.c.b16 %v767, %v763
    %v864 = vpack.c.b16 %v768, %v764
    %v865 = vpack.c.b16 %v769, %v765
    %v866 = vpack.c.b16 %v770, %v766
    %v867 = vpack.c.b16 %v775, %v771
    %v868 = vpack.c.b16 %v776, %v772
    %v869 = vpack.c.b16 %v777, %v773
    %v870 = vpack.c.b16 %v778, %v774
    %v871 = vpack.c.b16 %v783, %v779
    %v872 = vpack.c.b16 %v784, %v780
    %v873 = vpack.c.b16 %v785, %v781
    %v874 = vpack.c.b16 %v786, %v782
    %v875 = vpack.c.b16 %v791, %v787
    %v876 = vpack.c.b16 %v792, %v788
    %v877 = vpack.c.b16 %v793, %v789
    %v878 = vpack.c.b16 %v794, %v790
    %v879 = vpack.c.b16 %v799, %v795
    %v880 = vpack.c.b16 %v800, %v796
    %v881 = vpack.c.b16 %v801, %v797
    %v882 = vpack.c.b16 %v802, %v798
    %v883 = vpack.c.b16 %v807, %v803
    %v884 = vpack.c.b16 %v808, %v804
    %v885 = vpack.c.b16 %v809, %v805
    %v886 = vpack.c.b16 %v810, %v806
    %v887 = vpack.c.b16 %v815, %v811
    %v888 = vpack.c.b16 %v816, %v812
    %v889 = vpack.c.b16 %v817, %v813
    %v890 = vpack.c.b16 %v818, %v814
    %v891 = vpack.c.b16 %v823, %v819
    %v892 = vpack.c.b16 %v824, %v820
    %v893 = vpack.c.b16 %v825, %v821
    %v894 = vpack.c.b16 %v826, %v822
    %v895 = vpack.c.b16 %v831, %v827
    %v896 = vpack.c.b16 %v832, %v828
    %v897 = vpack.c.b16 %v833, %v829
    %v898 = vpack.c.b16 %v834, %v830
    %963 = vmatprep.subr.bf16.mxu0 %v836
    %964 = vmatpush1.bf16.msra.mxu0 %v835
    %965 = vmatprep.subr.bf16.mxu0 %v840
    %966 = vmatpush1.bf16.msra.mxu0 %v839
    %967 = vmatprep.subr.bf16.mxu0 %v844
    %968 = vmatpush1.bf16.msra.mxu0 %v843
    %969 = vmatprep.subr.bf16.mxu0 %v848
    %970 = vmatpush1.bf16.msra.mxu0 %v847
    %971 = vmatprep.subr.bf16.mxu0 %v852
    %972 = vmatpush1.bf16.msra.mxu0 %v851
    %973 = vmatprep.subr.bf16.mxu0 %v856
    %974 = vmatpush1.bf16.msra.mxu0 %v855
    %975 = vmatprep.subr.bf16.mxu0 %v860
    %976 = vmatpush1.bf16.msra.mxu0 %v859
    %977 = vmatprep.subr.bf16.mxu0 %v864
    %978 = vmatpush1.bf16.msra.mxu0 %v863
    %979 = vmatprep.subr.bf16.mxu0 %v868
    %980 = vmatpush1.bf16.msra.mxu0 %v867
    %981 = vmatprep.subr.bf16.mxu0 %v872
    %982 = vmatpush1.bf16.msra.mxu0 %v871
    %983 = vmatprep.subr.bf16.mxu0 %v876
    %984 = vmatpush1.bf16.msra.mxu0 %v875
    %985 = vmatprep.subr.bf16.mxu0 %v880
    %986 = vmatpush1.bf16.msra.mxu0 %v879
    %987 = vmatprep.subr.bf16.mxu0 %v884
    %988 = vmatpush1.bf16.msra.mxu0 %v883
    %989 = vmatprep.subr.bf16.mxu0 %v888
    %990 = vmatpush1.bf16.msra.mxu0 %v887
    %991 = vmatprep.subr.bf16.mxu0 %v892
    %992 = vmatpush1.bf16.msra.mxu0 %v891
    %993 = vmatprep.subr.bf16.mxu0 %v896
    %994 = vmatpush1.bf16.msra.mxu0 %v895
    %995 = vmatprep.mubr.bf16.mxu0 %v642
    %996 = vmatmul.mubr.bf16.gmra.mrb[0].mxu0 %v641
    %v997 = vpop.f32.mrb[0].mxu0
    %v998 = vadd.f32 %v192, %v997
    %v999 = vpop.f32.mrb[0].mxu0
    %v1000 = vadd.f32 %v196, %v999
    %v1001 = vpop.f32.mrb[0].mxu0
    %v1002 = vpop.f32.mrb[0].mxu0
    %1003 = vdwg.mxu0
    %1004 = vmatprep.subr.bf16.mxu0 %v838
    %1005 = vmatpush1.bf16.msra.mxu0 %v837
    %1006 = vmatprep.subr.bf16.mxu0 %v842
    %1007 = vmatpush1.bf16.msra.mxu0 %v841
    %1008 = vmatprep.subr.bf16.mxu0 %v846
    %1009 = vmatpush1.bf16.msra.mxu0 %v845
    %1010 = vmatprep.subr.bf16.mxu0 %v850
    %1011 = vmatpush1.bf16.msra.mxu0 %v849
    %1012 = vmatprep.subr.bf16.mxu0 %v854
    %1013 = vmatpush1.bf16.msra.mxu0 %v853
    %1014 = vmatprep.subr.bf16.mxu0 %v858
    %1015 = vmatpush1.bf16.msra.mxu0 %v857
    %1016 = vmatprep.subr.bf16.mxu0 %v862
    %1017 = vmatpush1.bf16.msra.mxu0 %v861
    %1018 = vmatprep.subr.bf16.mxu0 %v866
    %1019 = vmatpush1.bf16.msra.mxu0 %v865
    %1020 = vmatprep.subr.bf16.mxu0 %v870
    %1021 = vmatpush1.bf16.msra.mxu0 %v869
    %1022 = vmatprep.subr.bf16.mxu0 %v874
    %1023 = vmatpush1.bf16.msra.mxu0 %v873
    %1024 = vmatprep.subr.bf16.mxu0 %v878
    %1025 = vmatpush1.bf16.msra.mxu0 %v877
    %1026 = vmatprep.subr.bf16.mxu0 %v882
    %1027 = vmatpush1.bf16.msra.mxu0 %v881
    %1028 = vmatprep.subr.bf16.mxu0 %v886
    %1029 = vmatpush1.bf16.msra.mxu0 %v885
    %1030 = vmatprep.subr.bf16.mxu0 %v890
    %1031 = vmatpush1.bf16.msra.mxu0 %v889
    %1032 = vmatprep.subr.bf16.mxu0 %v894
    %1033 = vmatpush1.bf16.msra.mxu0 %v893
    %1034 = vmatprep.subr.bf16.mxu0 %v898
    %1035 = vmatpush1.bf16.msra.mxu0 %v897
    %1036 = vmatprep.mubr.bf16.mxu0 %v642
    %1037 = vmatmul.mubr.bf16.gmra.mrb[0].mxu0 %v641
    %v1038 = vpop.f32.mrb[0].mxu0
    %v1039 = vadd.f32 %v200, %v1038
    %v1040 = vpop.f32.mrb[0].mxu0
    %v1041 = vadd.f32 %v204, %v1040
    %v1042 = vpop.f32.mrb[0].mxu0
    %v1043 = vpop.f32.mrb[0].mxu0
    %1044 = vdwg.mxu0
    %v1045 = vtanh.pop %v998
    %v1046 = vtanh.pop %v1000
    %v1047 = vtanh.pop %v1039
    %v1048 = vtanh.pop %v1041
    %v1049 = vmul.f32 %v1045, 0.5
    %v1050 = vadd.f32 %v1049, 0.5
    %v1051 = vmul.f32 %v1046, 0.5
    %v1052 = vadd.f32 %v1051, 0.5
    %v1053 = vmul.f32 %v1048, 0.5
    %v1054 = vadd.f32 %v1053, 0.5
    %v1055 = vmul.f32 %v1052, %v213
    %v1056 = vmul.f32 %v1050, %v1047
    %v1057 = vadd.f32 %v1055, %v1056
    %v1058 = vtanh.pop %v1057
    %v1059 = vmul.f32 %v1054, %v1058
    %p1060 = scmp.eq.s32.totalorder %s209, 7
    // Predicated region
    $region34: #{lstm_df_forward.3} parent=1 // pred_check
      %p1061 = pneg %p1060
    $region35: #{lstm_df_forward.3} parent=1 // pred_check_branch
      %1063 = sbr.rel (%p1061) target = $region37
    $region36: #{lstm_df_forward.3} parent=1 // pred_region
      %1064 = vst [vmem:[#allocation6] sm:$0x3] %v1059
      %1065 = vst [vmem:[#allocation7] sm:$0x3] %v1057
    $region37: #{lstm_df_forward.3} parent=1 // pred_fallthru
      _
    %vm1066 = vcmask 1042434
    %v1067 = vsel %vm1066, %v218, %v214
    %v1070 = vrot.slane %v640, 7
    %v1072 = vpack.c.bf16 %v1067, %v1067
    %v1073 = vpack.c.bf16 %v1070, %v1070
    %v1075 = vshrl.u32 %v1072, 16
    %v1077 = vshll.u32 %v1072, 16
    %v1079 = vrot.slane %v1077, 1
    %v1080 = vor.u32 %v1075, %v1079
    %v1082 = vshrl.u32 %v1073, 16
    %v1084 = vshll.u32 %v1073, 16
    %v1086 = vrot.slane %v1084, 1
    %v1087 = vor.u32 %v1082, %v1086
    %1090 = vmatprep.subr.bf16.mxu0 %v417
    %1091 = vmatpush1.bf16.msra.mxu0 %v416
    %1092 = vmatprep.subr.bf16.mxu0 %v421
    %1093 = vmatpush1.bf16.msra.mxu0 %v420
    %1094 = vmatprep.subr.bf16.mxu0 %v425
    %1095 = vmatpush1.bf16.msra.mxu0 %v424
    %1096 = vmatprep.subr.bf16.mxu0 %v429
    %1097 = vmatpush1.bf16.msra.mxu0 %v428
    %1098 = vmatprep.subr.bf16.mxu0 %v433
    %1099 = vmatpush1.bf16.msra.mxu0 %v432
    %1100 = vmatprep.subr.bf16.mxu0 %v437
    %1101 = vmatpush1.bf16.msra.mxu0 %v436
    %1102 = vmatprep.subr.bf16.mxu0 %v441
    %1103 = vmatpush1.bf16.msra.mxu0 %v440
    %1104 = vmatprep.subr.bf16.mxu0 %v445
    %1105 = vmatpush1.bf16.msra.mxu0 %v444
    %1106 = vmatprep.subr.bf16.mxu0 %v449
    %1107 = vmatpush1.bf16.msra.mxu0 %v448
    %1108 = vmatprep.subr.bf16.mxu0 %v453
    %1109 = vmatpush1.bf16.msra.mxu0 %v452
    %1110 = vmatprep.subr.bf16.mxu0 %v457
    %1111 = vmatpush1.bf16.msra.mxu0 %v456
    %1112 = vmatprep.subr.bf16.mxu0 %v461
    %1113 = vmatpush1.bf16.msra.mxu0 %v460
    %1114 = vmatprep.subr.bf16.mxu0 %v465
    %1115 = vmatpush1.bf16.msra.mxu0 %v464
    %1116 = vmatprep.subr.bf16.mxu0 %v469
    %1117 = vmatpush1.bf16.msra.mxu0 %v468
    %1118 = vmatprep.subr.bf16.mxu0 %v473
    %1119 = vmatpush1.bf16.msra.mxu0 %v472
    %1120 = vmatprep.subr.bf16.mxu0 %v477
    %1121 = vmatpush1.bf16.msra.mxu0 %v476
    %1122 = vmatprep.mubr.bf16.mxu0 %v1087
    %1123 = vmatmul.mubr.bf16.gmra.mrb[0].mxu0 %v1080
    %v1124 = vpop.f32.mrb[0].mxu0
    %v1125 = vadd.f32 %v170, %v1124
    %v1126 = vpop.f32.mrb[0].mxu0
    %v1127 = vadd.f32 %v174, %v1126
    %v1128 = vpop.f32.mrb[0].mxu0
    %v1129 = vpop.f32.mrb[0].mxu0
    %1130 = vdwg.mxu0
    %1131 = vmatprep.subr.bf16.mxu0 %v419
    %1132 = vmatpush1.bf16.msra.mxu0 %v418
    %1133 = vmatprep.subr.bf16.mxu0 %v423
    %1134 = vmatpush1.bf16.msra.mxu0 %v422
    %1135 = vmatprep.subr.bf16.mxu0 %v427
    %1136 = vmatpush1.bf16.msra.mxu0 %v426
    %1137 = vmatprep.subr.bf16.mxu0 %v431
    %1138 = vmatpush1.bf16.msra.mxu0 %v430
    %1139 = vmatprep.subr.bf16.mxu0 %v435
    %1140 = vmatpush1.bf16.msra.mxu0 %v434
    %1141 = vmatprep.subr.bf16.mxu0 %v439
    %1142 = vmatpush1.bf16.msra.mxu0 %v438
    %1143 = vmatprep.subr.bf16.mxu0 %v443
    %1144 = vmatpush1.bf16.msra.mxu0 %v442
    %1145 = vmatprep.subr.bf16.mxu0 %v447
    %1146 = vmatpush1.bf16.msra.mxu0 %v446
    %1147 = vmatprep.subr.bf16.mxu0 %v451
    %1148 = vmatpush1.bf16.msra.mxu0 %v450
    %1149 = vmatprep.subr.bf16.mxu0 %v455
    %1150 = vmatpush1.bf16.msra.mxu0 %v454
    %1151 = vmatprep.subr.bf16.mxu0 %v459
    %1152 = vmatpush1.bf16.msra.mxu0 %v458
    %1153 = vmatprep.subr.bf16.mxu0 %v463
    %1154 = vmatpush1.bf16.msra.mxu0 %v462
    %1155 = vmatprep.subr.bf16.mxu0 %v467
    %1156 = vmatpush1.bf16.msra.mxu0 %v466
    %1157 = vmatprep.subr.bf16.mxu0 %v471
    %1158 = vmatpush1.bf16.msra.mxu0 %v470
    %1159 = vmatprep.subr.bf16.mxu0 %v475
    %1160 = vmatpush1.bf16.msra.mxu0 %v474
    %1161 = vmatprep.subr.bf16.mxu0 %v479
    %1162 = vmatpush1.bf16.msra.mxu0 %v478
    %1163 = vmatprep.mubr.bf16.mxu0 %v1087
    %1164 = vmatmul.mubr.bf16.gmra.mrb[0].mxu0 %v1080
    %v1165 = vpop.f32.mrb[0].mxu0
    %v1166 = vadd.f32 %v178, %v1165
    %v1167 = vpop.f32.mrb[0].mxu0
    %v1168 = vadd.f32 %v182, %v1167
    %v1169 = vpop.f32.mrb[0].mxu0
    %v1170 = vpop.f32.mrb[0].mxu0
    %1171 = vdwg.mxu0
    %v1172 = vtanh.pop %v1125
    %v1173 = vtanh.pop %v1127
    %v1174 = vtanh.pop %v1166
    %v1175 = vtanh.pop %v1168
    %v1176 = vmul.f32 %v1172, 0.5
    %v1177 = vadd.f32 %v1176, 0.5
    %v1178 = vmul.f32 %v1173, 0.5
    %v1179 = vadd.f32 %v1178, 0.5
    %v1180 = vmul.f32 %v1175, 0.5
    %v1181 = vadd.f32 %v1180, 0.5
    %v1182 = vmul.f32 %v1179, %v638
    %v1183 = vmul.f32 %v1177, %v1174
    %v1184 = vadd.f32 %v1182, %v1183
    %v1185 = vtanh.pop %v1184
    %v1186 = vmul.f32 %v1181, %v1185
    %v1187 = vpack.c.bf16 %v1186, %v1186
    %v1188 = vpack.c.bf16 %v1059, %v1059
    %1189 = vmatprep.subr.bf16.mxu0 %v836
    %1190 = vmatpush1.bf16.msra.mxu0 %v835
    %1191 = vmatprep.subr.bf16.mxu0 %v840
    %1192 = vmatpush1.bf16.msra.mxu0 %v839
    %1193 = vmatprep.subr.bf16.mxu0 %v844
    %1194 = vmatpush1.bf16.msra.mxu0 %v843
    %1195 = vmatprep.subr.bf16.mxu0 %v848
    %1196 = vmatpush1.bf16.msra.mxu0 %v847
    %1197 = vmatprep.subr.bf16.mxu0 %v852
    %1198 = vmatpush1.bf16.msra.mxu0 %v851
    %1199 = vmatprep.subr.bf16.mxu0 %v856
    %1200 = vmatpush1.bf16.msra.mxu0 %v855
    %1201 = vmatprep.subr.bf16.mxu0 %v860
    %1202 = vmatpush1.bf16.msra.mxu0 %v859
    %1203 = vmatprep.subr.bf16.mxu0 %v864
    %1204 = vmatpush1.bf16.msra.mxu0 %v863
    %1205 = vmatprep.subr.bf16.mxu0 %v868
    %1206 = vmatpush1.bf16.msra.mxu0 %v867
    %1207 = vmatprep.subr.bf16.mxu0 %v872
    %1208 = vmatpush1.bf16.msra.mxu0 %v871
    %1209 = vmatprep.subr.bf16.mxu0 %v876
    %1210 = vmatpush1.bf16.msra.mxu0 %v875
    %1211 = vmatprep.subr.bf16.mxu0 %v880
    %1212 = vmatpush1.bf16.msra.mxu0 %v879
    %1213 = vmatprep.subr.bf16.mxu0 %v884
    %1214 = vmatpush1.bf16.msra.mxu0 %v883
    %1215 = vmatprep.subr.bf16.mxu0 %v888
    %1216 = vmatpush1.bf16.msra.mxu0 %v887
    %1217 = vmatprep.subr.bf16.mxu0 %v892
    %1218 = vmatpush1.bf16.msra.mxu0 %v891
    %1219 = vmatprep.subr.bf16.mxu0 %v896
    %1220 = vmatpush1.bf16.msra.mxu0 %v895
    %1221 = vmatprep.mubr.bf16.mxu0 %v1188
    %1222 = vmatmul.mubr.bf16.gmra.mrb[0].mxu0 %v1187
    %v1223 = vpop.f32.mrb[0].mxu0
    %v1224 = vadd.f32 %v192, %v1223
    %v1225 = vpop.f32.mrb[0].mxu0
    %v1226 = vadd.f32 %v196, %v1225
    %v1227 = vpop.f32.mrb[0].mxu0
    %v1228 = vpop.f32.mrb[0].mxu0
    %1229 = vdwg.mxu0
    %1230 = vmatprep.subr.bf16.mxu0 %v838
    %1231 = vmatpush1.bf16.msra.mxu0 %v837
    %1232 = vmatprep.subr.bf16.mxu0 %v842
    %1233 = vmatpush1.bf16.msra.mxu0 %v841
    %1234 = vmatprep.subr.bf16.mxu0 %v846
    %1235 = vmatpush1.bf16.msra.mxu0 %v845
    %1236 = vmatprep.subr.bf16.mxu0 %v850
    %1237 = vmatpush1.bf16.msra.mxu0 %v849
    %1238 = vmatprep.subr.bf16.mxu0 %v854
    %1239 = vmatpush1.bf16.msra.mxu0 %v853
    %1240 = vmatprep.subr.bf16.mxu0 %v858
    %1241 = vmatpush1.bf16.msra.mxu0 %v857
    %1242 = vmatprep.subr.bf16.mxu0 %v862
    %1243 = vmatpush1.bf16.msra.mxu0 %v861
    %1244 = vmatprep.subr.bf16.mxu0 %v866
    %1245 = vmatpush1.bf16.msra.mxu0 %v865
    %1246 = vmatprep.subr.bf16.mxu0 %v870
    %1247 = vmatpush1.bf16.msra.mxu0 %v869
    %1248 = vmatprep.subr.bf16.mxu0 %v874
    %1249 = vmatpush1.bf16.msra.mxu0 %v873
    %1250 = vmatprep.subr.bf16.mxu0 %v878
    %1251 = vmatpush1.bf16.msra.mxu0 %v877
    %1252 = vmatprep.subr.bf16.mxu0 %v882
    %1253 = vmatpush1.bf16.msra.mxu0 %v881
    %1254 = vmatprep.subr.bf16.mxu0 %v886
    %1255 = vmatpush1.bf16.msra.mxu0 %v885
    %1256 = vmatprep.subr.bf16.mxu0 %v890
    %1257 = vmatpush1.bf16.msra.mxu0 %v889
    %1258 = vmatprep.subr.bf16.mxu0 %v894
    %1259 = vmatpush1.bf16.msra.mxu0 %v893
    %1260 = vmatprep.subr.bf16.mxu0 %v898
    %1261 = vmatpush1.bf16.msra.mxu0 %v897
    %1262 = vmatprep.mubr.bf16.mxu0 %v1188
    %1263 = vmatmul.mubr.bf16.gmra.mrb[0].mxu0 %v1187
    %v1264 = vpop.f32.mrb[0].mxu0
    %v1265 = vadd.f32 %v200, %v1264
    %v1266 = vpop.f32.mrb[0].mxu0
    %v1267 = vadd.f32 %v204, %v1266
    %v1268 = vpop.f32.mrb[0].mxu0
    %v1269 = vpop.f32.mrb[0].mxu0
    %1270 = vdwg.mxu0
    %v1271 = vtanh.pop %v1224
    %v1272 = vtanh.pop %v1226
    %v1273 = vtanh.pop %v1265
    %v1274 = vtanh.pop %v1267
    %v1275 = vmul.f32 %v1271, 0.5
    %v1276 = vadd.f32 %v1275, 0.5
    %v1277 = vmul.f32 %v1272, 0.5
    %v1278 = vadd.f32 %v1277, 0.5
    %v1279 = vmul.f32 %v1274, 0.5
    %v1280 = vadd.f32 %v1279, 0.5
    %v1281 = vmul.f32 %v1278, %v1057
    %v1282 = vmul.f32 %v1276, %v1273
    %v1283 = vadd.f32 %v1281, %v1282
    %v1284 = vtanh.pop %v1283
    %v1285 = vmul.f32 %v1280, %v1284
    %s1286 = sadd.s32 %s209, 1
    %p1287 = scmp.eq.s32.totalorder %s1286, 7
    // Predicated region
    $region38: #{lstm_df_forward.3} parent=1 // pred_check
      %p1288 = pneg %p1287
    $region39: #{lstm_df_forward.3} parent=1 // pred_check_branch
      %1290 = sbr.rel (%p1288) target = $region41
    $region40: #{lstm_df_forward.3} parent=1 // pred_region
      %1291 = vst [vmem:[#allocation6] sm:$0x3] %v1285
      %1292 = vst [vmem:[#allocation7] sm:$0x3] %v1283
    $region41: #{lstm_df_forward.3} parent=1 // pred_fallthru
      _
    %vm1293 = vcmask 1043459
    %v1294 = vsel %vm1293, %v218, %v214
    %v1297 = vrot.slane %v1186, 6
    %v1299 = vpack.c.bf16 %v1294, %v1294
    %v1300 = vpack.c.bf16 %v1297, %v1297
    %v1303 = vrot.slane %v1299, 1
    %v1304 = vrot.slane %v1300, 1
    %1307 = vmatprep.subr.bf16.mxu0 %v417
    %1308 = vmatpush1.bf16.msra.mxu0 %v416
    %1309 = vmatprep.subr.bf16.mxu0 %v421
    %1310 = vmatpush1.bf16.msra.mxu0 %v420
    %1311 = vmatprep.subr.bf16.mxu0 %v425
    %1312 = vmatpush1.bf16.msra.mxu0 %v424
    %1313 = vmatprep.subr.bf16.mxu0 %v429
    %1314 = vmatpush1.bf16.msra.mxu0 %v428
    %1315 = vmatprep.subr.bf16.mxu0 %v433
    %1316 = vmatpush1.bf16.msra.mxu0 %v432
    %1317 = vmatprep.subr.bf16.mxu0 %v437
    %1318 = vmatpush1.bf16.msra.mxu0 %v436
    %1319 = vmatprep.subr.bf16.mxu0 %v441
    %1320 = vmatpush1.bf16.msra.mxu0 %v440
    %1321 = vmatprep.subr.bf16.mxu0 %v445
    %1322 = vmatpush1.bf16.msra.mxu0 %v444
    %1323 = vmatprep.subr.bf16.mxu0 %v449
    %1324 = vmatpush1.bf16.msra.mxu0 %v448
    %1325 = vmatprep.subr.bf16.mxu0 %v453
    %1326 = vmatpush1.bf16.msra.mxu0 %v452
    %1327 = vmatprep.subr.bf16.mxu0 %v457
    %1328 = vmatpush1.bf16.msra.mxu0 %v456
    %1329 = vmatprep.subr.bf16.mxu0 %v461
    %1330 = vmatpush1.bf16.msra.mxu0 %v460
    %1331 = vmatprep.subr.bf16.mxu0 %v465
    %1332 = vmatpush1.bf16.msra.mxu0 %v464
    %1333 = vmatprep.subr.bf16.mxu0 %v469
    %1334 = vmatpush1.bf16.msra.mxu0 %v468
    %1335 = vmatprep.subr.bf16.mxu0 %v473
    %1336 = vmatpush1.bf16.msra.mxu0 %v472
    %1337 = vmatprep.subr.bf16.mxu0 %v477
    %1338 = vmatpush1.bf16.msra.mxu0 %v476
    %1339 = vmatprep.mubr.bf16.mxu0 %v1304
    %1340 = vmatmul.mubr.bf16.gmra.mrb[0].mxu0 %v1303
    %v1341 = vpop.f32.mrb[0].mxu0
    %v1342 = vadd.f32 %v170, %v1341
    %v1343 = vpop.f32.mrb[0].mxu0
    %v1344 = vadd.f32 %v174, %v1343
    %v1345 = vpop.f32.mrb[0].mxu0
    %v1346 = vpop.f32.mrb[0].mxu0
    %1347 = vdwg.mxu0
    %1348 = vmatprep.subr.bf16.mxu0 %v419
    %1349 = vmatpush1.bf16.msra.mxu0 %v418
    %1350 = vmatprep.subr.bf16.mxu0 %v423
    %1351 = vmatpush1.bf16.msra.mxu0 %v422
    %1352 = vmatprep.subr.bf16.mxu0 %v427
    %1353 = vmatpush1.bf16.msra.mxu0 %v426
    %1354 = vmatprep.subr.bf16.mxu0 %v431
    %1355 = vmatpush1.bf16.msra.mxu0 %v430
    %1356 = vmatprep.subr.bf16.mxu0 %v435
    %1357 = vmatpush1.bf16.msra.mxu0 %v434
    %1358 = vmatprep.subr.bf16.mxu0 %v439
    %1359 = vmatpush1.bf16.msra.mxu0 %v438
    %1360 = vmatprep.subr.bf16.mxu0 %v443
    %1361 = vmatpush1.bf16.msra.mxu0 %v442
    %1362 = vmatprep.subr.bf16.mxu0 %v447
    %1363 = vmatpush1.bf16.msra.mxu0 %v446
    %1364 = vmatprep.subr.bf16.mxu0 %v451
    %1365 = vmatpush1.bf16.msra.mxu0 %v450
    %1366 = vmatprep.subr.bf16.mxu0 %v455
    %1367 = vmatpush1.bf16.msra.mxu0 %v454
    %1368 = vmatprep.subr.bf16.mxu0 %v459
    %1369 = vmatpush1.bf16.msra.mxu0 %v458
    %1370 = vmatprep.subr.bf16.mxu0 %v463
    %1371 = vmatpush1.bf16.msra.mxu0 %v462
    %1372 = vmatprep.subr.bf16.mxu0 %v467
    %1373 = vmatpush1.bf16.msra.mxu0 %v466
    %1374 = vmatprep.subr.bf16.mxu0 %v471
    %1375 = vmatpush1.bf16.msra.mxu0 %v470
    %1376 = vmatprep.subr.bf16.mxu0 %v475
    %1377 = vmatpush1.bf16.msra.mxu0 %v474
    %1378 = vmatprep.subr.bf16.mxu0 %v479
    %1379 = vmatpush1.bf16.msra.mxu0 %v478
    %1380 = vmatprep.mubr.bf16.mxu0 %v1304
    %1381 = vmatmul.mubr.bf16.gmra.mrb[0].mxu0 %v1303
    %v1382 = vpop.f32.mrb[0].mxu0
    %v1383 = vadd.f32 %v178, %v1382
    %v1384 = vpop.f32.mrb[0].mxu0
    %v1385 = vadd.f32 %v182, %v1384
    %v1386 = vpop.f32.mrb[0].mxu0
    %v1387 = vpop.f32.mrb[0].mxu0
    %1388 = vdwg.mxu0
    %v1389 = vtanh.pop %v1342
    %v1390 = vtanh.pop %v1344
    %v1391 = vtanh.pop %v1383
    %v1392 = vtanh.pop %v1385
    %v1393 = vmul.f32 %v1389, 0.5
    %v1394 = vadd.f32 %v1393, 0.5
    %v1395 = vmul.f32 %v1390, 0.5
    %v1396 = vadd.f32 %v1395, 0.5
    %v1397 = vmul.f32 %v1392, 0.5
    %v1398 = vadd.f32 %v1397, 0.5
    %v1399 = vmul.f32 %v1396, %v1184
    %v1400 = vmul.f32 %v1394, %v1391
    %v1401 = vadd.f32 %v1399, %v1400
    %v1402 = vtanh.pop %v1401
    %v1403 = vmul.f32 %v1398, %v1402
    %v1404 = vpack.c.bf16 %v1403, %v1403
    %v1405 = vpack.c.bf16 %v1285, %v1285
    %1406 = vmatprep.subr.bf16.mxu0 %v836
    %1407 = vmatpush1.bf16.msra.mxu0 %v835
    %1408 = vmatprep.subr.bf16.mxu0 %v840
    %1409 = vmatpush1.bf16.msra.mxu0 %v839
    %1410 = vmatprep.subr.bf16.mxu0 %v844
    %1411 = vmatpush1.bf16.msra.mxu0 %v843
    %1412 = vmatprep.subr.bf16.mxu0 %v848
    %1413 = vmatpush1.bf16.msra.mxu0 %v847
    %1414 = vmatprep.subr.bf16.mxu0 %v852
    %1415 = vmatpush1.bf16.msra.mxu0 %v851
    %1416 = vmatprep.subr.bf16.mxu0 %v856
    %1417 = vmatpush1.bf16.msra.mxu0 %v855
    %1418 = vmatprep.subr.bf16.mxu0 %v860
    %1419 = vmatpush1.bf16.msra.mxu0 %v859
    %1420 = vmatprep.subr.bf16.mxu0 %v864
    %1421 = vmatpush1.bf16.msra.mxu0 %v863
    %1422 = vmatprep.subr.bf16.mxu0 %v868
    %1423 = vmatpush1.bf16.msra.mxu0 %v867
    %1424 = vmatprep.subr.bf16.mxu0 %v872
    %1425 = vmatpush1.bf16.msra.mxu0 %v871
    %1426 = vmatprep.subr.bf16.mxu0 %v876
    %1427 = vmatpush1.bf16.msra.mxu0 %v875
    %1428 = vmatprep.subr.bf16.mxu0 %v880
    %1429 = vmatpush1.bf16.msra.mxu0 %v879
    %1430 = vmatprep.subr.bf16.mxu0 %v884
    %1431 = vmatpush1.bf16.msra.mxu0 %v883
    %1432 = vmatprep.subr.bf16.mxu0 %v888
    %1433 = vmatpush1.bf16.msra.mxu0 %v887
    %1434 = vmatprep.subr.bf16.mxu0 %v892
    %1435 = vmatpush1.bf16.msra.mxu0 %v891
    %1436 = vmatprep.subr.bf16.mxu0 %v896
    %1437 = vmatpush1.bf16.msra.mxu0 %v895
    %1438 = vmatprep.mubr.bf16.mxu0 %v1405
    %1439 = vmatmul.mubr.bf16.gmra.mrb[0].mxu0 %v1404
    %v1440 = vpop.f32.mrb[0].mxu0
    %v1441 = vadd.f32 %v192, %v1440
    %v1442 = vpop.f32.mrb[0].mxu0
    %v1443 = vadd.f32 %v196, %v1442
    %v1444 = vpop.f32.mrb[0].mxu0
    %v1445 = vpop.f32.mrb[0].mxu0
    %1446 = vdwg.mxu0
    %1447 = vmatprep.subr.bf16.mxu0 %v838
    %1448 = vmatpush1.bf16.msra.mxu0 %v837
    %1449 = vmatprep.subr.bf16.mxu0 %v842
    %1450 = vmatpush1.bf16.msra.mxu0 %v841
    %1451 = vmatprep.subr.bf16.mxu0 %v846
    %1452 = vmatpush1.bf16.msra.mxu0 %v845
    %1453 = vmatprep.subr.bf16.mxu0 %v850
    %1454 = vmatpush1.bf16.msra.mxu0 %v849
    %1455 = vmatprep.subr.bf16.mxu0 %v854
    %1456 = vmatpush1.bf16.msra.mxu0 %v853
    %1457 = vmatprep.subr.bf16.mxu0 %v858
    %1458 = vmatpush1.bf16.msra.mxu0 %v857
    %1459 = vmatprep.subr.bf16.mxu0 %v862
    %1460 = vmatpush1.bf16.msra.mxu0 %v861
    %1461 = vmatprep.subr.bf16.mxu0 %v866
    %1462 = vmatpush1.bf16.msra.mxu0 %v865
    %1463 = vmatprep.subr.bf16.mxu0 %v870
    %1464 = vmatpush1.bf16.msra.mxu0 %v869
    %1465 = vmatprep.subr.bf16.mxu0 %v874
    %1466 = vmatpush1.bf16.msra.mxu0 %v873
    %1467 = vmatprep.subr.bf16.mxu0 %v878
    %1468 = vmatpush1.bf16.msra.mxu0 %v877
    %1469 = vmatprep.subr.bf16.mxu0 %v882
    %1470 = vmatpush1.bf16.msra.mxu0 %v881
    %1471 = vmatprep.subr.bf16.mxu0 %v886
    %1472 = vmatpush1.bf16.msra.mxu0 %v885
    %1473 = vmatprep.subr.bf16.mxu0 %v890
    %1474 = vmatpush1.bf16.msra.mxu0 %v889
    %1475 = vmatprep.subr.bf16.mxu0 %v894
    %1476 = vmatpush1.bf16.msra.mxu0 %v893
    %1477 = vmatprep.subr.bf16.mxu0 %v898
    %1478 = vmatpush1.bf16.msra.mxu0 %v897
    %1479 = vmatprep.mubr.bf16.mxu0 %v1405
    %1480 = vmatmul.mubr.bf16.gmra.mrb[0].mxu0 %v1404
    %v1481 = vpop.f32.mrb[0].mxu0
    %v1482 = vadd.f32 %v200, %v1481
    %v1483 = vpop.f32.mrb[0].mxu0
    %v1484 = vadd.f32 %v204, %v1483
    %v1485 = vpop.f32.mrb[0].mxu0
    %v1486 = vpop.f32.mrb[0].mxu0
    %1487 = vdwg.mxu0
    %v1488 = vtanh.pop %v1441
    %v1489 = vtanh.pop %v1443
    %v1490 = vtanh.pop %v1482
    %v1491 = vtanh.pop %v1484
    %v1492 = vmul.f32 %v1488, 0.5
    %v1493 = vadd.f32 %v1492, 0.5
    %v1494 = vmul.f32 %v1489, 0.5
    %v1495 = vadd.f32 %v1494, 0.5
    %v1496 = vmul.f32 %v1491, 0.5
    %v1497 = vadd.f32 %v1496, 0.5
    %v1498 = vmul.f32 %v1495, %v1283
    %v1499 = vmul.f32 %v1493, %v1490
    %v1500 = vadd.f32 %v1498, %v1499
    %v1501 = vtanh.pop %v1500
    %v1502 = vmul.f32 %v1497, %v1501
    %s1503 = sadd.s32 %s209, 2
    %p1504 = scmp.eq.s32.totalorder %s1503, 7
    // Predicated region
    $region42: #{lstm_df_forward.3} parent=1 // pred_check
      %p1505 = pneg %p1504
    $region43: #{lstm_df_forward.3} parent=1 // pred_check_branch
      %1507 = sbr.rel (%p1505) target = $region45
    $region44: #{lstm_df_forward.3} parent=1 // pred_region
      %1508 = vst [vmem:[#allocation6] sm:$0x3] %v1502
      %1509 = vst [vmem:[#allocation7] sm:$0x3] %v1500
    $region45: #{lstm_df_forward.3} parent=1 // pred_fallthru
      _
    %vm1510 = vcmask 1044484
    %v1511 = vsel %vm1510, %v218, %v214
    %v1514 = vrot.slane %v1403, 5
    %v1516 = vpack.c.bf16 %v1511, %v1511
    %v1517 = vpack.c.bf16 %v1514, %v1514
    %v1519 = vshrl.u32 %v1516, 16
    %v1521 = vrot.slane %v1519, 1
    %v1522 = vshll.u32 %v1516, 16
    %v1524 = vrot.slane %v1522, 2
    %v1525 = vor.u32 %v1521, %v1524
    %v1527 = vshrl.u32 %v1517, 16
    %v1529 = vrot.slane %v1527, 1
    %v1530 = vshll.u32 %v1517, 16
    %v1532 = vrot.slane %v1530, 2
    %v1533 = vor.u32 %v1529, %v1532
    %1536 = vmatprep.subr.bf16.mxu0 %v417
    %1537 = vmatpush1.bf16.msra.mxu0 %v416
    %1538 = vmatprep.subr.bf16.mxu0 %v421
    %1539 = vmatpush1.bf16.msra.mxu0 %v420
    %1540 = vmatprep.subr.bf16.mxu0 %v425
    %1541 = vmatpush1.bf16.msra.mxu0 %v424
    %1542 = vmatprep.subr.bf16.mxu0 %v429
    %1543 = vmatpush1.bf16.msra.mxu0 %v428
    %1544 = vmatprep.subr.bf16.mxu0 %v433
    %1545 = vmatpush1.bf16.msra.mxu0 %v432
    %1546 = vmatprep.subr.bf16.mxu0 %v437
    %1547 = vmatpush1.bf16.msra.mxu0 %v436
    %1548 = vmatprep.subr.bf16.mxu0 %v441
    %1549 = vmatpush1.bf16.msra.mxu0 %v440
    %1550 = vmatprep.subr.bf16.mxu0 %v445
    %1551 = vmatpush1.bf16.msra.mxu0 %v444
    %1552 = vmatprep.subr.bf16.mxu0 %v449
    %1553 = vmatpush1.bf16.msra.mxu0 %v448
    %1554 = vmatprep.subr.bf16.mxu0 %v453
    %1555 = vmatpush1.bf16.msra.mxu0 %v452
    %1556 = vmatprep.subr.bf16.mxu0 %v457
    %1557 = vmatpush1.bf16.msra.mxu0 %v456
    %1558 = vmatprep.subr.bf16.mxu0 %v461
    %1559 = vmatpush1.bf16.msra.mxu0 %v460
    %1560 = vmatprep.subr.bf16.mxu0 %v465
    %1561 = vmatpush1.bf16.msra.mxu0 %v464
    %1562 = vmatprep.subr.bf16.mxu0 %v469
    %1563 = vmatpush1.bf16.msra.mxu0 %v468
    %1564 = vmatprep.subr.bf16.mxu0 %v473
    %1565 = vmatpush1.bf16.msra.mxu0 %v472
    %1566 = vmatprep.subr.bf16.mxu0 %v477
    %1567 = vmatpush1.bf16.msra.mxu0 %v476
    %1568 = vmatprep.mubr.bf16.mxu0 %v1533
    %1569 = vmatmul.mubr.bf16.gmra.mrb[0].mxu0 %v1525
    %v1570 = vpop.f32.mrb[0].mxu0
    %v1571 = vadd.f32 %v170, %v1570
    %v1572 = vpop.f32.mrb[0].mxu0
    %v1573 = vadd.f32 %v174, %v1572
    %v1574 = vpop.f32.mrb[0].mxu0
    %v1575 = vpop.f32.mrb[0].mxu0
    %1576 = vdwg.mxu0
    %1577 = vmatprep.subr.bf16.mxu0 %v419
    %1578 = vmatpush1.bf16.msra.mxu0 %v418
    %1579 = vmatprep.subr.bf16.mxu0 %v423
    %1580 = vmatpush1.bf16.msra.mxu0 %v422
    %1581 = vmatprep.subr.bf16.mxu0 %v427
    %1582 = vmatpush1.bf16.msra.mxu0 %v426
    %1583 = vmatprep.subr.bf16.mxu0 %v431
    %1584 = vmatpush1.bf16.msra.mxu0 %v430
    %1585 = vmatprep.subr.bf16.mxu0 %v435
    %1586 = vmatpush1.bf16.msra.mxu0 %v434
    %1587 = vmatprep.subr.bf16.mxu0 %v439
    %1588 = vmatpush1.bf16.msra.mxu0 %v438
    %1589 = vmatprep.subr.bf16.mxu0 %v443
    %1590 = vmatpush1.bf16.msra.mxu0 %v442
    %1591 = vmatprep.subr.bf16.mxu0 %v447
    %1592 = vmatpush1.bf16.msra.mxu0 %v446
    %1593 = vmatprep.subr.bf16.mxu0 %v451
    %1594 = vmatpush1.bf16.msra.mxu0 %v450
    %1595 = vmatprep.subr.bf16.mxu0 %v455
    %1596 = vmatpush1.bf16.msra.mxu0 %v454
    %1597 = vmatprep.subr.bf16.mxu0 %v459
    %1598 = vmatpush1.bf16.msra.mxu0 %v458
    %1599 = vmatprep.subr.bf16.mxu0 %v463
    %1600 = vmatpush1.bf16.msra.mxu0 %v462
    %1601 = vmatprep.subr.bf16.mxu0 %v467
    %1602 = vmatpush1.bf16.msra.mxu0 %v466
    %1603 = vmatprep.subr.bf16.mxu0 %v471
    %1604 = vmatpush1.bf16.msra.mxu0 %v470
    %1605 = vmatprep.subr.bf16.mxu0 %v475
    %1606 = vmatpush1.bf16.msra.mxu0 %v474
    %1607 = vmatprep.subr.bf16.mxu0 %v479
    %1608 = vmatpush1.bf16.msra.mxu0 %v478
    %1609 = vmatprep.mubr.bf16.mxu0 %v1533
    %1610 = vmatmul.mubr.bf16.gmra.mrb[0].mxu0 %v1525
    %v1611 = vpop.f32.mrb[0].mxu0
    %v1612 = vadd.f32 %v178, %v1611
    %v1613 = vpop.f32.mrb[0].mxu0
    %v1614 = vadd.f32 %v182, %v1613
    %v1615 = vpop.f32.mrb[0].mxu0
    %v1616 = vpop.f32.mrb[0].mxu0
    %1617 = vdwg.mxu0
    %v1618 = vtanh.pop %v1571
    %v1619 = vtanh.pop %v1573
    %v1620 = vtanh.pop %v1612
    %v1621 = vtanh.pop %v1614
    %v1622 = vmul.f32 %v1618, 0.5
    %v1623 = vadd.f32 %v1622, 0.5
    %v1624 = vmul.f32 %v1619, 0.5
    %v1625 = vadd.f32 %v1624, 0.5
    %v1626 = vmul.f32 %v1621, 0.5
    %v1627 = vadd.f32 %v1626, 0.5
    %v1628 = vmul.f32 %v1625, %v1401
    %v1629 = vmul.f32 %v1623, %v1620
    %v1630 = vadd.f32 %v1628, %v1629
    %v1631 = vtanh.pop %v1630
    %v1632 = vmul.f32 %v1627, %v1631
    %v1633 = vpack.c.bf16 %v1632, %v1632
    %v1634 = vpack.c.bf16 %v1502, %v1502
    %1635 = vmatprep.subr.bf16.mxu0 %v836
    %1636 = vmatpush1.bf16.msra.mxu0 %v835
    %1637 = vmatprep.subr.bf16.mxu0 %v840
    %1638 = vmatpush1.bf16.msra.mxu0 %v839
    %1639 = vmatprep.subr.bf16.mxu0 %v844
    %1640 = vmatpush1.bf16.msra.mxu0 %v843
    %1641 = vmatprep.subr.bf16.mxu0 %v848
    %1642 = vmatpush1.bf16.msra.mxu0 %v847
    %1643 = vmatprep.subr.bf16.mxu0 %v852
    %1644 = vmatpush1.bf16.msra.mxu0 %v851
    %1645 = vmatprep.subr.bf16.mxu0 %v856
    %1646 = vmatpush1.bf16.msra.mxu0 %v855
    %1647 = vmatprep.subr.bf16.mxu0 %v860
    %1648 = vmatpush1.bf16.msra.mxu0 %v859
    %1649 = vmatprep.subr.bf16.mxu0 %v864
    %1650 = vmatpush1.bf16.msra.mxu0 %v863
    %1651 = vmatprep.subr.bf16.mxu0 %v868
    %1652 = vmatpush1.bf16.msra.mxu0 %v867
    %1653 = vmatprep.subr.bf16.mxu0 %v872
    %1654 = vmatpush1.bf16.msra.mxu0 %v871
    %1655 = vmatprep.subr.bf16.mxu0 %v876
    %1656 = vmatpush1.bf16.msra.mxu0 %v875
    %1657 = vmatprep.subr.bf16.mxu0 %v880
    %1658 = vmatpush1.bf16.msra.mxu0 %v879
    %1659 = vmatprep.subr.bf16.mxu0 %v884
    %1660 = vmatpush1.bf16.msra.mxu0 %v883
    %1661 = vmatprep.subr.bf16.mxu0 %v888
    %1662 = vmatpush1.bf16.msra.mxu0 %v887
    %1663 = vmatprep.subr.bf16.mxu0 %v892
    %1664 = vmatpush1.bf16.msra.mxu0 %v891
    %1665 = vmatprep.subr.bf16.mxu0 %v896
    %1666 = vmatpush1.bf16.msra.mxu0 %v895
    %1667 = vmatprep.mubr.bf16.mxu0 %v1634
    %1668 = vmatmul.mubr.bf16.gmra.mrb[0].mxu0 %v1633
    %v1669 = vpop.f32.mrb[0].mxu0
    %v1670 = vadd.f32 %v192, %v1669
    %v1671 = vpop.f32.mrb[0].mxu0
    %v1672 = vadd.f32 %v196, %v1671
    %v1673 = vpop.f32.mrb[0].mxu0
    %v1674 = vpop.f32.mrb[0].mxu0
    %1675 = vdwg.mxu0
    %1676 = vmatprep.subr.bf16.mxu0 %v838
    %1677 = vmatpush1.bf16.msra.mxu0 %v837
    %1678 = vmatprep.subr.bf16.mxu0 %v842
    %1679 = vmatpush1.bf16.msra.mxu0 %v841
    %1680 = vmatprep.subr.bf16.mxu0 %v846
    %1681 = vmatpush1.bf16.msra.mxu0 %v845
    %1682 = vmatprep.subr.bf16.mxu0 %v850
    %1683 = vmatpush1.bf16.msra.mxu0 %v849
    %1684 = vmatprep.subr.bf16.mxu0 %v854
    %1685 = vmatpush1.bf16.msra.mxu0 %v853
    %1686 = vmatprep.subr.bf16.mxu0 %v858
    %1687 = vmatpush1.bf16.msra.mxu0 %v857
    %1688 = vmatprep.subr.bf16.mxu0 %v862
    %1689 = vmatpush1.bf16.msra.mxu0 %v861
    %1690 = vmatprep.subr.bf16.mxu0 %v866
    %1691 = vmatpush1.bf16.msra.mxu0 %v865
    %1692 = vmatprep.subr.bf16.mxu0 %v870
    %1693 = vmatpush1.bf16.msra.mxu0 %v869
    %1694 = vmatprep.subr.bf16.mxu0 %v874
    %1695 = vmatpush1.bf16.msra.mxu0 %v873
    %1696 = vmatprep.subr.bf16.mxu0 %v878
    %1697 = vmatpush1.bf16.msra.mxu0 %v877
    %1698 = vmatprep.subr.bf16.mxu0 %v882
    %1699 = vmatpush1.bf16.msra.mxu0 %v881
    %1700 = vmatprep.subr.bf16.mxu0 %v886
    %1701 = vmatpush1.bf16.msra.mxu0 %v885
    %1702 = vmatprep.subr.bf16.mxu0 %v890
    %1703 = vmatpush1.bf16.msra.mxu0 %v889
    %1704 = vmatprep.subr.bf16.mxu0 %v894
    %1705 = vmatpush1.bf16.msra.mxu0 %v893
    %1706 = vmatprep.subr.bf16.mxu0 %v898
    %1707 = vmatpush1.bf16.msra.mxu0 %v897
    %1708 = vmatprep.mubr.bf16.mxu0 %v1634
    %1709 = vmatmul.mubr.bf16.gmra.mrb[0].mxu0 %v1633
    %v1710 = vpop.f32.mrb[0].mxu0
    %v1711 = vadd.f32 %v200, %v1710
    %v1712 = vpop.f32.mrb[0].mxu0
    %v1713 = vadd.f32 %v204, %v1712
    %v1714 = vpop.f32.mrb[0].mxu0
    %v1715 = vpop.f32.mrb[0].mxu0
    %1716 = vdwg.mxu0
    %v1717 = vtanh.pop %v1670
    %v1718 = vtanh.pop %v1672
    %v1719 = vtanh.pop %v1711
    %v1720 = vtanh.pop %v1713
    %v1721 = vmul.f32 %v1717, 0.5
    %v1722 = vadd.f32 %v1721, 0.5
    %v1723 = vmul.f32 %v1718, 0.5
    %v1724 = vadd.f32 %v1723, 0.5
    %v1725 = vmul.f32 %v1720, 0.5
    %v1726 = vadd.f32 %v1725, 0.5
    %v1727 = vmul.f32 %v1724, %v1500
    %v1728 = vmul.f32 %v1722, %v1719
    %v1729 = vadd.f32 %v1727, %v1728
    %v1730 = vtanh.pop %v1729
    %v1731 = vmul.f32 %v1726, %v1730
    %s1732 = sadd.s32 %s209, 3
    %p1733 = scmp.eq.s32.totalorder %s1732, 7
    // Predicated region
    $region46: #{lstm_df_forward.3} parent=1 // pred_check
      %p1734 = pneg %p1733
    $region47: #{lstm_df_forward.3} parent=1 // pred_check_branch
      %1736 = sbr.rel (%p1734) target = $region49
    $region48: #{lstm_df_forward.3} parent=1 // pred_region
      %1737 = vst [vmem:[#allocation6] sm:$0x3] %v1731
      %1738 = vst [vmem:[#allocation7] sm:$0x3] %v1729
    $region49: #{lstm_df_forward.3} parent=1 // pred_fallthru
      _
    %vm1739 = vcmask 1045509
    %v1740 = vsel %vm1739, %v218, %v214
    %v1743 = vrot.slane %v1632, 4
    %v1745 = vpack.c.bf16 %v1740, %v1740
    %v1746 = vpack.c.bf16 %v1743, %v1743
    %v1749 = vrot.slane %v1745, 2
    %v1750 = vrot.slane %v1746, 2
    %1753 = vmatprep.subr.bf16.mxu0 %v417
    %1754 = vmatpush1.bf16.msra.mxu0 %v416
    %1755 = vmatprep.subr.bf16.mxu0 %v421
    %1756 = vmatpush1.bf16.msra.mxu0 %v420
    %1757 = vmatprep.subr.bf16.mxu0 %v425
    %1758 = vmatpush1.bf16.msra.mxu0 %v424
    %1759 = vmatprep.subr.bf16.mxu0 %v429
    %1760 = vmatpush1.bf16.msra.mxu0 %v428
    %1761 = vmatprep.subr.bf16.mxu0 %v433
    %1762 = vmatpush1.bf16.msra.mxu0 %v432
    %1763 = vmatprep.subr.bf16.mxu0 %v437
    %1764 = vmatpush1.bf16.msra.mxu0 %v436
    %1765 = vmatprep.subr.bf16.mxu0 %v441
    %1766 = vmatpush1.bf16.msra.mxu0 %v440
    %1767 = vmatprep.subr.bf16.mxu0 %v445
    %1768 = vmatpush1.bf16.msra.mxu0 %v444
    %1769 = vmatprep.subr.bf16.mxu0 %v449
    %1770 = vmatpush1.bf16.msra.mxu0 %v448
    %1771 = vmatprep.subr.bf16.mxu0 %v453
    %1772 = vmatpush1.bf16.msra.mxu0 %v452
    %1773 = vmatprep.subr.bf16.mxu0 %v457
    %1774 = vmatpush1.bf16.msra.mxu0 %v456
    %1775 = vmatprep.subr.bf16.mxu0 %v461
    %1776 = vmatpush1.bf16.msra.mxu0 %v460
    %1777 = vmatprep.subr.bf16.mxu0 %v465
    %1778 = vmatpush1.bf16.msra.mxu0 %v464
    %1779 = vmatprep.subr.bf16.mxu0 %v469
    %1780 = vmatpush1.bf16.msra.mxu0 %v468
    %1781 = vmatprep.subr.bf16.mxu0 %v473
    %1782 = vmatpush1.bf16.msra.mxu0 %v472
    %1783 = vmatprep.subr.bf16.mxu0 %v477
    %1784 = vmatpush1.bf16.msra.mxu0 %v476
    %1785 = vmatprep.mubr.bf16.mxu0 %v1750
    %1786 = vmatmul.mubr.bf16.gmra.mrb[0].mxu0 %v1749
    %v1787 = vpop.f32.mrb[0].mxu0
    %v1788 = vadd.f32 %v170, %v1787
    %v1789 = vpop.f32.mrb[0].mxu0
    %v1790 = vadd.f32 %v174, %v1789
    %v1791 = vpop.f32.mrb[0].mxu0
    %v1792 = vpop.f32.mrb[0].mxu0
    %1793 = vdwg.mxu0
    %1794 = vmatprep.subr.bf16.mxu0 %v419
    %1795 = vmatpush1.bf16.msra.mxu0 %v418
    %1796 = vmatprep.subr.bf16.mxu0 %v423
    %1797 = vmatpush1.bf16.msra.mxu0 %v422
    %1798 = vmatprep.subr.bf16.mxu0 %v427
    %1799 = vmatpush1.bf16.msra.mxu0 %v426
    %1800 = vmatprep.subr.bf16.mxu0 %v431
    %1801 = vmatpush1.bf16.msra.mxu0 %v430
    %1802 = vmatprep.subr.bf16.mxu0 %v435
    %1803 = vmatpush1.bf16.msra.mxu0 %v434
    %1804 = vmatprep.subr.bf16.mxu0 %v439
    %1805 = vmatpush1.bf16.msra.mxu0 %v438
    %1806 = vmatprep.subr.bf16.mxu0 %v443
    %1807 = vmatpush1.bf16.msra.mxu0 %v442
    %1808 = vmatprep.subr.bf16.mxu0 %v447
    %1809 = vmatpush1.bf16.msra.mxu0 %v446
    %1810 = vmatprep.subr.bf16.mxu0 %v451
    %1811 = vmatpush1.bf16.msra.mxu0 %v450
    %1812 = vmatprep.subr.bf16.mxu0 %v455
    %1813 = vmatpush1.bf16.msra.mxu0 %v454
    %1814 = vmatprep.subr.bf16.mxu0 %v459
    %1815 = vmatpush1.bf16.msra.mxu0 %v458
    %1816 = vmatprep.subr.bf16.mxu0 %v463
    %1817 = vmatpush1.bf16.msra.mxu0 %v462
    %1818 = vmatprep.subr.bf16.mxu0 %v467
    %1819 = vmatpush1.bf16.msra.mxu0 %v466
    %1820 = vmatprep.subr.bf16.mxu0 %v471
    %1821 = vmatpush1.bf16.msra.mxu0 %v470
    %1822 = vmatprep.subr.bf16.mxu0 %v475
    %1823 = vmatpush1.bf16.msra.mxu0 %v474
    %1824 = vmatprep.subr.bf16.mxu0 %v479
    %1825 = vmatpush1.bf16.msra.mxu0 %v478
    %1826 = vmatprep.mubr.bf16.mxu0 %v1750
    %1827 = vmatmul.mubr.bf16.gmra.mrb[0].mxu0 %v1749
    %v1828 = vpop.f32.mrb[0].mxu0
    %v1829 = vadd.f32 %v178, %v1828
    %v1830 = vpop.f32.mrb[0].mxu0
    %v1831 = vadd.f32 %v182, %v1830
    %v1832 = vpop.f32.mrb[0].mxu0
    %v1833 = vpop.f32.mrb[0].mxu0
    %1834 = vdwg.mxu0
    %v1835 = vtanh.pop %v1788
    %v1836 = vtanh.pop %v1790
    %v1837 = vtanh.pop %v1829
    %v1838 = vtanh.pop %v1831
    %v1839 = vmul.f32 %v1835, 0.5
    %v1840 = vadd.f32 %v1839, 0.5
    %v1841 = vmul.f32 %v1836, 0.5
    %v1842 = vadd.f32 %v1841, 0.5
    %v1843 = vmul.f32 %v1838, 0.5
    %v1844 = vadd.f32 %v1843, 0.5
    %v1845 = vmul.f32 %v1842, %v1630
    %v1846 = vmul.f32 %v1840, %v1837
    %v1847 = vadd.f32 %v1845, %v1846
    %v1848 = vtanh.pop %v1847
    %v1849 = vmul.f32 %v1844, %v1848
    %v1850 = vpack.c.bf16 %v1849, %v1849
    %v1851 = vpack.c.bf16 %v1731, %v1731
    %1852 = vmatprep.subr.bf16.mxu0 %v836
    %1853 = vmatpush1.bf16.msra.mxu0 %v835
    %1854 = vmatprep.subr.bf16.mxu0 %v840
    %1855 = vmatpush1.bf16.msra.mxu0 %v839
    %1856 = vmatprep.subr.bf16.mxu0 %v844
    %1857 = vmatpush1.bf16.msra.mxu0 %v843
    %1858 = vmatprep.subr.bf16.mxu0 %v848
    %1859 = vmatpush1.bf16.msra.mxu0 %v847
    %1860 = vmatprep.subr.bf16.mxu0 %v852
    %1861 = vmatpush1.bf16.msra.mxu0 %v851
    %1862 = vmatprep.subr.bf16.mxu0 %v856
    %1863 = vmatpush1.bf16.msra.mxu0 %v855
    %1864 = vmatprep.subr.bf16.mxu0 %v860
    %1865 = vmatpush1.bf16.msra.mxu0 %v859
    %1866 = vmatprep.subr.bf16.mxu0 %v864
    %1867 = vmatpush1.bf16.msra.mxu0 %v863
    %1868 = vmatprep.subr.bf16.mxu0 %v868
    %1869 = vmatpush1.bf16.msra.mxu0 %v867
    %1870 = vmatprep.subr.bf16.mxu0 %v872
    %1871 = vmatpush1.bf16.msra.mxu0 %v871
    %1872 = vmatprep.subr.bf16.mxu0 %v876
    %1873 = vmatpush1.bf16.msra.mxu0 %v875
    %1874 = vmatprep.subr.bf16.mxu0 %v880
    %1875 = vmatpush1.bf16.msra.mxu0 %v879
    %1876 = vmatprep.subr.bf16.mxu0 %v884
    %1877 = vmatpush1.bf16.msra.mxu0 %v883
    %1878 = vmatprep.subr.bf16.mxu0 %v888
    %1879 = vmatpush1.bf16.msra.mxu0 %v887
    %1880 = vmatprep.subr.bf16.mxu0 %v892
    %1881 = vmatpush1.bf16.msra.mxu0 %v891
    %1882 = vmatprep.subr.bf16.mxu0 %v896
    %1883 = vmatpush1.bf16.msra.mxu0 %v895
    %1884 = vmatprep.mubr.bf16.mxu0 %v1851
    %1885 = vmatmul.mubr.bf16.gmra.mrb[0].mxu0 %v1850
    %v1886 = vpop.f32.mrb[0].mxu0
    %v1887 = vadd.f32 %v192, %v1886
    %v1888 = vpop.f32.mrb[0].mxu0
    %v1889 = vadd.f32 %v196, %v1888
    %v1890 = vpop.f32.mrb[0].mxu0
    %v1891 = vpop.f32.mrb[0].mxu0
    %1892 = vdwg.mxu0
    %1893 = vmatprep.subr.bf16.mxu0 %v838
    %1894 = vmatpush1.bf16.msra.mxu0 %v837
    %1895 = vmatprep.subr.bf16.mxu0 %v842
    %1896 = vmatpush1.bf16.msra.mxu0 %v841
    %1897 = vmatprep.subr.bf16.mxu0 %v846
    %1898 = vmatpush1.bf16.msra.mxu0 %v845
    %1899 = vmatprep.subr.bf16.mxu0 %v850
    %1900 = vmatpush1.bf16.msra.mxu0 %v849
    %1901 = vmatprep.subr.bf16.mxu0 %v854
    %1902 = vmatpush1.bf16.msra.mxu0 %v853
    %1903 = vmatprep.subr.bf16.mxu0 %v858
    %1904 = vmatpush1.bf16.msra.mxu0 %v857
    %1905 = vmatprep.subr.bf16.mxu0 %v862
    %1906 = vmatpush1.bf16.msra.mxu0 %v861
    %1907 = vmatprep.subr.bf16.mxu0 %v866
    %1908 = vmatpush1.bf16.msra.mxu0 %v865
    %1909 = vmatprep.subr.bf16.mxu0 %v870
    %1910 = vmatpush1.bf16.msra.mxu0 %v869
    %1911 = vmatprep.subr.bf16.mxu0 %v874
    %1912 = vmatpush1.bf16.msra.mxu0 %v873
    %1913 = vmatprep.subr.bf16.mxu0 %v878
    %1914 = vmatpush1.bf16.msra.mxu0 %v877
    %1915 = vmatprep.subr.bf16.mxu0 %v882
    %1916 = vmatpush1.bf16.msra.mxu0 %v881
    %1917 = vmatprep.subr.bf16.mxu0 %v886
    %1918 = vmatpush1.bf16.msra.mxu0 %v885
    %1919 = vmatprep.subr.bf16.mxu0 %v890
    %1920 = vmatpush1.bf16.msra.mxu0 %v889
    %1921 = vmatprep.subr.bf16.mxu0 %v894
    %1922 = vmatpush1.bf16.msra.mxu0 %v893
    %1923 = vmatprep.subr.bf16.mxu0 %v898
    %1924 = vmatpush1.bf16.msra.mxu0 %v897
    %1925 = vmatprep.mubr.bf16.mxu0 %v1851
    %1926 = vmatmul.mubr.bf16.gmra.mrb[0].mxu0 %v1850
    %v1927 = vpop.f32.mrb[0].mxu0
    %v1928 = vadd.f32 %v200, %v1927
    %v1929 = vpop.f32.mrb[0].mxu0
    %v1930 = vadd.f32 %v204, %v1929
    %v1931 = vpop.f32.mrb[0].mxu0
    %v1932 = vpop.f32.mrb[0].mxu0
    %1933 = vdwg.mxu0
    %v1934 = vtanh.pop %v1887
    %v1935 = vtanh.pop %v1889
    %v1936 = vtanh.pop %v1928
    %v1937 = vtanh.pop %v1930
    %v1938 = vmul.f32 %v1934, 0.5
    %v1939 = vadd.f32 %v1938, 0.5
    %v1940 = vmul.f32 %v1935, 0.5
    %v1941 = vadd.f32 %v1940, 0.5
    %v1942 = vmul.f32 %v1937, 0.5
    %v1943 = vadd.f32 %v1942, 0.5
    %v1944 = vmul.f32 %v1941, %v1729
    %v1945 = vmul.f32 %v1939, %v1936
    %v1946 = vadd.f32 %v1944, %v1945
    %v1947 = vtanh.pop %v1946
    %v1948 = vmul.f32 %v1943, %v1947
    %s1949 = sadd.s32 %s209, 4
    %p1950 = scmp.eq.s32.totalorder %s1949, 7
    // Predicated region
    $region50: #{lstm_df_forward.3} parent=1 // pred_check
      %p1951 = pneg %p1950
    $region51: #{lstm_df_forward.3} parent=1 // pred_check_branch
      %1953 = sbr.rel (%p1951) target = $region53
    $region52: #{lstm_df_forward.3} parent=1 // pred_region
      %1954 = vst [vmem:[#allocation6] sm:$0x3] %v1948
      %1955 = vst [vmem:[#allocation7] sm:$0x3] %v1946
    $region53: #{lstm_df_forward.3} parent=1 // pred_fallthru
      _
    %vm1956 = vcmask 1046534
    %v1957 = vsel %vm1956, %v218, %v214
    %v1960 = vrot.slane %v1849, 3
    %v1962 = vpack.c.bf16 %v1957, %v1957
    %v1963 = vpack.c.bf16 %v1960, %v1960
    %v1965 = vshrl.u32 %v1962, 16
    %v1967 = vrot.slane %v1965, 2
    %v1968 = vshll.u32 %v1962, 16
    %v1970 = vrot.slane %v1968, 3
    %v1971 = vor.u32 %v1967, %v1970
    %v1973 = vshrl.u32 %v1963, 16
    %v1975 = vrot.slane %v1973, 2
    %v1976 = vshll.u32 %v1963, 16
    %v1978 = vrot.slane %v1976, 3
    %v1979 = vor.u32 %v1975, %v1978
    %1982 = vmatprep.subr.bf16.mxu0 %v417
    %1983 = vmatpush1.bf16.msra.mxu0 %v416
    %1984 = vmatprep.subr.bf16.mxu0 %v421
    %1985 = vmatpush1.bf16.msra.mxu0 %v420
    %1986 = vmatprep.subr.bf16.mxu0 %v425
    %1987 = vmatpush1.bf16.msra.mxu0 %v424
    %1988 = vmatprep.subr.bf16.mxu0 %v429
    %1989 = vmatpush1.bf16.msra.mxu0 %v428
    %1990 = vmatprep.subr.bf16.mxu0 %v433
    %1991 = vmatpush1.bf16.msra.mxu0 %v432
    %1992 = vmatprep.subr.bf16.mxu0 %v437
    %1993 = vmatpush1.bf16.msra.mxu0 %v436
    %1994 = vmatprep.subr.bf16.mxu0 %v441
    %1995 = vmatpush1.bf16.msra.mxu0 %v440
    %1996 = vmatprep.subr.bf16.mxu0 %v445
    %1997 = vmatpush1.bf16.msra.mxu0 %v444
    %1998 = vmatprep.subr.bf16.mxu0 %v449
    %1999 = vmatpush1.bf16.msra.mxu0 %v448
    %2000 = vmatprep.subr.bf16.mxu0 %v453
    %2001 = vmatpush1.bf16.msra.mxu0 %v452
    %2002 = vmatprep.subr.bf16.mxu0 %v457
    %2003 = vmatpush1.bf16.msra.mxu0 %v456
    %2004 = vmatprep.subr.bf16.mxu0 %v461
    %2005 = vmatpush1.bf16.msra.mxu0 %v460
    %2006 = vmatprep.subr.bf16.mxu0 %v465
    %2007 = vmatpush1.bf16.msra.mxu0 %v464
    %2008 = vmatprep.subr.bf16.mxu0 %v469
    %2009 = vmatpush1.bf16.msra.mxu0 %v468
    %2010 = vmatprep.subr.bf16.mxu0 %v473
    %2011 = vmatpush1.bf16.msra.mxu0 %v472
    %2012 = vmatprep.subr.bf16.mxu0 %v477
    %2013 = vmatpush1.bf16.msra.mxu0 %v476
    %2014 = vmatprep.mubr.bf16.mxu0 %v1979
    %2015 = vmatmul.mubr.bf16.gmra.mrb[0].mxu0 %v1971
    %v2016 = vpop.f32.mrb[0].mxu0
    %v2017 = vadd.f32 %v170, %v2016
    %v2018 = vpop.f32.mrb[0].mxu0
    %v2019 = vadd.f32 %v174, %v2018
    %v2020 = vpop.f32.mrb[0].mxu0
    %v2021 = vpop.f32.mrb[0].mxu0
    %2022 = vdwg.mxu0
    %2023 = vmatprep.subr.bf16.mxu0 %v419
    %2024 = vmatpush1.bf16.msra.mxu0 %v418
    %2025 = vmatprep.subr.bf16.mxu0 %v423
    %2026 = vmatpush1.bf16.msra.mxu0 %v422
    %2027 = vmatprep.subr.bf16.mxu0 %v427
    %2028 = vmatpush1.bf16.msra.mxu0 %v426
    %2029 = vmatprep.subr.bf16.mxu0 %v431
    %2030 = vmatpush1.bf16.msra.mxu0 %v430
    %2031 = vmatprep.subr.bf16.mxu0 %v435
    %2032 = vmatpush1.bf16.msra.mxu0 %v434
    %2033 = vmatprep.subr.bf16.mxu0 %v439
    %2034 = vmatpush1.bf16.msra.mxu0 %v438
    %2035 = vmatprep.subr.bf16.mxu0 %v443
    %2036 = vmatpush1.bf16.msra.mxu0 %v442
    %2037 = vmatprep.subr.bf16.mxu0 %v447
    %2038 = vmatpush1.bf16.msra.mxu0 %v446
    %2039 = vmatprep.subr.bf16.mxu0 %v451
    %2040 = vmatpush1.bf16.msra.mxu0 %v450
    %2041 = vmatprep.subr.bf16.mxu0 %v455
    %2042 = vmatpush1.bf16.msra.mxu0 %v454
    %2043 = vmatprep.subr.bf16.mxu0 %v459
    %2044 = vmatpush1.bf16.msra.mxu0 %v458
    %2045 = vmatprep.subr.bf16.mxu0 %v463
    %2046 = vmatpush1.bf16.msra.mxu0 %v462
    %2047 = vmatprep.subr.bf16.mxu0 %v467
    %2048 = vmatpush1.bf16.msra.mxu0 %v466
    %2049 = vmatprep.subr.bf16.mxu0 %v471
    %2050 = vmatpush1.bf16.msra.mxu0 %v470
    %2051 = vmatprep.subr.bf16.mxu0 %v475
    %2052 = vmatpush1.bf16.msra.mxu0 %v474
    %2053 = vmatprep.subr.bf16.mxu0 %v479
    %2054 = vmatpush1.bf16.msra.mxu0 %v478
    %2055 = vmatprep.mubr.bf16.mxu0 %v1979
    %2056 = vmatmul.mubr.bf16.gmra.mrb[0].mxu0 %v1971
    %v2057 = vpop.f32.mrb[0].mxu0
    %v2058 = vadd.f32 %v178, %v2057
    %v2059 = vpop.f32.mrb[0].mxu0
    %v2060 = vadd.f32 %v182, %v2059
    %v2061 = vpop.f32.mrb[0].mxu0
    %v2062 = vpop.f32.mrb[0].mxu0
    %2063 = vdwg.mxu0
    %v2064 = vtanh.pop %v2017
    %v2065 = vtanh.pop %v2019
    %v2066 = vtanh.pop %v2058
    %v2067 = vtanh.pop %v2060
    %v2068 = vmul.f32 %v2064, 0.5
    %v2069 = vadd.f32 %v2068, 0.5
    %v2070 = vmul.f32 %v2065, 0.5
    %v2071 = vadd.f32 %v2070, 0.5
    %v2072 = vmul.f32 %v2067, 0.5
    %v2073 = vadd.f32 %v2072, 0.5
    %v2074 = vmul.f32 %v2071, %v1847
    %v2075 = vmul.f32 %v2069, %v2066
    %v2076 = vadd.f32 %v2074, %v2075
    %v2077 = vtanh.pop %v2076
    %v2078 = vmul.f32 %v2073, %v2077
    %v2079 = vpack.c.bf16 %v2078, %v2078
    %v2080 = vpack.c.bf16 %v1948, %v1948
    %2081 = vmatprep.subr.bf16.mxu0 %v836
    %2082 = vmatpush1.bf16.msra.mxu0 %v835
    %2083 = vmatprep.subr.bf16.mxu0 %v840
    %2084 = vmatpush1.bf16.msra.mxu0 %v839
    %2085 = vmatprep.subr.bf16.mxu0 %v844
    %2086 = vmatpush1.bf16.msra.mxu0 %v843
    %2087 = vmatprep.subr.bf16.mxu0 %v848
    %2088 = vmatpush1.bf16.msra.mxu0 %v847
    %2089 = vmatprep.subr.bf16.mxu0 %v852
    %2090 = vmatpush1.bf16.msra.mxu0 %v851
    %2091 = vmatprep.subr.bf16.mxu0 %v856
    %2092 = vmatpush1.bf16.msra.mxu0 %v855
    %2093 = vmatprep.subr.bf16.mxu0 %v860
    %2094 = vmatpush1.bf16.msra.mxu0 %v859
    %2095 = vmatprep.subr.bf16.mxu0 %v864
    %2096 = vmatpush1.bf16.msra.mxu0 %v863
    %2097 = vmatprep.subr.bf16.mxu0 %v868
    %2098 = vmatpush1.bf16.msra.mxu0 %v867
    %2099 = vmatprep.subr.bf16.mxu0 %v872
    %2100 = vmatpush1.bf16.msra.mxu0 %v871
    %2101 = vmatprep.subr.bf16.mxu0 %v876
    %2102 = vmatpush1.bf16.msra.mxu0 %v875
    %2103 = vmatprep.subr.bf16.mxu0 %v880
    %2104 = vmatpush1.bf16.msra.mxu0 %v879
    %2105 = vmatprep.subr.bf16.mxu0 %v884
    %2106 = vmatpush1.bf16.msra.mxu0 %v883
    %2107 = vmatprep.subr.bf16.mxu0 %v888
    %2108 = vmatpush1.bf16.msra.mxu0 %v887
    %2109 = vmatprep.subr.bf16.mxu0 %v892
    %2110 = vmatpush1.bf16.msra.mxu0 %v891
    %2111 = vmatprep.subr.bf16.mxu0 %v896
    %2112 = vmatpush1.bf16.msra.mxu0 %v895
    %2113 = vmatprep.mubr.bf16.mxu0 %v2080
    %2114 = vmatmul.mubr.bf16.gmra.mrb[0].mxu0 %v2079
    %v2115 = vpop.f32.mrb[0].mxu0
    %v2116 = vadd.f32 %v192, %v2115
    %v2117 = vpop.f32.mrb[0].mxu0
    %v2118 = vadd.f32 %v196, %v2117
    %v2119 = vpop.f32.mrb[0].mxu0
    %v2120 = vpop.f32.mrb[0].mxu0
    %2121 = vdwg.mxu0
    %2122 = vmatprep.subr.bf16.mxu0 %v838
    %2123 = vmatpush1.bf16.msra.mxu0 %v837
    %2124 = vmatprep.subr.bf16.mxu0 %v842
    %2125 = vmatpush1.bf16.msra.mxu0 %v841
    %2126 = vmatprep.subr.bf16.mxu0 %v846
    %2127 = vmatpush1.bf16.msra.mxu0 %v845
    %2128 = vmatprep.subr.bf16.mxu0 %v850
    %2129 = vmatpush1.bf16.msra.mxu0 %v849
    %2130 = vmatprep.subr.bf16.mxu0 %v854
    %2131 = vmatpush1.bf16.msra.mxu0 %v853
    %2132 = vmatprep.subr.bf16.mxu0 %v858
    %2133 = vmatpush1.bf16.msra.mxu0 %v857
    %2134 = vmatprep.subr.bf16.mxu0 %v862
    %2135 = vmatpush1.bf16.msra.mxu0 %v861
    %2136 = vmatprep.subr.bf16.mxu0 %v866
    %2137 = vmatpush1.bf16.msra.mxu0 %v865
    %2138 = vmatprep.subr.bf16.mxu0 %v870
    %2139 = vmatpush1.bf16.msra.mxu0 %v869
    %2140 = vmatprep.subr.bf16.mxu0 %v874
    %2141 = vmatpush1.bf16.msra.mxu0 %v873
    %2142 = vmatprep.subr.bf16.mxu0 %v878
    %2143 = vmatpush1.bf16.msra.mxu0 %v877
    %2144 = vmatprep.subr.bf16.mxu0 %v882
    %2145 = vmatpush1.bf16.msra.mxu0 %v881
    %2146 = vmatprep.subr.bf16.mxu0 %v886
    %2147 = vmatpush1.bf16.msra.mxu0 %v885
    %2148 = vmatprep.subr.bf16.mxu0 %v890
    %2149 = vmatpush1.bf16.msra.mxu0 %v889
    %2150 = vmatprep.subr.bf16.mxu0 %v894
    %2151 = vmatpush1.bf16.msra.mxu0 %v893
    %2152 = vmatprep.subr.bf16.mxu0 %v898
    %2153 = vmatpush1.bf16.msra.mxu0 %v897
    %2154 = vmatprep.mubr.bf16.mxu0 %v2080
    %2155 = vmatmul.mubr.bf16.gmra.mrb[0].mxu0 %v2079
    %v2156 = vpop.f32.mrb[0].mxu0
    %v2157 = vadd.f32 %v200, %v2156
    %v2158 = vpop.f32.mrb[0].mxu0
    %v2159 = vadd.f32 %v204, %v2158
    %v2160 = vpop.f32.mrb[0].mxu0
    %v2161 = vpop.f32.mrb[0].mxu0
    %2162 = vdwg.mxu0
    %v2163 = vtanh.pop %v2116
    %v2164 = vtanh.pop %v2118
    %v2165 = vtanh.pop %v2157
    %v2166 = vtanh.pop %v2159
    %v2167 = vmul.f32 %v2163, 0.5
    %v2168 = vadd.f32 %v2167, 0.5
    %v2169 = vmul.f32 %v2164, 0.5
    %v2170 = vadd.f32 %v2169, 0.5
    %v2171 = vmul.f32 %v2166, 0.5
    %v2172 = vadd.f32 %v2171, 0.5
    %v2173 = vmul.f32 %v2170, %v1946
    %v2174 = vmul.f32 %v2168, %v2165
    %v2175 = vadd.f32 %v2173, %v2174
    %v2176 = vtanh.pop %v2175
    %v2177 = vmul.f32 %v2172, %v2176
    %s2178 = sadd.s32 %s209, 5
    %p2179 = scmp.eq.s32.totalorder %s2178, 7
    // Predicated region
    $region54: #{lstm_df_forward.3} parent=1 // pred_check
      %p2180 = pneg %p2179
    $region55: #{lstm_df_forward.3} parent=1 // pred_check_branch
      %2182 = sbr.rel (%p2180) target = $region57
    $region56: #{lstm_df_forward.3} parent=1 // pred_region
      %2183 = vst [vmem:[#allocation6] sm:$0x3] %v2177
      %2184 = vst [vmem:[#allocation7] sm:$0x3] %v2175
    $region57: #{lstm_df_forward.3} parent=1 // pred_fallthru
      _
    %vm2185 = vcmask 1047559
    %v2186 = vsel %vm2185, %v218, %v214
    %v2189 = vrot.slane %v2078, 2
    %v2191 = vpack.c.bf16 %v2186, %v2186
    %v2192 = vpack.c.bf16 %v2189, %v2189
    %v2195 = vrot.slane %v2191, 3
    %v2196 = vrot.slane %v2192, 3
    %2199 = vmatprep.subr.bf16.mxu0 %v417
    %2200 = vmatpush1.bf16.msra.mxu0 %v416
    %2201 = vmatprep.subr.bf16.mxu0 %v421
    %2202 = vmatpush1.bf16.msra.mxu0 %v420
    %2203 = vmatprep.subr.bf16.mxu0 %v425
    %2204 = vmatpush1.bf16.msra.mxu0 %v424
    %2205 = vmatprep.subr.bf16.mxu0 %v429
    %2206 = vmatpush1.bf16.msra.mxu0 %v428
    %2207 = vmatprep.subr.bf16.mxu0 %v433
    %2208 = vmatpush1.bf16.msra.mxu0 %v432
    %2209 = vmatprep.subr.bf16.mxu0 %v437
    %2210 = vmatpush1.bf16.msra.mxu0 %v436
    %2211 = vmatprep.subr.bf16.mxu0 %v441
    %2212 = vmatpush1.bf16.msra.mxu0 %v440
    %2213 = vmatprep.subr.bf16.mxu0 %v445
    %2214 = vmatpush1.bf16.msra.mxu0 %v444
    %2215 = vmatprep.subr.bf16.mxu0 %v449
    %2216 = vmatpush1.bf16.msra.mxu0 %v448
    %2217 = vmatprep.subr.bf16.mxu0 %v453
    %2218 = vmatpush1.bf16.msra.mxu0 %v452
    %2219 = vmatprep.subr.bf16.mxu0 %v457
    %2220 = vmatpush1.bf16.msra.mxu0 %v456
    %2221 = vmatprep.subr.bf16.mxu0 %v461
    %2222 = vmatpush1.bf16.msra.mxu0 %v460
    %2223 = vmatprep.subr.bf16.mxu0 %v465
    %2224 = vmatpush1.bf16.msra.mxu0 %v464
    %2225 = vmatprep.subr.bf16.mxu0 %v469
    %2226 = vmatpush1.bf16.msra.mxu0 %v468
    %2227 = vmatprep.subr.bf16.mxu0 %v473
    %2228 = vmatpush1.bf16.msra.mxu0 %v472
    %2229 = vmatprep.subr.bf16.mxu0 %v477
    %2230 = vmatpush1.bf16.msra.mxu0 %v476
    %2231 = vmatprep.mubr.bf16.mxu0 %v2196
    %2232 = vmatmul.mubr.bf16.gmra.mrb[0].mxu0 %v2195
    %v2233 = vpop.f32.mrb[0].mxu0
    %v2234 = vadd.f32 %v170, %v2233
    %v2235 = vpop.f32.mrb[0].mxu0
    %v2236 = vadd.f32 %v174, %v2235
    %v2237 = vpop.f32.mrb[0].mxu0
    %v2238 = vpop.f32.mrb[0].mxu0
    %2239 = vdwg.mxu0
    %2240 = vmatprep.subr.bf16.mxu0 %v419
    %2241 = vmatpush1.bf16.msra.mxu0 %v418
    %2242 = vmatprep.subr.bf16.mxu0 %v423
    %2243 = vmatpush1.bf16.msra.mxu0 %v422
    %2244 = vmatprep.subr.bf16.mxu0 %v427
    %2245 = vmatpush1.bf16.msra.mxu0 %v426
    %2246 = vmatprep.subr.bf16.mxu0 %v431
    %2247 = vmatpush1.bf16.msra.mxu0 %v430
    %2248 = vmatprep.subr.bf16.mxu0 %v435
    %2249 = vmatpush1.bf16.msra.mxu0 %v434
    %2250 = vmatprep.subr.bf16.mxu0 %v439
    %2251 = vmatpush1.bf16.msra.mxu0 %v438
    %2252 = vmatprep.subr.bf16.mxu0 %v443
    %2253 = vmatpush1.bf16.msra.mxu0 %v442
    %2254 = vmatprep.subr.bf16.mxu0 %v447
    %2255 = vmatpush1.bf16.msra.mxu0 %v446
    %2256 = vmatprep.subr.bf16.mxu0 %v451
    %2257 = vmatpush1.bf16.msra.mxu0 %v450
    %2258 = vmatprep.subr.bf16.mxu0 %v455
    %2259 = vmatpush1.bf16.msra.mxu0 %v454
    %2260 = vmatprep.subr.bf16.mxu0 %v459
    %2261 = vmatpush1.bf16.msra.mxu0 %v458
    %2262 = vmatprep.subr.bf16.mxu0 %v463
    %2263 = vmatpush1.bf16.msra.mxu0 %v462
    %2264 = vmatprep.subr.bf16.mxu0 %v467
    %2265 = vmatpush1.bf16.msra.mxu0 %v466
    %2266 = vmatprep.subr.bf16.mxu0 %v471
    %2267 = vmatpush1.bf16.msra.mxu0 %v470
    %2268 = vmatprep.subr.bf16.mxu0 %v475
    %2269 = vmatpush1.bf16.msra.mxu0 %v474
    %2270 = vmatprep.subr.bf16.mxu0 %v479
    %2271 = vmatpush1.bf16.msra.mxu0 %v478
    %2272 = vmatprep.mubr.bf16.mxu0 %v2196
    %2273 = vmatmul.mubr.bf16.gmra.mrb[0].mxu0 %v2195
    %v2274 = vpop.f32.mrb[0].mxu0
    %v2275 = vadd.f32 %v178, %v2274
    %v2276 = vpop.f32.mrb[0].mxu0
    %v2277 = vadd.f32 %v182, %v2276
    %v2278 = vpop.f32.mrb[0].mxu0
    %v2279 = vpop.f32.mrb[0].mxu0
    %2280 = vdwg.mxu0
    %v2281 = vtanh.pop %v2234
    %v2282 = vtanh.pop %v2236
    %v2283 = vtanh.pop %v2275
    %v2284 = vtanh.pop %v2277
    %v2285 = vmul.f32 %v2281, 0.5
    %v2286 = vadd.f32 %v2285, 0.5
    %v2287 = vmul.f32 %v2282, 0.5
    %v2288 = vadd.f32 %v2287, 0.5
    %v2289 = vmul.f32 %v2284, 0.5
    %v2290 = vadd.f32 %v2289, 0.5
    %v2291 = vmul.f32 %v2288, %v2076
    %v2292 = vmul.f32 %v2286, %v2283
    %v2293 = vadd.f32 %v2291, %v2292
    %v2294 = vtanh.pop %v2293
    %v2295 = vmul.f32 %v2290, %v2294
    %v2296 = vpack.c.bf16 %v2295, %v2295
    %v2297 = vpack.c.bf16 %v2177, %v2177
    %2298 = vmatprep.subr.bf16.mxu0 %v836
    %2299 = vmatpush1.bf16.msra.mxu0 %v835
    %2300 = vmatprep.subr.bf16.mxu0 %v840
    %2301 = vmatpush1.bf16.msra.mxu0 %v839
    %2302 = vmatprep.subr.bf16.mxu0 %v844
    %2303 = vmatpush1.bf16.msra.mxu0 %v843
    %2304 = vmatprep.subr.bf16.mxu0 %v848
    %2305 = vmatpush1.bf16.msra.mxu0 %v847
    %2306 = vmatprep.subr.bf16.mxu0 %v852
    %2307 = vmatpush1.bf16.msra.mxu0 %v851
    %2308 = vmatprep.subr.bf16.mxu0 %v856
    %2309 = vmatpush1.bf16.msra.mxu0 %v855
    %2310 = vmatprep.subr.bf16.mxu0 %v860
    %2311 = vmatpush1.bf16.msra.mxu0 %v859
    %2312 = vmatprep.subr.bf16.mxu0 %v864
    %2313 = vmatpush1.bf16.msra.mxu0 %v863
    %2314 = vmatprep.subr.bf16.mxu0 %v868
    %2315 = vmatpush1.bf16.msra.mxu0 %v867
    %2316 = vmatprep.subr.bf16.mxu0 %v872
    %2317 = vmatpush1.bf16.msra.mxu0 %v871
    %2318 = vmatprep.subr.bf16.mxu0 %v876
    %2319 = vmatpush1.bf16.msra.mxu0 %v875
    %2320 = vmatprep.subr.bf16.mxu0 %v880
    %2321 = vmatpush1.bf16.msra.mxu0 %v879
    %2322 = vmatprep.subr.bf16.mxu0 %v884
    %2323 = vmatpush1.bf16.msra.mxu0 %v883
    %2324 = vmatprep.subr.bf16.mxu0 %v888
    %2325 = vmatpush1.bf16.msra.mxu0 %v887
    %2326 = vmatprep.subr.bf16.mxu0 %v892
    %2327 = vmatpush1.bf16.msra.mxu0 %v891
    %2328 = vmatprep.subr.bf16.mxu0 %v896
    %2329 = vmatpush1.bf16.msra.mxu0 %v895
    %2330 = vmatprep.mubr.bf16.mxu0 %v2297
    %2331 = vmatmul.mubr.bf16.gmra.mrb[0].mxu0 %v2296
    %v2332 = vpop.f32.mrb[0].mxu0
    %v2333 = vadd.f32 %v192, %v2332
    %v2334 = vpop.f32.mrb[0].mxu0
    %v2335 = vadd.f32 %v196, %v2334
    %v2336 = vpop.f32.mrb[0].mxu0
    %v2337 = vpop.f32.mrb[0].mxu0
    %2338 = vdwg.mxu0
    %2339 = vmatprep.subr.bf16.mxu0 %v838
    %2340 = vmatpush1.bf16.msra.mxu0 %v837
    %2341 = vmatprep.subr.bf16.mxu0 %v842
    %2342 = vmatpush1.bf16.msra.mxu0 %v841
    %2343 = vmatprep.subr.bf16.mxu0 %v846
    %2344 = vmatpush1.bf16.msra.mxu0 %v845
    %2345 = vmatprep.subr.bf16.mxu0 %v850
    %2346 = vmatpush1.bf16.msra.mxu0 %v849
    %2347 = vmatprep.subr.bf16.mxu0 %v854
    %2348 = vmatpush1.bf16.msra.mxu0 %v853
    %2349 = vmatprep.subr.bf16.mxu0 %v858
    %2350 = vmatpush1.bf16.msra.mxu0 %v857
    %2351 = vmatprep.subr.bf16.mxu0 %v862
    %2352 = vmatpush1.bf16.msra.mxu0 %v861
    %2353 = vmatprep.subr.bf16.mxu0 %v866
    %2354 = vmatpush1.bf16.msra.mxu0 %v865
    %2355 = vmatprep.subr.bf16.mxu0 %v870
    %2356 = vmatpush1.bf16.msra.mxu0 %v869
    %2357 = vmatprep.subr.bf16.mxu0 %v874
    %2358 = vmatpush1.bf16.msra.mxu0 %v873
    %2359 = vmatprep.subr.bf16.mxu0 %v878
    %2360 = vmatpush1.bf16.msra.mxu0 %v877
    %2361 = vmatprep.subr.bf16.mxu0 %v882
    %2362 = vmatpush1.bf16.msra.mxu0 %v881
    %2363 = vmatprep.subr.bf16.mxu0 %v886
    %2364 = vmatpush1.bf16.msra.mxu0 %v885
    %2365 = vmatprep.subr.bf16.mxu0 %v890
    %2366 = vmatpush1.bf16.msra.mxu0 %v889
    %2367 = vmatprep.subr.bf16.mxu0 %v894
    %2368 = vmatpush1.bf16.msra.mxu0 %v893
    %2369 = vmatprep.subr.bf16.mxu0 %v898
    %2370 = vmatpush1.bf16.msra.mxu0 %v897
    %2371 = vmatprep.mubr.bf16.mxu0 %v2297
    %2372 = vmatmul.mubr.bf16.gmra.mrb[0].mxu0 %v2296
    %v2373 = vpop.f32.mrb[0].mxu0
    %v2374 = vadd.f32 %v200, %v2373
    %v2375 = vpop.f32.mrb[0].mxu0
    %v2376 = vadd.f32 %v204, %v2375
    %v2377 = vpop.f32.mrb[0].mxu0
    %v2378 = vpop.f32.mrb[0].mxu0
    %2379 = vdwg.mxu0
    %v2380 = vtanh.pop %v2333
    %v2381 = vtanh.pop %v2335
    %v2382 = vtanh.pop %v2374
    %v2383 = vtanh.pop %v2376
    %v2384 = vmul.f32 %v2380, 0.5
    %v2385 = vadd.f32 %v2384, 0.5
    %v2386 = vmul.f32 %v2381, 0.5
    %v2387 = vadd.f32 %v2386, 0.5
    %v2388 = vmul.f32 %v2383, 0.5
    %v2389 = vadd.f32 %v2388, 0.5
    %v2390 = vmul.f32 %v2387, %v2175
    %v2391 = vmul.f32 %v2385, %v2382
    %v2392 = vadd.f32 %v2390, %v2391
    %v2393 = vtanh.pop %v2392
    %v2394 = vmul.f32 %v2389, %v2393
    %s2395 = sadd.s32 %s209, 6
    %p2396 = scmp.eq.s32.totalorder %s2395, 7
    // Predicated region
    $region58: #{lstm_df_forward.3} parent=1 // pred_check
      %p2397 = pneg %p2396
    $region59: #{lstm_df_forward.3} parent=1 // pred_check_branch
      %2399 = sbr.rel (%p2397) target = $region61
    $region60: #{lstm_df_forward.3} parent=1 // pred_region
      %2400 = vst [vmem:[#allocation6] sm:$0x3] %v2394
      %2401 = vst [vmem:[#allocation7] sm:$0x3] %v2392
    $region61: #{lstm_df_forward.3} parent=1 // pred_fallthru
      _
    %v2405 = vrot.slane %v2295, 1
    %v2407 = vpack.c.bf16 %v218, %v214
    %v2408 = vpack.c.bf16 %v2405, %v2405
    %v2410 = vshrl.u32 %v2407, 16
    %v2412 = vrot.slane %v2410, 3
    %v2413 = vshll.u32 %v2407, 16
    %v2415 = vrot.slane %v2413, 4
    %v2416 = vor.u32 %v2412, %v2415
    %v2418 = vshrl.u32 %v2408, 16
    %v2420 = vrot.slane %v2418, 3
    %v2421 = vshll.u32 %v2408, 16
    %v2423 = vrot.slane %v2421, 4
    %v2424 = vor.u32 %v2420, %v2423
    %2427 = vmatprep.subr.bf16.mxu0 %v417
    %2428 = vmatpush1.bf16.msra.mxu0 %v416
    %2429 = vmatprep.subr.bf16.mxu0 %v421
    %2430 = vmatpush1.bf16.msra.mxu0 %v420
    %2431 = vmatprep.subr.bf16.mxu0 %v425
    %2432 = vmatpush1.bf16.msra.mxu0 %v424
    %2433 = vmatprep.subr.bf16.mxu0 %v429
    %2434 = vmatpush1.bf16.msra.mxu0 %v428
    %2435 = vmatprep.subr.bf16.mxu0 %v433
    %2436 = vmatpush1.bf16.msra.mxu0 %v432
    %2437 = vmatprep.subr.bf16.mxu0 %v437
    %2438 = vmatpush1.bf16.msra.mxu0 %v436
    %2439 = vmatprep.subr.bf16.mxu0 %v441
    %2440 = vmatpush1.bf16.msra.mxu0 %v440
    %2441 = vmatprep.subr.bf16.mxu0 %v445
    %2442 = vmatpush1.bf16.msra.mxu0 %v444
    %2443 = vmatprep.subr.bf16.mxu0 %v449
    %2444 = vmatpush1.bf16.msra.mxu0 %v448
    %2445 = vmatprep.subr.bf16.mxu0 %v453
    %2446 = vmatpush1.bf16.msra.mxu0 %v452
    %2447 = vmatprep.subr.bf16.mxu0 %v457
    %2448 = vmatpush1.bf16.msra.mxu0 %v456
    %2449 = vmatprep.subr.bf16.mxu0 %v461
    %2450 = vmatpush1.bf16.msra.mxu0 %v460
    %2451 = vmatprep.subr.bf16.mxu0 %v465
    %2452 = vmatpush1.bf16.msra.mxu0 %v464
    %2453 = vmatprep.subr.bf16.mxu0 %v469
    %2454 = vmatpush1.bf16.msra.mxu0 %v468
    %2455 = vmatprep.subr.bf16.mxu0 %v473
    %2456 = vmatpush1.bf16.msra.mxu0 %v472
    %2457 = vmatprep.subr.bf16.mxu0 %v477
    %2458 = vmatpush1.bf16.msra.mxu0 %v476
    %2459 = vmatprep.mubr.bf16.mxu0 %v2424
    %2460 = vmatmul.mubr.bf16.gmra.mrb[0].mxu0 %v2416
    %v2461 = vpop.f32.mrb[0].mxu0
    %v2462 = vadd.f32 %v170, %v2461
    %v2463 = vpop.f32.mrb[0].mxu0
    %v2464 = vadd.f32 %v174, %v2463
    %v2465 = vpop.f32.mrb[0].mxu0
    %v2466 = vpop.f32.mrb[0].mxu0
    %2467 = vdwg.mxu0
    %2468 = vmatprep.subr.bf16.mxu0 %v419
    %2469 = vmatpush1.bf16.msra.mxu0 %v418
    %2470 = vmatprep.subr.bf16.mxu0 %v423
    %2471 = vmatpush1.bf16.msra.mxu0 %v422
    %2472 = vmatprep.subr.bf16.mxu0 %v427
    %2473 = vmatpush1.bf16.msra.mxu0 %v426
    %2474 = vmatprep.subr.bf16.mxu0 %v431
    %2475 = vmatpush1.bf16.msra.mxu0 %v430
    %2476 = vmatprep.subr.bf16.mxu0 %v435
    %2477 = vmatpush1.bf16.msra.mxu0 %v434
    %2478 = vmatprep.subr.bf16.mxu0 %v439
    %2479 = vmatpush1.bf16.msra.mxu0 %v438
    %2480 = vmatprep.subr.bf16.mxu0 %v443
    %2481 = vmatpush1.bf16.msra.mxu0 %v442
    %2482 = vmatprep.subr.bf16.mxu0 %v447
    %2483 = vmatpush1.bf16.msra.mxu0 %v446
    %2484 = vmatprep.subr.bf16.mxu0 %v451
    %2485 = vmatpush1.bf16.msra.mxu0 %v450
    %2486 = vmatprep.subr.bf16.mxu0 %v455
    %2487 = vmatpush1.bf16.msra.mxu0 %v454
    %2488 = vmatprep.subr.bf16.mxu0 %v459
    %2489 = vmatpush1.bf16.msra.mxu0 %v458
    %2490 = vmatprep.subr.bf16.mxu0 %v463
    %2491 = vmatpush1.bf16.msra.mxu0 %v462
    %2492 = vmatprep.subr.bf16.mxu0 %v467
    %2493 = vmatpush1.bf16.msra.mxu0 %v466
    %2494 = vmatprep.subr.bf16.mxu0 %v471
    %2495 = vmatpush1.bf16.msra.mxu0 %v470
    %2496 = vmatprep.subr.bf16.mxu0 %v475
    %2497 = vmatpush1.bf16.msra.mxu0 %v474
    %2498 = vmatprep.subr.bf16.mxu0 %v479
    %2499 = vmatpush1.bf16.msra.mxu0 %v478
    %2500 = vmatprep.mubr.bf16.mxu0 %v2424
    %2501 = vmatmul.mubr.bf16.gmra.mrb[0].mxu0 %v2416
    %v2502 = vpop.f32.mrb[0].mxu0
    %v2503 = vadd.f32 %v178, %v2502
    %v2504 = vpop.f32.mrb[0].mxu0
    %v2505 = vadd.f32 %v182, %v2504
    %v2506 = vpop.f32.mrb[0].mxu0
    %v2507 = vpop.f32.mrb[0].mxu0
    %2508 = vdwg.mxu0
    %v2509 = vtanh.pop %v2462
    %v2510 = vtanh.pop %v2464
    %v2511 = vtanh.pop %v2503
    %v2512 = vtanh.pop %v2505
    %v2513 = vmul.f32 %v2509, 0.5
    %v2514 = vadd.f32 %v2513, 0.5
    %v2515 = vmul.f32 %v2510, 0.5
    %v2516 = vadd.f32 %v2515, 0.5
    %v2517 = vmul.f32 %v2512, 0.5
    %v2518 = vadd.f32 %v2517, 0.5
    %v2519 = vmul.f32 %v2516, %v2293
    %v2520 = vmul.f32 %v2514, %v2511
    %v2521 = vadd.f32 %v2519, %v2520
    %v2522 = vtanh.pop %v2521
    %v2523 = vmul.f32 %v2518, %v2522
    %v2524 = vpack.c.bf16 %v2523, %v2523
    %v2525 = vpack.c.bf16 %v2394, %v2394
    %2526 = vmatprep.subr.bf16.mxu0 %v836
    %2527 = vmatpush1.bf16.msra.mxu0 %v835
    %2528 = vmatprep.subr.bf16.mxu0 %v840
    %2529 = vmatpush1.bf16.msra.mxu0 %v839
    %2530 = vmatprep.subr.bf16.mxu0 %v844
    %2531 = vmatpush1.bf16.msra.mxu0 %v843
    %2532 = vmatprep.subr.bf16.mxu0 %v848
    %2533 = vmatpush1.bf16.msra.mxu0 %v847
    %2534 = vmatprep.subr.bf16.mxu0 %v852
    %2535 = vmatpush1.bf16.msra.mxu0 %v851
    %2536 = vmatprep.subr.bf16.mxu0 %v856
    %2537 = vmatpush1.bf16.msra.mxu0 %v855
    %2538 = vmatprep.subr.bf16.mxu0 %v860
    %2539 = vmatpush1.bf16.msra.mxu0 %v859
    %2540 = vmatprep.subr.bf16.mxu0 %v864
    %2541 = vmatpush1.bf16.msra.mxu0 %v863
    %2542 = vmatprep.subr.bf16.mxu0 %v868
    %2543 = vmatpush1.bf16.msra.mxu0 %v867
    %2544 = vmatprep.subr.bf16.mxu0 %v872
    %2545 = vmatpush1.bf16.msra.mxu0 %v871
    %2546 = vmatprep.subr.bf16.mxu0 %v876
    %2547 = vmatpush1.bf16.msra.mxu0 %v875
    %2548 = vmatprep.subr.bf16.mxu0 %v880
    %2549 = vmatpush1.bf16.msra.mxu0 %v879
    %2550 = vmatprep.subr.bf16.mxu0 %v884
    %2551 = vmatpush1.bf16.msra.mxu0 %v883
    %2552 = vmatprep.subr.bf16.mxu0 %v888
    %2553 = vmatpush1.bf16.msra.mxu0 %v887
    %2554 = vmatprep.subr.bf16.mxu0 %v892
    %2555 = vmatpush1.bf16.msra.mxu0 %v891
    %2556 = vmatprep.subr.bf16.mxu0 %v896
    %2557 = vmatpush1.bf16.msra.mxu0 %v895
    %2558 = vmatprep.mubr.bf16.mxu0 %v2525
    %2559 = vmatmul.mubr.bf16.gmra.mrb[0].mxu0 %v2524
    %v2560 = vpop.f32.mrb[0].mxu0
    %v2561 = vadd.f32 %v192, %v2560
    %v2562 = vpop.f32.mrb[0].mxu0
    %v2563 = vadd.f32 %v196, %v2562
    %v2564 = vpop.f32.mrb[0].mxu0
    %v2565 = vpop.f32.mrb[0].mxu0
    %2566 = vdwg.mxu0
    %2567 = vmatprep.subr.bf16.mxu0 %v838
    %2568 = vmatpush1.bf16.msra.mxu0 %v837
    %2569 = vmatprep.subr.bf16.mxu0 %v842
    %2570 = vmatpush1.bf16.msra.mxu0 %v841
    %2571 = vmatprep.subr.bf16.mxu0 %v846
    %2572 = vmatpush1.bf16.msra.mxu0 %v845
    %2573 = vmatprep.subr.bf16.mxu0 %v850
    %2574 = vmatpush1.bf16.msra.mxu0 %v849
    %2575 = vmatprep.subr.bf16.mxu0 %v854
    %2576 = vmatpush1.bf16.msra.mxu0 %v853
    %2577 = vmatprep.subr.bf16.mxu0 %v858
    %2578 = vmatpush1.bf16.msra.mxu0 %v857
    %2579 = vmatprep.subr.bf16.mxu0 %v862
    %2580 = vmatpush1.bf16.msra.mxu0 %v861
    %2581 = vmatprep.subr.bf16.mxu0 %v866
    %2582 = vmatpush1.bf16.msra.mxu0 %v865
    %2583 = vmatprep.subr.bf16.mxu0 %v870
    %2584 = vmatpush1.bf16.msra.mxu0 %v869
    %2585 = vmatprep.subr.bf16.mxu0 %v874
    %2586 = vmatpush1.bf16.msra.mxu0 %v873
    %2587 = vmatprep.subr.bf16.mxu0 %v878
    %2588 = vmatpush1.bf16.msra.mxu0 %v877
    %2589 = vmatprep.subr.bf16.mxu0 %v882
    %2590 = vmatpush1.bf16.msra.mxu0 %v881
    %2591 = vmatprep.subr.bf16.mxu0 %v886
    %2592 = vmatpush1.bf16.msra.mxu0 %v885
    %2593 = vmatprep.subr.bf16.mxu0 %v890
    %2594 = vmatpush1.bf16.msra.mxu0 %v889
    %2595 = vmatprep.subr.bf16.mxu0 %v894
    %2596 = vmatpush1.bf16.msra.mxu0 %v893
    %2597 = vmatprep.subr.bf16.mxu0 %v898
    %2598 = vmatpush1.bf16.msra.mxu0 %v897
    %2599 = vmatprep.mubr.bf16.mxu0 %v2525
    %2600 = vmatmul.mubr.bf16.gmra.mrb[0].mxu0 %v2524
    %v2601 = vpop.f32.mrb[0].mxu0
    %v2602 = vadd.f32 %v200, %v2601
    %v2603 = vpop.f32.mrb[0].mxu0
    %v2604 = vadd.f32 %v204, %v2603
    %v2605 = vpop.f32.mrb[0].mxu0
    %v2606 = vpop.f32.mrb[0].mxu0
    %2607 = vdwg.mxu0
    %v2608 = vtanh.pop %v2561
    %v2609 = vtanh.pop %v2563
    %v2610 = vtanh.pop %v2602
    %v2611 = vtanh.pop %v2604
    %v2612 = vmul.f32 %v2608, 0.5
    %v2613 = vadd.f32 %v2612, 0.5
    %v2614 = vmul.f32 %v2609, 0.5
    %v2615 = vadd.f32 %v2614, 0.5
    %v2616 = vmul.f32 %v2611, 0.5
    %v2617 = vadd.f32 %v2616, 0.5
    %v2618 = vmul.f32 %v2615, %v2392
    %v2619 = vmul.f32 %v2613, %v2610
    %v2620 = vadd.f32 %v2618, %v2619
    %v2621 = vtanh.pop %v2620
    %v2622 = vmul.f32 %v2617, %v2621
    %s2623 = sadd.s32 %s209, 7
    %p2624 = scmp.eq.s32.totalorder %s2623, 7
    // Predicated region
    $region62: #{lstm_df_forward.3} parent=1 // pred_check
      %p2625 = pneg %p2624
    $region63: #{lstm_df_forward.3} parent=1 // pred_check_branch
      %2627 = sbr.rel (%p2625) target = $region65
    $region64: #{lstm_df_forward.3} parent=1 // pred_region
      %2628 = vst [vmem:[#allocation6] sm:$0x3] %v2622
      %2629 = vst [vmem:[#allocation7] sm:$0x3] %v2620
    $region65: #{lstm_df_forward.3} parent=1 // pred_fallthru
      _
    %2630 = vst [vmem:[#allocation2] sm:$0x3] %v2523
    %2631 = vst [vmem:[#allocation3] sm:$0x3] %v2521
    %2632 = vst [vmem:[#allocation4] sm:$0x3] %v2622
    %2633 = vst [vmem:[#allocation5] sm:$0x3] %v2620
    // Predicated region
    $region66: #{lstm_df_forward.3} parent=1 // pred_check
      %p2634 = pneg %p29
    $region67: #{lstm_df_forward.3} parent=1 // pred_check_branch
      %2636 = sbr.rel (%p2634) target = $region69
    $region68: #{lstm_df_forward.3} parent=1 // pred_region
      %v2637 = vld [vmem:[#allocation6] sm:$0x3]
      %v2638 = vld [vmem:[%s5] sm:$0xff]
      %v2639 = vld [vmem:[%s5 + $0x8] sm:$0xff]
      %v2640 = vld [vmem:[%s5 + $0x10] sm:$0xff]
      %v2641 = vld [vmem:[%s5 + $0x18] sm:$0xff]
      %v2642 = vld [vmem:[%s5 + $0x20] sm:$0xff]
      %v2643 = vld [vmem:[%s5 + $0x28] sm:$0xff]
      %v2644 = vld [vmem:[%s5 + $0x30] sm:$0xff]
      %v2645 = vld [vmem:[%s5 + $0x38] sm:$0xff]
      %v2646 = vld [vmem:[%s5 + $0x40] sm:$0xff]
      %v2647 = vld [vmem:[%s5 + $0x48] sm:$0xff]
      %v2648 = vld [vmem:[%s5 + $0x50] sm:$0xff]
      %v2649 = vld [vmem:[%s5 + $0x58] sm:$0xff]
      %v2650 = vld [vmem:[%s5 + $0x60] sm:$0xff]
      %v2651 = vld [vmem:[%s5 + $0x68] sm:$0xff]
      %v2652 = vld [vmem:[%s5 + $0x70] sm:$0xff]
      %v2653 = vld [vmem:[%s5 + $0x78] sm:$0xff]
      %v2654 = vld [vmem:[%s6] sm:$0x1]
      %v2656 = vlaneseq
      %v2657 = vshrl.u32 %v2656, 7
      %v2658 = vsub.s32 0, %v2657
      %v2659 = vrot.slane %v2654, %v2658
      %2661 = vmatprep.subr.mxu0 0.0
      %2662 = vmatpush1.msra.mxu0 %v2638
      %2663 = vmatprep.subr.mxu0 0.0
      %2664 = vmatpush1.msra.mxu0 %v2639
      %2665 = vmatprep.subr.mxu0 0.0
      %2666 = vmatpush1.msra.mxu0 %v2640
      %2667 = vmatprep.subr.mxu0 0.0
      %2668 = vmatpush1.msra.mxu0 %v2641
      %2669 = vmatprep.subr.mxu0 0.0
      %2670 = vmatpush1.msra.mxu0 %v2642
      %2671 = vmatprep.subr.mxu0 0.0
      %2672 = vmatpush1.msra.mxu0 %v2643
      %2673 = vmatprep.subr.mxu0 0.0
      %2674 = vmatpush1.msra.mxu0 %v2644
      %2675 = vmatprep.subr.mxu0 0.0
      %2676 = vmatpush1.msra.mxu0 %v2645
      %2677 = vmatprep.subr.mxu0 0.0
      %2678 = vmatpush1.msra.mxu0 %v2646
      %2679 = vmatprep.subr.mxu0 0.0
      %2680 = vmatpush1.msra.mxu0 %v2647
      %2681 = vmatprep.subr.mxu0 0.0
      %2682 = vmatpush1.msra.mxu0 %v2648
      %2683 = vmatprep.subr.mxu0 0.0
      %2684 = vmatpush1.msra.mxu0 %v2649
      %2685 = vmatprep.subr.mxu0 0.0
      %2686 = vmatpush1.msra.mxu0 %v2650
      %2687 = vmatprep.subr.mxu0 0.0
      %2688 = vmatpush1.msra.mxu0 %v2651
      %2689 = vmatprep.subr.mxu0 0.0
      %2690 = vmatpush1.msra.mxu0 %v2652
      %2691 = vmatprep.subr.mxu0 0.0
      %2692 = vmatpush1.msra.mxu0 %v2653
      %2693 = vmatprep.subr.mxu0 0.0
      %2694 = vmatpush1.msra.mxu0 0.0
      %2695 = vmatprep.subr.mxu0 0.0
      %2696 = vmatpush1.msra.mxu0 0.0
      %2697 = vmatprep.subr.mxu0 0.0
      %2698 = vmatpush1.msra.mxu0 0.0
      %2699 = vmatprep.subr.mxu0 0.0
      %2700 = vmatpush1.msra.mxu0 0.0
      %2701 = vmatprep.subr.mxu0 0.0
      %2702 = vmatpush1.msra.mxu0 0.0
      %2703 = vmatprep.subr.mxu0 0.0
      %2704 = vmatpush1.msra.mxu0 0.0
      %2705 = vmatprep.subr.mxu0 0.0
      %2706 = vmatpush1.msra.mxu0 0.0
      %2707 = vmatprep.subr.mxu0 0.0
      %2708 = vmatpush1.msra.mxu0 0.0
      %2709 = vmatprep.subr.mxu0 0.0
      %2710 = vmatpush1.msra.mxu0 0.0
      %2711 = vmatprep.subr.mxu0 0.0
      %2712 = vmatpush1.msra.mxu0 0.0
      %2713 = vmatprep.subr.mxu0 0.0
      %2714 = vmatpush1.msra.mxu0 0.0
      %2715 = vmatprep.subr.mxu0 0.0
      %2716 = vmatpush1.msra.mxu0 0.0
      %2717 = vmatprep.subr.mxu0 0.0
      %2718 = vmatpush1.msra.mxu0 0.0
      %2719 = vmatprep.subr.mxu0 0.0
      %2720 = vmatpush1.msra.mxu0 0.0
      %2721 = vmatprep.subr.mxu0 0.0
      %2722 = vmatpush1.msra.mxu0 0.0
      %2723 = vmatprep.subr.mxu0 0.0
      %2724 = vmatpush1.msra.mxu0 0.0
      %2725 = vmatprep.mubr.f32.mxu0 0.0
      %2726 = vmatmul.mubr.f32.gmra.mrb[0].mxu0 %v2637
      %v2727 = vpop.f32.mrb[0].mxu0
      %v2728 = vadd.f32 %v2659, %v2727
      %v2729 = vpop.f32.mrb[0].mxu0
      %2730 = vdwg.mxu0
      %2731 = vst [vmem:[#allocation8] sm:$0x3] %v2728
      %v2732 = vld [vmem:[#allocation7] sm:$0x3]
      %2733 = vst [vmem:[%s8] sm:$0x3] %v2732
    $region69: #{lstm_df_forward.3} parent=1 // pred_fallthru
      _
    // Predicated region
    $region70: #{lstm_df_forward.3} parent=1 // pred_check
      _
    $region71: #{lstm_df_forward.3} parent=1 // pred_check_branch
      %2735 = sbr.rel (0) target = $region73
    $region72: #{lstm_df_forward.3} parent=1 // pred_region
      %s2737 = ssub.s32 32, 32
      %2738 = vsyncadd [#allocation9], %s2737
      %s2740 = sshll.u32 [#allocation8], 4
      %s2741 = int_to_ptr.vmem [resolvable:$true] %s2740
      %2743 = dma.vmem_to_hbm [thread:$0]  %s2741, 32, %s7, [#allocation9]
    $region73: #{lstm_df_forward.3} parent=1 // pred_fallthru
      _
    // Predicated region
    $region74: #{lstm_df_forward.3} parent=1 // pred_check
      _
    $region75: #{lstm_df_forward.3} parent=1 // pred_check_branch
      %2745 = sbr.rel (0) target = $region77
    $region76: #{lstm_df_forward.3} parent=1 // pred_region
      _
    $region77: #{lstm_df_forward.3} parent=1 // pred_fallthru
      _
    // Predicated region
    $region78: #{lstm_df_forward.3} parent=1 // pred_check
      _
    $region79: #{lstm_df_forward.3} parent=1 // pred_check_branch
      %2747 = sbr.rel (0) target = $region81
    $region80: #{lstm_df_forward.3} parent=1 // pred_region
      %2748 = dma.done [#allocation9], 32
    $region81: #{lstm_df_forward.3} parent=1 // pred_fallthru
      _
    // Predicated region
    $region82: #{lstm_df_forward.3} parent=1 // pred_check
      _
    $region83: #{lstm_df_forward.3} parent=1 // pred_check_branch
      %2750 = sbr.rel (0) target = $region85
    $region84: #{lstm_df_forward.3} parent=1 // pred_region
      _
    $region85: #{lstm_df_forward.3} parent=1 // pred_fallthru
      _
    %2751 = vsyncpa [#allocation9], 1

</llo_original>
